<compile_context>
chip_gen: v6e
topology: v6e:2x2x1
jax: 0.10.0
libtpu: 0.0.40
codegen_flags: <defaults>
</compile_context>

<pallas_src>
import functools

import jax
import jax.numpy as jnp
from jax.experimental import pallas as pl
from jax.experimental.pallas import tpu as pltpu

# Rows of the packed per-layer "small param" slab (each row padded to >=128 lanes).
(_ROW_LN1_G, _ROW_LN1_B, _ROW_ATTN_B, _ROW_LN2_G, _ROW_LN2_B,
 _ROW_FF_B2, _ROW_FF_B1) = range(7)
_SLAB_ROWS = 8  # pad to a full (8, 128) tile


def _round_up(x, m):
    return (x + m - 1) // m * m


def _layernorm(x, gamma, beta, eps=1e-5):
    mean = jnp.mean(x, axis=-1, keepdims=True)
    var = jnp.mean((x - mean) ** 2, axis=-1, keepdims=True)
    return (x - mean) * jax.lax.rsqrt(var + eps) * gamma + beta


def _erf(x):
    # Abramowitz & Stegun 7.1.26 rational approximation, |err| <= 1.5e-7.
    # Guaranteed Mosaic lowering while matching PyTorch's exact-erf nn.GELU
    # to float32 noise level.
    p = 0.3275911
    a1, a2, a3, a4, a5 = (0.254829592, -0.284496736, 1.421413741,
                          -1.453152027, 1.061405429)
    ax = jnp.abs(x)
    t = 1.0 / (1.0 + p * ax)
    poly = t * (a1 + t * (a2 + t * (a3 + t * (a4 + t * a5))))
    y = 1.0 - poly * jnp.exp(-ax * ax)
    return jnp.where(x >= 0.0, y, -y)


def _gelu_exact(x):
    return 0.5 * x * (1.0 + _erf(x * (2.0 ** -0.5)))


def dual_path_kernel(x_ref, wqkv_ref, wo_ref, w1_ref, w2_ref, vec_ref, o_ref,
                     *, depth, heads, dim_head, mlp_dim, mxu_dtype):
    # One path (low/high) per grid step; the whole batch is processed at once.
    B, N, D = x_ref.shape
    BN = B * N
    inner = heads * dim_head

    xf = x_ref[...].astype(jnp.float32).reshape(BN, D)  # leading-dim merge only

    for l in range(depth):  # STATIC unroll: static ref slices, LLO-visible schedule
        vec = vec_ref[l]                                        # (8, LW) f32 slab
        ln1_g = vec[_ROW_LN1_G:_ROW_LN1_G + 1, :D]
        ln1_b = vec[_ROW_LN1_B:_ROW_LN1_B + 1, :D]
        attn_b = vec[_ROW_ATTN_B:_ROW_ATTN_B + 1, :D]
        ln2_g = vec[_ROW_LN2_G:_ROW_LN2_G + 1, :D]
        ln2_b = vec[_ROW_LN2_B:_ROW_LN2_B + 1, :D]
        ff_b2 = vec[_ROW_FF_B2:_ROW_FF_B2 + 1, :D]
        ff_b1 = vec[_ROW_FF_B1:_ROW_FF_B1 + 1, :mlp_dim]

        # ---- Residual(PreNorm(Attention)), mask=None, dropout=0 ----
        xn = _layernorm(xf, ln1_g, ln1_b)
        # Single fused QKV projection, lane-dense (D -> 3*H*dh) output.
        # 1/sqrt(dim_head) is already folded into the Q columns of wqkv.
        qkv = jnp.dot(xn.astype(mxu_dtype), wqkv_ref[l],
                      preferred_element_type=jnp.float32)        # (BN, 3*inner) f32
        wo_l = wo_ref[l]                                         # (inner, D)

        attn = jnp.zeros((BN, D), jnp.float32)
        for h in range(heads):
            # Small static head loop: score/value einsums are tiny (B,N,N)/(B,N,dh).
            # TODO(synk): fully head-batched (B*H, N, dh) einsums need a
            # sublane<->leading transpose whose Mosaic lowering is shape-fragile
            # at dim_head=8; kept per-head here to guarantee compilation.
            oq = h * dim_head
            q_h = qkv[:, oq:oq + dim_head].reshape(B, N, dim_head)
            k_h = qkv[:, inner + oq:inner + oq + dim_head].reshape(B, N, dim_head)
            v_h = qkv[:, 2 * inner + oq:2 * inner + oq + dim_head].reshape(
                B, N, dim_head)
            dots = jnp.einsum('bid,bjd->bij', q_h.astype(mxu_dtype),
                              k_h.astype(mxu_dtype),
                              preferred_element_type=jnp.float32)
            dots = dots - jnp.max(dots, axis=-1, keepdims=True)
            e = jnp.exp(dots)
            # EUP reciprocal (approx): ~1e-4 rel. error; approx=False for exact.
            inv = pl.reciprocal(jnp.sum(e, axis=-1, keepdims=True), approx=True)
            p_attn = e * inv
            ob = jnp.einsum('bij,bjd->bid', p_attn.astype(mxu_dtype),
                            v_h.astype(mxu_dtype),
                            preferred_element_type=jnp.float32)   # (B, N, dh)
            # Head-wise row block of the single (H*dh, D) out-proj weight,
            # accumulated (== concat(heads) @ Wo).
            attn = attn + jnp.dot(ob.reshape(BN, dim_head).astype(mxu_dtype),
                                  wo_l[oq:oq + dim_head, :],
                                  preferred_element_type=jnp.float32)
        xf = xf + attn + attn_b
        # TODO(synk): attention-mask branch of Attention.forward not implemented
        # (mask=None path only).

        # ---- Residual(PreNorm(FeedForward)), dropout=0 ----
        xn2 = _layernorm(xf, ln2_g, ln2_b)
        h1 = jnp.dot(xn2.astype(mxu_dtype), w1_ref[l],
                     preferred_element_type=jnp.float32) + ff_b1
        g = _gelu_exact(h1)                                      # exact-erf GELU
        y = jnp.dot(g.astype(mxu_dtype), w2_ref[l],
                    preferred_element_type=jnp.float32) + ff_b2
        xf = xf + y

    # TODO(synk): a lane-dense (B, N*D) output layout would avoid masked stores
    # at D=32, but needs a lane-merging reshape whose lowering is shape-dependent.
    o_ref[...] = xf.reshape(B, N, D).astype(o_ref.dtype)


def _stack_params(params_low, params_high, *, heads, dim_head, mxu_dtype):
    """Stack per-layer params into lane-dense (path, layer, ...) slabs."""
    inner = heads * dim_head
    scale = dim_head ** (-0.5)

    def stack(key):
        return jnp.stack([jnp.stack([p[key] for p in params_low]),
                          jnp.stack([p[key] for p in params_high])])

    wqkv = stack("wqkv")                                   # (2, L, D, 3*inner)
    wqkv = wqkv.at[..., :inner].multiply(scale)            # fold 1/sqrt(dh) into Q

    dim = params_low[0]["w1"].shape[0]
    mlp_dim = params_low[0]["w1"].shape[1]
    lane_w = max(_round_up(dim, 128), _round_up(mlp_dim, 128))

    def row(key):
        v = stack(key)                                     # (2, L, w)
        return jnp.pad(v, ((0, 0), (0, 0), (0, lane_w - v.shape[-1])))

    # Row order must match the _ROW_* constants.
    rows = [row(k) for k in
            ("ln1_g", "ln1_b", "bo", "ln2_g", "ln2_b", "b2", "b1")]
    rows += [jnp.zeros_like(rows[0])] * (_SLAB_ROWS - len(rows))
    vec = jnp.stack(rows, axis=2)                          # (2, L, 8, lane_w)

    return {
        "wqkv": wqkv.astype(mxu_dtype),
        "wo": stack("wo").astype(mxu_dtype),
        "w1": stack("w1").astype(mxu_dtype),
        "w2": stack("w2").astype(mxu_dtype),
        "vec": vec.astype(jnp.float32),
    }


def dual_path_transformer(x1, x2, params_low, params_high, *, heads, dim_head,
                          mxu_dtype=jnp.bfloat16):
    """Semantics of DualPathTransformer.forward (mask=None, dropout=0)."""
    assert x1.shape == x2.shape and x1.dtype == x2.dtype
    assert len(params_low) == len(params_high)
    B, N, D = x1.shape
    depth = len(params_low)
    mlp_dim = params_low[0]["w1"].shape[1]

    xs = jnp.stack([x1, x2]).astype(jnp.float32)           # (2, B, N, D)
    st = _stack_params(params_low, params_high, heads=heads, dim_head=dim_head,
                       mxu_dtype=mxu_dtype)
    weight_args = [st["wqkv"], st["wo"], st["w1"], st["w2"], st["vec"]]

    kern = functools.partial(dual_path_kernel, depth=depth, heads=heads,
                             dim_head=dim_head, mlp_dim=mlp_dim,
                             mxu_dtype=mxu_dtype)

    def path_spec(a):
        nd = a.ndim
        # Leading path dim squeezed; everything else full extent, so all
        # per-path weights stay VMEM-resident across the whole layer stack.
        return pl.BlockSpec((None,) + tuple(a.shape[1:]),
                            lambda p, _n=nd: (p,) + (0,) * (_n - 1))

    out = pl.pallas_call(
        kern,
        out_shape=jax.ShapeDtypeStruct((2, B, N, D), x1.dtype),
        # One path per grid step.  "parallel" lets the scheduler place one path
        # per TensorCore on v7x; on single-TC v5e/v6e it is a 2-step loop.
        # TODO(synk): evaluate pltpu.CORE_PARALLEL / core_map for an explicit
        # path-per-core split once depth is also moved to a grid axis.
        grid=(2,),
        in_specs=[path_spec(xs)] + [path_spec(a) for a in weight_args],
        out_specs=pl.BlockSpec((None, B, N, D), lambda p: (p, 0, 0, 0)),
        compiler_params=pltpu.CompilerParams(
            dimension_semantics=("parallel",)),
    )(xs, *weight_args)

    # torch.cat((x1, x2), dim=1)  ->  concat along the token axis
    return jnp.concatenate([out[0], out[1]], axis=1)


def dual_path_reference(x1, x2, params_low, params_high, *, heads, dim_head):
    """Pure-JAX f32 forward, numerically faithful to the PyTorch module."""
    def ln(x, g, b, eps=1e-5):
        mean = jnp.mean(x, -1, keepdims=True)
        var = jnp.mean((x - mean) ** 2, -1, keepdims=True)
        return (x - mean) * jax.lax.rsqrt(var + eps) * g + b

    def attention(x, prm):
        B, N, _ = x.shape
        inner = heads * dim_head
        qkv = x @ prm["wqkv"]
        q, k, v = jnp.split(qkv, 3, axis=-1)

        def split_heads(t):
            return t.reshape(B, N, heads, dim_head).transpose(0, 2, 1, 3)

        q, k, v = split_heads(q), split_heads(k), split_heads(v)
        dots = jnp.einsum('bhid,bhjd->bhij', q, k) * dim_head ** (-0.5)
        p = jax.nn.softmax(dots, axis=-1)
        out = jnp.einsum('bhij,bhjd->bhid', p, v)
        out = out.transpose(0, 2, 1, 3).reshape(B, N, inner)
        return out @ prm["wo"] + prm["bo"]

    def feedforward(x, prm):
        h = x @ prm["w1"] + prm["b1"]
        return jax.nn.gelu(h, approximate=False) @ prm["w2"] + prm["b2"]

    def run(x, layers):
        for prm in layers:
            x = x + attention(ln(x, prm["ln1_g"], prm["ln1_b"]), prm)
            x = x + feedforward(ln(x, prm["ln2_g"], prm["ln2_b"]), prm)
        return x

    return jnp.concatenate([run(x1, params_low), run(x2, params_high)], axis=1)


def init_block_params(key, dim, heads, dim_head, mlp_dim):
    """One block's params in the fused, lane-dense layout.

    Porting PyTorch weights: wqkv = to_qkv.weight.T  (dim, 3*heads*dim_head,
    columns ordered q|k|v with per-head (h, d) layout), wo = to_out[0].weight.T,
    w1/w2 = net[0]/net[3].weight.T, biases / LayerNorm params as-is.
    """
    inner = heads * dim_head
    ks = jax.random.split(key, 10)

    def w(k, shape, scale=0.02):
        return jax.random.normal(k, shape, jnp.float32) * scale

    return {
        "ln1_g": 1.0 + w(ks[0], (dim,), 0.05),
        "ln1_b": w(ks[1], (dim,), 0.05),
        "wqkv": w(ks[2], (dim, 3 * inner)),
        "wo": w(ks[3], (inner, dim)),
        "bo": w(ks[4], (dim,), 0.02),
        "ln2_g": 1.0 + w(ks[5], (dim,), 0.05),
        "ln2_b": w(ks[6], (dim,), 0.05),
        "w1": w(ks[7], (dim, mlp_dim)),
        "b1": w(ks[8], (mlp_dim,), 0.02),
        "w2": w(ks[9], (mlp_dim, dim)),
        "b2": w(jax.random.fold_in(key, 7), (dim,), 0.02),
    }


if __name__ == "__main__":
    # Small shapes consistent with the module's forward:
    # input_feats_dim=32, depth=2, num_heads=4, dim_head=8, mlp_dim=64
    B, N = 2, 8
    DIM, DEPTH, HEADS, DIM_HEAD, MLP_DIM = 32, 2, 4, 8, 64

    key = jax.random.PRNGKey(0)
    kx1, kx2, kp = jax.random.split(key, 3)
    x1 = jax.random.normal(kx1, (B, N, DIM), jnp.float32)
    x2 = jax.random.normal(kx2, (B, N, DIM), jnp.float32)

    layer_keys = jax.random.split(kp, 2 * DEPTH)
    params_low = [
        init_block_params(layer_keys[i], DIM, HEADS, DIM_HEAD, MLP_DIM)
        for i in range(DEPTH)
    ]
    params_high = [
        init_block_params(layer_keys[DEPTH + i], DIM, HEADS, DIM_HEAD, MLP_DIM)
        for i in range(DEPTH)
    ]

    ref = dual_path_reference(x1, x2, params_low, params_high,
                              heads=HEADS, dim_head=DIM_HEAD)

    # f32 MXU operands: tight parity with the PyTorch-faithful reference.
    out_f32 = jax.block_until_ready(dual_path_transformer(
        x1, x2, params_low, params_high, heads=HEADS, dim_head=DIM_HEAD,
        mxu_dtype=jnp.float32))
    assert out_f32.shape == (B, 2 * N, DIM), out_f32.shape
    assert out_f32.dtype == jnp.float32
    err_f32 = float(jnp.max(jnp.abs(out_f32 - ref)))
    assert err_f32 < 2e-3, f"f32 kernel mismatch vs reference: {err_f32}"

    # bf16 MXU operands (default perf config): looser tolerance for bf16 drift.
    out_bf16 = jax.block_until_ready(dual_path_transformer(
        x1, x2, params_low, params_high, heads=HEADS, dim_head=DIM_HEAD,
        mxu_dtype=jnp.bfloat16))
    err_bf16 = float(jnp.max(jnp.abs(out_bf16 - ref)))
    assert err_bf16 < 3e-2, f"bf16 kernel mismatch vs reference: {err_bf16}"

    print("KERNEL_OK")
</pallas_src>

<mosaic_0001>
module attributes {stable_mosaic.version = 11 : i64} {
  func.func @dual_path_kernel(%arg0: i32, %arg1: memref<1x2x8x32xf32, #tpu.memory_space<vmem>>, %arg2: memref<1x2x32x96xf32, #tpu.memory_space<vmem>>, %arg3: memref<1x2x32x32xf32, #tpu.memory_space<vmem>>, %arg4: memref<1x2x32x64xf32, #tpu.memory_space<vmem>>, %arg5: memref<1x2x64x32xf32, #tpu.memory_space<vmem>>, %arg6: memref<1x2x8x128xf32, #tpu.memory_space<vmem>>, %arg7: memref<1x2x8x32xf32, #tpu.memory_space<vmem>>) attributes {dimension_semantics = [#tpu.dimension_semantics<parallel>], iteration_bounds = array<i64: 2>, scalar_prefetch = 0 : i64, scratch_operands = 0 : i64, tpu.core_type = #tpu.core_type<tc>, window_params = [{transform_indices = @transform_0, window_bounds = array<i64: 1, 2, 8, 32>}, {transform_indices = @transform_1, window_bounds = array<i64: 1, 2, 32, 96>}, {transform_indices = @transform_2, window_bounds = array<i64: 1, 2, 32, 32>}, {transform_indices = @transform_3, window_bounds = array<i64: 1, 2, 32, 64>}, {transform_indices = @transform_4, window_bounds = array<i64: 1, 2, 64, 32>}, {transform_indices = @transform_5, window_bounds = array<i64: 1, 2, 8, 128>}, {transform_indices = @transform_6, window_bounds = array<i64: 1, 2, 8, 32>}]} {
    %c0 = arith.constant 0 : index
    %c0_0 = arith.constant 0 : index
    %c0_1 = arith.constant 0 : index
    %c0_2 = arith.constant 0 : index
    %0 = vector.load %arg1[%c0, %c0_0, %c0_1, %c0_2] : memref<1x2x8x32xf32, #tpu.memory_space<vmem>>, vector<1x2x8x32xf32>
    %1 = vector.shape_cast %0 : vector<1x2x8x32xf32> to vector<2x8x32xf32>
    %2 = vector.shape_cast %1 : vector<2x8x32xf32> to vector<16x32xf32>
    %c0_3 = arith.constant 0 : index
    %c0_4 = arith.constant 0 : index
    %c0_5 = arith.constant 0 : index
    %c0_6 = arith.constant 0 : index
    %3 = vector.load %arg6[%c0_3, %c0_4, %c0_5, %c0_6] : memref<1x2x8x128xf32, #tpu.memory_space<vmem>>, vector<1x1x8x128xf32>
    %4 = vector.shape_cast %3 : vector<1x1x8x128xf32> to vector<8x128xf32>
    %5 = vector.extract_strided_slice %4 {offsets = [0, 0], sizes = [1, 32], strides = [1, 1]} : vector<8x128xf32> to vector<1x32xf32>
    %6 = vector.extract_strided_slice %4 {offsets = [1, 0], sizes = [1, 32], strides = [1, 1]} : vector<8x128xf32> to vector<1x32xf32>
    %7 = vector.extract_strided_slice %4 {offsets = [2, 0], sizes = [1, 32], strides = [1, 1]} : vector<8x128xf32> to vector<1x32xf32>
    %8 = vector.extract_strided_slice %4 {offsets = [3, 0], sizes = [1, 32], strides = [1, 1]} : vector<8x128xf32> to vector<1x32xf32>
    %9 = vector.extract_strided_slice %4 {offsets = [4, 0], sizes = [1, 32], strides = [1, 1]} : vector<8x128xf32> to vector<1x32xf32>
    %10 = vector.extract_strided_slice %4 {offsets = [5, 0], sizes = [1, 32], strides = [1, 1]} : vector<8x128xf32> to vector<1x32xf32>
    %11 = vector.extract_strided_slice %4 {offsets = [6, 0], sizes = [1, 64], strides = [1, 1]} : vector<8x128xf32> to vector<1x64xf32>
    %cst = arith.constant dense<0.000000e+00> : vector<16xf32>
    %12 = vector.multi_reduction <add>, %2, %cst [1] : vector<16x32xf32> to vector<16xf32>
    %13 = vector.shape_cast %12 : vector<16xf32> to vector<16x1xf32>
    %cst_7 = arith.constant 3.200000e+01 : f32
    %14 = vector.broadcast %cst_7 : f32 to vector<16x1xf32>
    %15 = arith.divf %13, %14 : vector<16x1xf32>
    %16 = vector.broadcast %15 : vector<16x1xf32> to vector<16x32xf32>
    %17 = arith.subf %2, %16 : vector<16x32xf32>
    %18 = arith.mulf %17, %17 : vector<16x32xf32>
    %cst_8 = arith.constant dense<0.000000e+00> : vector<16xf32>
    %19 = vector.multi_reduction <add>, %18, %cst_8 [1] : vector<16x32xf32> to vector<16xf32>
    %20 = vector.shape_cast %19 : vector<16xf32> to vector<16x1xf32>
    %cst_9 = arith.constant 3.200000e+01 : f32
    %21 = vector.broadcast %cst_9 : f32 to vector<16x1xf32>
    %22 = arith.divf %20, %21 : vector<16x1xf32>
    %23 = vector.broadcast %15 : vector<16x1xf32> to vector<16x32xf32>
    %24 = arith.subf %2, %23 : vector<16x32xf32>
    %cst_10 = arith.constant 9.99999974E-6 : f32
    %25 = vector.broadcast %cst_10 : f32 to vector<16x1xf32>
    %26 = arith.addf %22, %25 : vector<16x1xf32>
    %27 = math.rsqrt %26 : vector<16x1xf32>
    %28 = vector.broadcast %27 : vector<16x1xf32> to vector<16x32xf32>
    %29 = arith.mulf %24, %28 : vector<16x32xf32>
    %30 = vector.broadcast %5 : vector<1x32xf32> to vector<16x32xf32>
    %31 = arith.mulf %29, %30 : vector<16x32xf32>
    %32 = vector.broadcast %6 : vector<1x32xf32> to vector<16x32xf32>
    %33 = arith.addf %31, %32 : vector<16x32xf32>
    %c0_11 = arith.constant 0 : index
    %c0_12 = arith.constant 0 : index
    %c0_13 = arith.constant 0 : index
    %c0_14 = arith.constant 0 : index
    %34 = vector.load %arg2[%c0_11, %c0_12, %c0_13, %c0_14] : memref<1x2x32x96xf32, #tpu.memory_space<vmem>>, vector<1x1x32x96xf32>
    %35 = vector.shape_cast %34 : vector<1x1x32x96xf32> to vector<32x96xf32>
    %cst_15 = arith.constant dense<0.000000e+00> : vector<16x96xf32>
    %36 = tpu.matmul %33, %35, %cst_15 {dimension_numbers = #tpu.dot_dimension_numbers<[1], [0], [0], [1], [0, 0, 1, 1], [], []>} : vector<16x32xf32>, vector<32x96xf32>, vector<16x96xf32> -> vector<16x96xf32>
    %c0_16 = arith.constant 0 : index
    %c0_17 = arith.constant 0 : index
    %c0_18 = arith.constant 0 : index
    %c0_19 = arith.constant 0 : index
    %37 = vector.load %arg3[%c0_16, %c0_17, %c0_18, %c0_19] : memref<1x2x32x32xf32, #tpu.memory_space<vmem>>, vector<1x1x32x32xf32>
    %38 = vector.shape_cast %37 : vector<1x1x32x32xf32> to vector<32x32xf32>
    %cst_20 = arith.constant 0.000000e+00 : f32
    %39 = vector.broadcast %cst_20 : f32 to vector<16x32xf32>
    %40 = vector.extract_strided_slice %36 {offsets = [0, 0], sizes = [16, 8], strides = [1, 1]} : vector<16x96xf32> to vector<16x8xf32>
    %41 = vector.shape_cast %40 : vector<16x8xf32> to vector<2x8x8xf32>
    %42 = vector.extract_strided_slice %36 {offsets = [0, 32], sizes = [16, 8], strides = [1, 1]} : vector<16x96xf32> to vector<16x8xf32>
    %43 = vector.shape_cast %42 : vector<16x8xf32> to vector<2x8x8xf32>
    %44 = vector.extract_strided_slice %36 {offsets = [0, 64], sizes = [16, 8], strides = [1, 1]} : vector<16x96xf32> to vector<16x8xf32>
    %45 = vector.shape_cast %44 : vector<16x8xf32> to vector<2x8x8xf32>
    "tpu.trace_start"() <{level = 10 : i32, message = "bid,bjd->bij"}> : () -> ()
    %cst_21 = arith.constant dense<0.000000e+00> : vector<2x8x8xf32>
    %46 = tpu.matmul %41, %43, %cst_21 {dimension_numbers = #tpu.dot_dimension_numbers<[2], [2], [1], [1], [0, 0, 0, 1, 1, 1], [0], [0]>} : vector<2x8x8xf32>, vector<2x8x8xf32>, vector<2x8x8xf32> -> vector<2x8x8xf32>
    "tpu.trace_stop"() : () -> ()
    %cst_22 = arith.constant dense<0xFF800000> : vector<2x8xf32>
    %47 = vector.multi_reduction <maximumf>, %46, %cst_22 [2] : vector<2x8x8xf32> to vector<2x8xf32>
    %48 = vector.shape_cast %47 : vector<2x8xf32> to vector<2x8x1xf32>
    %49 = vector.broadcast %48 : vector<2x8x1xf32> to vector<2x8x8xf32>
    %50 = arith.subf %46, %49 : vector<2x8x8xf32>
    %51 = math.exp %50 : vector<2x8x8xf32>
    %cst_23 = arith.constant dense<0.000000e+00> : vector<2x8xf32>
    %52 = vector.multi_reduction <add>, %51, %cst_23 [2] : vector<2x8x8xf32> to vector<2x8xf32>
    %53 = vector.shape_cast %52 : vector<2x8xf32> to vector<2x8x1xf32>
    %54 = tpu.reciprocal %53 {approx = true} : vector<2x8x1xf32> -> vector<2x8x1xf32>
    %55 = vector.broadcast %54 : vector<2x8x1xf32> to vector<2x8x8xf32>
    %56 = arith.mulf %51, %55 : vector<2x8x8xf32>
    "tpu.trace_start"() <{level = 10 : i32, message = "bij,bjd->bid"}> : () -> ()
    %cst_24 = arith.constant dense<0.000000e+00> : vector<2x8x8xf32>
    %57 = tpu.matmul %56, %45, %cst_24 {dimension_numbers = #tpu.dot_dimension_numbers<[2], [1], [1], [2], [0, 0, 0, 1, 1, 2], [0], [0]>} : vector<2x8x8xf32>, vector<2x8x8xf32>, vector<2x8x8xf32> -> vector<2x8x8xf32>
    "tpu.trace_stop"() : () -> ()
    %58 = vector.shape_cast %57 : vector<2x8x8xf32> to vector<16x8xf32>
    %59 = vector.extract_strided_slice %38 {offsets = [0, 0], sizes = [8, 32], strides = [1, 1]} : vector<32x32xf32> to vector<8x32xf32>
    %cst_25 = arith.constant dense<0.000000e+00> : vector<16x32xf32>
    %60 = tpu.matmul %58, %59, %cst_25 {dimension_numbers = #tpu.dot_dimension_numbers<[1], [0], [0], [1], [0, 0, 1, 1], [], []>} : vector<16x8xf32>, vector<8x32xf32>, vector<16x32xf32> -> vector<16x32xf32>
    %61 = arith.addf %39, %60 : vector<16x32xf32>
    %62 = vector.extract_strided_slice %36 {offsets = [0, 8], sizes = [16, 8], strides = [1, 1]} : vector<16x96xf32> to vector<16x8xf32>
    %63 = vector.shape_cast %62 : vector<16x8xf32> to vector<2x8x8xf32>
    %64 = vector.extract_strided_slice %36 {offsets = [0, 40], sizes = [16, 8], strides = [1, 1]} : vector<16x96xf32> to vector<16x8xf32>
    %65 = vector.shape_cast %64 : vector<16x8xf32> to vector<2x8x8xf32>
    %66 = vector.extract_strided_slice %36 {offsets = [0, 72], sizes = [16, 8], strides = [1, 1]} : vector<16x96xf32> to vector<16x8xf32>
    %67 = vector.shape_cast %66 : vector<16x8xf32> to vector<2x8x8xf32>
    "tpu.trace_start"() <{level = 10 : i32, message = "bid,bjd->bij"}> : () -> ()
    %cst_26 = arith.constant dense<0.000000e+00> : vector<2x8x8xf32>
    %68 = tpu.matmul %63, %65, %cst_26 {dimension_numbers = #tpu.dot_dimension_numbers<[2], [2], [1], [1], [0, 0, 0, 1, 1, 1], [0], [0]>} : vector<2x8x8xf32>, vector<2x8x8xf32>, vector<2x8x8xf32> -> vector<2x8x8xf32>
    "tpu.trace_stop"() : () -> ()
    %cst_27 = arith.constant dense<0xFF800000> : vector<2x8xf32>
    %69 = vector.multi_reduction <maximumf>, %68, %cst_27 [2] : vector<2x8x8xf32> to vector<2x8xf32>
    %70 = vector.shape_cast %69 : vector<2x8xf32> to vector<2x8x1xf32>
    %71 = vector.broadcast %70 : vector<2x8x1xf32> to vector<2x8x8xf32>
    %72 = arith.subf %68, %71 : vector<2x8x8xf32>
    %73 = math.exp %72 : vector<2x8x8xf32>
    %cst_28 = arith.constant dense<0.000000e+00> : vector<2x8xf32>
    %74 = vector.multi_reduction <add>, %73, %cst_28 [2] : vector<2x8x8xf32> to vector<2x8xf32>
    %75 = vector.shape_cast %74 : vector<2x8xf32> to vector<2x8x1xf32>
    %76 = tpu.reciprocal %75 {approx = true} : vector<2x8x1xf32> -> vector<2x8x1xf32>
    %77 = vector.broadcast %76 : vector<2x8x1xf32> to vector<2x8x8xf32>
    %78 = arith.mulf %73, %77 : vector<2x8x8xf32>
    "tpu.trace_start"() <{level = 10 : i32, message = "bij,bjd->bid"}> : () -> ()
    %cst_29 = arith.constant dense<0.000000e+00> : vector<2x8x8xf32>
    %79 = tpu.matmul %78, %67, %cst_29 {dimension_numbers = #tpu.dot_dimension_numbers<[2], [1], [1], [2], [0, 0, 0, 1, 1, 2], [0], [0]>} : vector<2x8x8xf32>, vector<2x8x8xf32>, vector<2x8x8xf32> -> vector<2x8x8xf32>
    "tpu.trace_stop"() : () -> ()
    %80 = vector.shape_cast %79 : vector<2x8x8xf32> to vector<16x8xf32>
    %81 = vector.extract_strided_slice %38 {offsets = [8, 0], sizes = [8, 32], strides = [1, 1]} : vector<32x32xf32> to vector<8x32xf32>
    %cst_30 = arith.constant dense<0.000000e+00> : vector<16x32xf32>
    %82 = tpu.matmul %80, %81, %cst_30 {dimension_numbers = #tpu.dot_dimension_numbers<[1], [0], [0], [1], [0, 0, 1, 1], [], []>} : vector<16x8xf32>, vector<8x32xf32>, vector<16x32xf32> -> vector<16x32xf32>
    %83 = arith.addf %61, %82 : vector<16x32xf32>
    %84 = vector.extract_strided_slice %36 {offsets = [0, 16], sizes = [16, 8], strides = [1, 1]} : vector<16x96xf32> to vector<16x8xf32>
    %85 = vector.shape_cast %84 : vector<16x8xf32> to vector<2x8x8xf32>
    %86 = vector.extract_strided_slice %36 {offsets = [0, 48], sizes = [16, 8], strides = [1, 1]} : vector<16x96xf32> to vector<16x8xf32>
    %87 = vector.shape_cast %86 : vector<16x8xf32> to vector<2x8x8xf32>
    %88 = vector.extract_strided_slice %36 {offsets = [0, 80], sizes = [16, 8], strides = [1, 1]} : vector<16x96xf32> to vector<16x8xf32>
    %89 = vector.shape_cast %88 : vector<16x8xf32> to vector<2x8x8xf32>
    "tpu.trace_start"() <{level = 10 : i32, message = "bid,bjd->bij"}> : () -> ()
    %cst_31 = arith.constant dense<0.000000e+00> : vector<2x8x8xf32>
    %90 = tpu.matmul %85, %87, %cst_31 {dimension_numbers = #tpu.dot_dimension_numbers<[2], [2], [1], [1], [0, 0, 0, 1, 1, 1], [0], [0]>} : vector<2x8x8xf32>, vector<2x8x8xf32>, vector<2x8x8xf32> -> vector<2x8x8xf32>
    "tpu.trace_stop"() : () -> ()
    %cst_32 = arith.constant dense<0xFF800000> : vector<2x8xf32>
    %91 = vector.multi_reduction <maximumf>, %90, %cst_32 [2] : vector<2x8x8xf32> to vector<2x8xf32>
    %92 = vector.shape_cast %91 : vector<2x8xf32> to vector<2x8x1xf32>
    %93 = vector.broadcast %92 : vector<2x8x1xf32> to vector<2x8x8xf32>
    %94 = arith.subf %90, %93 : vector<2x8x8xf32>
    %95 = math.exp %94 : vector<2x8x8xf32>
    %cst_33 = arith.constant dense<0.000000e+00> : vector<2x8xf32>
    %96 = vector.multi_reduction <add>, %95, %cst_33 [2] : vector<2x8x8xf32> to vector<2x8xf32>
    %97 = vector.shape_cast %96 : vector<2x8xf32> to vector<2x8x1xf32>
    %98 = tpu.reciprocal %97 {approx = true} : vector<2x8x1xf32> -> vector<2x8x1xf32>
    %99 = vector.broadcast %98 : vector<2x8x1xf32> to vector<2x8x8xf32>
    %100 = arith.mulf %95, %99 : vector<2x8x8xf32>
    "tpu.trace_start"() <{level = 10 : i32, message = "bij,bjd->bid"}> : () -> ()
    %cst_34 = arith.constant dense<0.000000e+00> : vector<2x8x8xf32>
    %101 = tpu.matmul %100, %89, %cst_34 {dimension_numbers = #tpu.dot_dimension_numbers<[2], [1], [1], [2], [0, 0, 0, 1, 1, 2], [0], [0]>} : vector<2x8x8xf32>, vector<2x8x8xf32>, vector<2x8x8xf32> -> vector<2x8x8xf32>
    "tpu.trace_stop"() : () -> ()
    %102 = vector.shape_cast %101 : vector<2x8x8xf32> to vector<16x8xf32>
    %103 = vector.extract_strided_slice %38 {offsets = [16, 0], sizes = [8, 32], strides = [1, 1]} : vector<32x32xf32> to vector<8x32xf32>
    %cst_35 = arith.constant dense<0.000000e+00> : vector<16x32xf32>
    %104 = tpu.matmul %102, %103, %cst_35 {dimension_numbers = #tpu.dot_dimension_numbers<[1], [0], [0], [1], [0, 0, 1, 1], [], []>} : vector<16x8xf32>, vector<8x32xf32>, vector<16x32xf32> -> vector<16x32xf32>
    %105 = arith.addf %83, %104 : vector<16x32xf32>
    %106 = vector.extract_strided_slice %36 {offsets = [0, 24], sizes = [16, 8], strides = [1, 1]} : vector<16x96xf32> to vector<16x8xf32>
    %107 = vector.shape_cast %106 : vector<16x8xf32> to vector<2x8x8xf32>
    %108 = vector.extract_strided_slice %36 {offsets = [0, 56], sizes = [16, 8], strides = [1, 1]} : vector<16x96xf32> to vector<16x8xf32>
    %109 = vector.shape_cast %108 : vector<16x8xf32> to vector<2x8x8xf32>
    %110 = vector.extract_strided_slice %36 {offsets = [0, 88], sizes = [16, 8], strides = [1, 1]} : vector<16x96xf32> to vector<16x8xf32>
    %111 = vector.shape_cast %110 : vector<16x8xf32> to vector<2x8x8xf32>
    "tpu.trace_start"() <{level = 10 : i32, message = "bid,bjd->bij"}> : () -> ()
    %cst_36 = arith.constant dense<0.000000e+00> : vector<2x8x8xf32>
    %112 = tpu.matmul %107, %109, %cst_36 {dimension_numbers = #tpu.dot_dimension_numbers<[2], [2], [1], [1], [0, 0, 0, 1, 1, 1], [0], [0]>} : vector<2x8x8xf32>, vector<2x8x8xf32>, vector<2x8x8xf32> -> vector<2x8x8xf32>
    "tpu.trace_stop"() : () -> ()
    %cst_37 = arith.constant dense<0xFF800000> : vector<2x8xf32>
    %113 = vector.multi_reduction <maximumf>, %112, %cst_37 [2] : vector<2x8x8xf32> to vector<2x8xf32>
    %114 = vector.shape_cast %113 : vector<2x8xf32> to vector<2x8x1xf32>
    %115 = vector.broadcast %114 : vector<2x8x1xf32> to vector<2x8x8xf32>
    %116 = arith.subf %112, %115 : vector<2x8x8xf32>
    %117 = math.exp %116 : vector<2x8x8xf32>
    %cst_38 = arith.constant dense<0.000000e+00> : vector<2x8xf32>
    %118 = vector.multi_reduction <add>, %117, %cst_38 [2] : vector<2x8x8xf32> to vector<2x8xf32>
    %119 = vector.shape_cast %118 : vector<2x8xf32> to vector<2x8x1xf32>
    %120 = tpu.reciprocal %119 {approx = true} : vector<2x8x1xf32> -> vector<2x8x1xf32>
    %121 = vector.broadcast %120 : vector<2x8x1xf32> to vector<2x8x8xf32>
    %122 = arith.mulf %117, %121 : vector<2x8x8xf32>
    "tpu.trace_start"() <{level = 10 : i32, message = "bij,bjd->bid"}> : () -> ()
    %cst_39 = arith.constant dense<0.000000e+00> : vector<2x8x8xf32>
    %123 = tpu.matmul %122, %111, %cst_39 {dimension_numbers = #tpu.dot_dimension_numbers<[2], [1], [1], [2], [0, 0, 0, 1, 1, 2], [0], [0]>} : vector<2x8x8xf32>, vector<2x8x8xf32>, vector<2x8x8xf32> -> vector<2x8x8xf32>
    "tpu.trace_stop"() : () -> ()
    %124 = vector.shape_cast %123 : vector<2x8x8xf32> to vector<16x8xf32>
    %125 = vector.extract_strided_slice %38 {offsets = [24, 0], sizes = [8, 32], strides = [1, 1]} : vector<32x32xf32> to vector<8x32xf32>
    %cst_40 = arith.constant dense<0.000000e+00> : vector<16x32xf32>
    %126 = tpu.matmul %124, %125, %cst_40 {dimension_numbers = #tpu.dot_dimension_numbers<[1], [0], [0], [1], [0, 0, 1, 1], [], []>} : vector<16x8xf32>, vector<8x32xf32>, vector<16x32xf32> -> vector<16x32xf32>
    %127 = arith.addf %105, %126 : vector<16x32xf32>
    %128 = arith.addf %2, %127 : vector<16x32xf32>
    %129 = vector.broadcast %7 : vector<1x32xf32> to vector<16x32xf32>
    %130 = arith.addf %128, %129 : vector<16x32xf32>
    %cst_41 = arith.constant dense<0.000000e+00> : vector<16xf32>
    %131 = vector.multi_reduction <add>, %130, %cst_41 [1] : vector<16x32xf32> to vector<16xf32>
    %132 = vector.shape_cast %131 : vector<16xf32> to vector<16x1xf32>
    %cst_42 = arith.constant 3.200000e+01 : f32
    %133 = vector.broadcast %cst_42 : f32 to vector<16x1xf32>
    %134 = arith.divf %132, %133 : vector<16x1xf32>
    %135 = vector.broadcast %134 : vector<16x1xf32> to vector<16x32xf32>
    %136 = arith.subf %130, %135 : vector<16x32xf32>
    %137 = arith.mulf %136, %136 : vector<16x32xf32>
    %cst_43 = arith.constant dense<0.000000e+00> : vector<16xf32>
    %138 = vector.multi_reduction <add>, %137, %cst_43 [1] : vector<16x32xf32> to vector<16xf32>
    %139 = vector.shape_cast %138 : vector<16xf32> to vector<16x1xf32>
    %cst_44 = arith.constant 3.200000e+01 : f32
    %140 = vector.broadcast %cst_44 : f32 to vector<16x1xf32>
    %141 = arith.divf %139, %140 : vector<16x1xf32>
    %142 = vector.broadcast %134 : vector<16x1xf32> to vector<16x32xf32>
    %143 = arith.subf %130, %142 : vector<16x32xf32>
    %cst_45 = arith.constant 9.99999974E-6 : f32
    %144 = vector.broadcast %cst_45 : f32 to vector<16x1xf32>
    %145 = arith.addf %141, %144 : vector<16x1xf32>
    %146 = math.rsqrt %145 : vector<16x1xf32>
    %147 = vector.broadcast %146 : vector<16x1xf32> to vector<16x32xf32>
    %148 = arith.mulf %143, %147 : vector<16x32xf32>
    %149 = vector.broadcast %8 : vector<1x32xf32> to vector<16x32xf32>
    %150 = arith.mulf %148, %149 : vector<16x32xf32>
    %151 = vector.broadcast %9 : vector<1x32xf32> to vector<16x32xf32>
    %152 = arith.addf %150, %151 : vector<16x32xf32>
    %c0_46 = arith.constant 0 : index
    %c0_47 = arith.constant 0 : index
    %c0_48 = arith.constant 0 : index
    %c0_49 = arith.constant 0 : index
    %153 = vector.load %arg4[%c0_46, %c0_47, %c0_48, %c0_49] : memref<1x2x32x64xf32, #tpu.memory_space<vmem>>, vector<1x1x32x64xf32>
    %154 = vector.shape_cast %153 : vector<1x1x32x64xf32> to vector<32x64xf32>
    %cst_50 = arith.constant dense<0.000000e+00> : vector<16x64xf32>
    %155 = tpu.matmul %152, %154, %cst_50 {dimension_numbers = #tpu.dot_dimension_numbers<[1], [0], [0], [1], [0, 0, 1, 1], [], []>} : vector<16x32xf32>, vector<32x64xf32>, vector<16x64xf32> -> vector<16x64xf32>
    %156 = vector.broadcast %11 : vector<1x64xf32> to vector<16x64xf32>
    %157 = arith.addf %155, %156 : vector<16x64xf32>
    %cst_51 = arith.constant 5.000000e-01 : f32
    %158 = vector.broadcast %cst_51 : f32 to vector<16x64xf32>
    %159 = arith.mulf %158, %157 : vector<16x64xf32>
    %cst_52 = arith.constant 0.707106769 : f32
    %160 = vector.broadcast %cst_52 : f32 to vector<16x64xf32>
    %161 = arith.mulf %157, %160 : vector<16x64xf32>
    %162 = math.absf %161 : vector<16x64xf32>
    %cst_53 = arith.constant 0.327591091 : f32
    %163 = vector.broadcast %cst_53 : f32 to vector<16x64xf32>
    %164 = arith.mulf %163, %162 : vector<16x64xf32>
    %cst_54 = arith.constant 1.000000e+00 : f32
    %165 = vector.broadcast %cst_54 : f32 to vector<16x64xf32>
    %166 = arith.addf %165, %164 : vector<16x64xf32>
    %cst_55 = arith.constant 1.000000e+00 : f32
    %167 = vector.broadcast %cst_55 : f32 to vector<16x64xf32>
    %168 = arith.divf %167, %166 : vector<16x64xf32>
    %cst_56 = arith.constant 1.06140542 : f32
    %169 = vector.broadcast %cst_56 : f32 to vector<16x64xf32>
    %170 = arith.mulf %168, %169 : vector<16x64xf32>
    %cst_57 = arith.constant -1.45315206 : f32
    %171 = vector.broadcast %cst_57 : f32 to vector<16x64xf32>
    %172 = arith.addf %171, %170 : vector<16x64xf32>
    %173 = arith.mulf %168, %172 : vector<16x64xf32>
    %cst_58 = arith.constant 1.42141378 : f32
    %174 = vector.broadcast %cst_58 : f32 to vector<16x64xf32>
    %175 = arith.addf %174, %173 : vector<16x64xf32>
    %176 = arith.mulf %168, %175 : vector<16x64xf32>
    %cst_59 = arith.constant -0.284496725 : f32
    %177 = vector.broadcast %cst_59 : f32 to vector<16x64xf32>
    %178 = arith.addf %177, %176 : vector<16x64xf32>
    %179 = arith.mulf %168, %178 : vector<16x64xf32>
    %cst_60 = arith.constant 0.254829586 : f32
    %180 = vector.broadcast %cst_60 : f32 to vector<16x64xf32>
    %181 = arith.addf %180, %179 : vector<16x64xf32>
    %182 = arith.mulf %168, %181 : vector<16x64xf32>
    %cst_61 = arith.constant 0.000000e+00 : f32
    %183 = vector.broadcast %cst_61 : f32 to vector<16x64xf32>
    %184 = arith.subf %183, %162 : vector<16x64xf32>
    %185 = arith.mulf %184, %162 : vector<16x64xf32>
    %186 = math.exp %185 : vector<16x64xf32>
    %187 = arith.mulf %182, %186 : vector<16x64xf32>
    %cst_62 = arith.constant 1.000000e+00 : f32
    %188 = vector.broadcast %cst_62 : f32 to vector<16x64xf32>
    %189 = arith.subf %188, %187 : vector<16x64xf32>
    %cst_63 = arith.constant 0.000000e+00 : f32
    %190 = vector.broadcast %cst_63 : f32 to vector<16x64xf32>
    %191 = arith.cmpf oge, %161, %190 : vector<16x64xf32>
    %cst_64 = arith.constant 0.000000e+00 : f32
    %192 = vector.broadcast %cst_64 : f32 to vector<16x64xf32>
    %193 = arith.subf %192, %189 : vector<16x64xf32>
    %194 = arith.select %191, %189, %193 : vector<16x64xi1>, vector<16x64xf32>
    %cst_65 = arith.constant 1.000000e+00 : f32
    %195 = vector.broadcast %cst_65 : f32 to vector<16x64xf32>
    %196 = arith.addf %195, %194 : vector<16x64xf32>
    %197 = arith.mulf %159, %196 : vector<16x64xf32>
    %c0_66 = arith.constant 0 : index
    %c0_67 = arith.constant 0 : index
    %c0_68 = arith.constant 0 : index
    %c0_69 = arith.constant 0 : index
    %198 = vector.load %arg5[%c0_66, %c0_67, %c0_68, %c0_69] : memref<1x2x64x32xf32, #tpu.memory_space<vmem>>, vector<1x1x64x32xf32>
    %199 = vector.shape_cast %198 : vector<1x1x64x32xf32> to vector<64x32xf32>
    %cst_70 = arith.constant dense<0.000000e+00> : vector<16x32xf32>
    %200 = tpu.matmul %197, %199, %cst_70 {dimension_numbers = #tpu.dot_dimension_numbers<[1], [0], [0], [1], [0, 0, 1, 1], [], []>} : vector<16x64xf32>, vector<64x32xf32>, vector<16x32xf32> -> vector<16x32xf32>
    %201 = vector.broadcast %10 : vector<1x32xf32> to vector<16x32xf32>
    %202 = arith.addf %200, %201 : vector<16x32xf32>
    %203 = arith.addf %130, %202 : vector<16x32xf32>
    %c0_71 = arith.constant 0 : index
    %c1 = arith.constant 1 : index
    %c0_72 = arith.constant 0 : index
    %c0_73 = arith.constant 0 : index
    %204 = vector.load %arg6[%c0_71, %c1, %c0_72, %c0_73] : memref<1x2x8x128xf32, #tpu.memory_space<vmem>>, vector<1x1x8x128xf32>
    %205 = vector.shape_cast %204 : vector<1x1x8x128xf32> to vector<8x128xf32>
    %206 = vector.extract_strided_slice %205 {offsets = [0, 0], sizes = [1, 32], strides = [1, 1]} : vector<8x128xf32> to vector<1x32xf32>
    %207 = vector.extract_strided_slice %205 {offsets = [1, 0], sizes = [1, 32], strides = [1, 1]} : vector<8x128xf32> to vector<1x32xf32>
    %208 = vector.extract_strided_slice %205 {offsets = [2, 0], sizes = [1, 32], strides = [1, 1]} : vector<8x128xf32> to vector<1x32xf32>
    %209 = vector.extract_strided_slice %205 {offsets = [3, 0], sizes = [1, 32], strides = [1, 1]} : vector<8x128xf32> to vector<1x32xf32>
    %210 = vector.extract_strided_slice %205 {offsets = [4, 0], sizes = [1, 32], strides = [1, 1]} : vector<8x128xf32> to vector<1x32xf32>
    %211 = vector.extract_strided_slice %205 {offsets = [5, 0], sizes = [1, 32], strides = [1, 1]} : vector<8x128xf32> to vector<1x32xf32>
    %212 = vector.extract_strided_slice %205 {offsets = [6, 0], sizes = [1, 64], strides = [1, 1]} : vector<8x128xf32> to vector<1x64xf32>
    %cst_74 = arith.constant dense<0.000000e+00> : vector<16xf32>
    %213 = vector.multi_reduction <add>, %203, %cst_74 [1] : vector<16x32xf32> to vector<16xf32>
    %214 = vector.shape_cast %213 : vector<16xf32> to vector<16x1xf32>
    %cst_75 = arith.constant 3.200000e+01 : f32
    %215 = vector.broadcast %cst_75 : f32 to vector<16x1xf32>
    %216 = arith.divf %214, %215 : vector<16x1xf32>
    %217 = vector.broadcast %216 : vector<16x1xf32> to vector<16x32xf32>
    %218 = arith.subf %203, %217 : vector<16x32xf32>
    %219 = arith.mulf %218, %218 : vector<16x32xf32>
    %cst_76 = arith.constant dense<0.000000e+00> : vector<16xf32>
    %220 = vector.multi_reduction <add>, %219, %cst_76 [1] : vector<16x32xf32> to vector<16xf32>
    %221 = vector.shape_cast %220 : vector<16xf32> to vector<16x1xf32>
    %cst_77 = arith.constant 3.200000e+01 : f32
    %222 = vector.broadcast %cst_77 : f32 to vector<16x1xf32>
    %223 = arith.divf %221, %222 : vector<16x1xf32>
    %224 = vector.broadcast %216 : vector<16x1xf32> to vector<16x32xf32>
    %225 = arith.subf %203, %224 : vector<16x32xf32>
    %cst_78 = arith.constant 9.99999974E-6 : f32
    %226 = vector.broadcast %cst_78 : f32 to vector<16x1xf32>
    %227 = arith.addf %223, %226 : vector<16x1xf32>
    %228 = math.rsqrt %227 : vector<16x1xf32>
    %229 = vector.broadcast %228 : vector<16x1xf32> to vector<16x32xf32>
    %230 = arith.mulf %225, %229 : vector<16x32xf32>
    %231 = vector.broadcast %206 : vector<1x32xf32> to vector<16x32xf32>
    %232 = arith.mulf %230, %231 : vector<16x32xf32>
    %233 = vector.broadcast %207 : vector<1x32xf32> to vector<16x32xf32>
    %234 = arith.addf %232, %233 : vector<16x32xf32>
    %c0_79 = arith.constant 0 : index
    %c1_80 = arith.constant 1 : index
    %c0_81 = arith.constant 0 : index
    %c0_82 = arith.constant 0 : index
    %235 = vector.load %arg2[%c0_79, %c1_80, %c0_81, %c0_82] : memref<1x2x32x96xf32, #tpu.memory_space<vmem>>, vector<1x1x32x96xf32>
    %236 = vector.shape_cast %235 : vector<1x1x32x96xf32> to vector<32x96xf32>
    %cst_83 = arith.constant dense<0.000000e+00> : vector<16x96xf32>
    %237 = tpu.matmul %234, %236, %cst_83 {dimension_numbers = #tpu.dot_dimension_numbers<[1], [0], [0], [1], [0, 0, 1, 1], [], []>} : vector<16x32xf32>, vector<32x96xf32>, vector<16x96xf32> -> vector<16x96xf32>
    %c0_84 = arith.constant 0 : index
    %c1_85 = arith.constant 1 : index
    %c0_86 = arith.constant 0 : index
    %c0_87 = arith.constant 0 : index
    %238 = vector.load %arg3[%c0_84, %c1_85, %c0_86, %c0_87] : memref<1x2x32x32xf32, #tpu.memory_space<vmem>>, vector<1x1x32x32xf32>
    %239 = vector.shape_cast %238 : vector<1x1x32x32xf32> to vector<32x32xf32>
    %cst_88 = arith.constant 0.000000e+00 : f32
    %240 = vector.broadcast %cst_88 : f32 to vector<16x32xf32>
    %241 = vector.extract_strided_slice %237 {offsets = [0, 0], sizes = [16, 8], strides = [1, 1]} : vector<16x96xf32> to vector<16x8xf32>
    %242 = vector.shape_cast %241 : vector<16x8xf32> to vector<2x8x8xf32>
    %243 = vector.extract_strided_slice %237 {offsets = [0, 32], sizes = [16, 8], strides = [1, 1]} : vector<16x96xf32> to vector<16x8xf32>
    %244 = vector.shape_cast %243 : vector<16x8xf32> to vector<2x8x8xf32>
    %245 = vector.extract_strided_slice %237 {offsets = [0, 64], sizes = [16, 8], strides = [1, 1]} : vector<16x96xf32> to vector<16x8xf32>
    %246 = vector.shape_cast %245 : vector<16x8xf32> to vector<2x8x8xf32>
    "tpu.trace_start"() <{level = 10 : i32, message = "bid,bjd->bij"}> : () -> ()
    %cst_89 = arith.constant dense<0.000000e+00> : vector<2x8x8xf32>
    %247 = tpu.matmul %242, %244, %cst_89 {dimension_numbers = #tpu.dot_dimension_numbers<[2], [2], [1], [1], [0, 0, 0, 1, 1, 1], [0], [0]>} : vector<2x8x8xf32>, vector<2x8x8xf32>, vector<2x8x8xf32> -> vector<2x8x8xf32>
    "tpu.trace_stop"() : () -> ()
    %cst_90 = arith.constant dense<0xFF800000> : vector<2x8xf32>
    %248 = vector.multi_reduction <maximumf>, %247, %cst_90 [2] : vector<2x8x8xf32> to vector<2x8xf32>
    %249 = vector.shape_cast %248 : vector<2x8xf32> to vector<2x8x1xf32>
    %250 = vector.broadcast %249 : vector<2x8x1xf32> to vector<2x8x8xf32>
    %251 = arith.subf %247, %250 : vector<2x8x8xf32>
    %252 = math.exp %251 : vector<2x8x8xf32>
    %cst_91 = arith.constant dense<0.000000e+00> : vector<2x8xf32>
    %253 = vector.multi_reduction <add>, %252, %cst_91 [2] : vector<2x8x8xf32> to vector<2x8xf32>
    %254 = vector.shape_cast %253 : vector<2x8xf32> to vector<2x8x1xf32>
    %255 = tpu.reciprocal %254 {approx = true} : vector<2x8x1xf32> -> vector<2x8x1xf32>
    %256 = vector.broadcast %255 : vector<2x8x1xf32> to vector<2x8x8xf32>
    %257 = arith.mulf %252, %256 : vector<2x8x8xf32>
    "tpu.trace_start"() <{level = 10 : i32, message = "bij,bjd->bid"}> : () -> ()
    %cst_92 = arith.constant dense<0.000000e+00> : vector<2x8x8xf32>
    %258 = tpu.matmul %257, %246, %cst_92 {dimension_numbers = #tpu.dot_dimension_numbers<[2], [1], [1], [2], [0, 0, 0, 1, 1, 2], [0], [0]>} : vector<2x8x8xf32>, vector<2x8x8xf32>, vector<2x8x8xf32> -> vector<2x8x8xf32>
    "tpu.trace_stop"() : () -> ()
    %259 = vector.shape_cast %258 : vector<2x8x8xf32> to vector<16x8xf32>
    %260 = vector.extract_strided_slice %239 {offsets = [0, 0], sizes = [8, 32], strides = [1, 1]} : vector<32x32xf32> to vector<8x32xf32>
    %cst_93 = arith.constant dense<0.000000e+00> : vector<16x32xf32>
    %261 = tpu.matmul %259, %260, %cst_93 {dimension_numbers = #tpu.dot_dimension_numbers<[1], [0], [0], [1], [0, 0, 1, 1], [], []>} : vector<16x8xf32>, vector<8x32xf32>, vector<16x32xf32> -> vector<16x32xf32>
    %262 = arith.addf %240, %261 : vector<16x32xf32>
    %263 = vector.extract_strided_slice %237 {offsets = [0, 8], sizes = [16, 8], strides = [1, 1]} : vector<16x96xf32> to vector<16x8xf32>
    %264 = vector.shape_cast %263 : vector<16x8xf32> to vector<2x8x8xf32>
    %265 = vector.extract_strided_slice %237 {offsets = [0, 40], sizes = [16, 8], strides = [1, 1]} : vector<16x96xf32> to vector<16x8xf32>
    %266 = vector.shape_cast %265 : vector<16x8xf32> to vector<2x8x8xf32>
    %267 = vector.extract_strided_slice %237 {offsets = [0, 72], sizes = [16, 8], strides = [1, 1]} : vector<16x96xf32> to vector<16x8xf32>
    %268 = vector.shape_cast %267 : vector<16x8xf32> to vector<2x8x8xf32>
    "tpu.trace_start"() <{level = 10 : i32, message = "bid,bjd->bij"}> : () -> ()
    %cst_94 = arith.constant dense<0.000000e+00> : vector<2x8x8xf32>
    %269 = tpu.matmul %264, %266, %cst_94 {dimension_numbers = #tpu.dot_dimension_numbers<[2], [2], [1], [1], [0, 0, 0, 1, 1, 1], [0], [0]>} : vector<2x8x8xf32>, vector<2x8x8xf32>, vector<2x8x8xf32> -> vector<2x8x8xf32>
    "tpu.trace_stop"() : () -> ()
    %cst_95 = arith.constant dense<0xFF800000> : vector<2x8xf32>
    %270 = vector.multi_reduction <maximumf>, %269, %cst_95 [2] : vector<2x8x8xf32> to vector<2x8xf32>
    %271 = vector.shape_cast %270 : vector<2x8xf32> to vector<2x8x1xf32>
    %272 = vector.broadcast %271 : vector<2x8x1xf32> to vector<2x8x8xf32>
    %273 = arith.subf %269, %272 : vector<2x8x8xf32>
    %274 = math.exp %273 : vector<2x8x8xf32>
    %cst_96 = arith.constant dense<0.000000e+00> : vector<2x8xf32>
    %275 = vector.multi_reduction <add>, %274, %cst_96 [2] : vector<2x8x8xf32> to vector<2x8xf32>
    %276 = vector.shape_cast %275 : vector<2x8xf32> to vector<2x8x1xf32>
    %277 = tpu.reciprocal %276 {approx = true} : vector<2x8x1xf32> -> vector<2x8x1xf32>
    %278 = vector.broadcast %277 : vector<2x8x1xf32> to vector<2x8x8xf32>
    %279 = arith.mulf %274, %278 : vector<2x8x8xf32>
    "tpu.trace_start"() <{level = 10 : i32, message = "bij,bjd->bid"}> : () -> ()
    %cst_97 = arith.constant dense<0.000000e+00> : vector<2x8x8xf32>
    %280 = tpu.matmul %279, %268, %cst_97 {dimension_numbers = #tpu.dot_dimension_numbers<[2], [1], [1], [2], [0, 0, 0, 1, 1, 2], [0], [0]>} : vector<2x8x8xf32>, vector<2x8x8xf32>, vector<2x8x8xf32> -> vector<2x8x8xf32>
    "tpu.trace_stop"() : () -> ()
    %281 = vector.shape_cast %280 : vector<2x8x8xf32> to vector<16x8xf32>
    %282 = vector.extract_strided_slice %239 {offsets = [8, 0], sizes = [8, 32], strides = [1, 1]} : vector<32x32xf32> to vector<8x32xf32>
    %cst_98 = arith.constant dense<0.000000e+00> : vector<16x32xf32>
    %283 = tpu.matmul %281, %282, %cst_98 {dimension_numbers = #tpu.dot_dimension_numbers<[1], [0], [0], [1], [0, 0, 1, 1], [], []>} : vector<16x8xf32>, vector<8x32xf32>, vector<16x32xf32> -> vector<16x32xf32>
    %284 = arith.addf %262, %283 : vector<16x32xf32>
    %285 = vector.extract_strided_slice %237 {offsets = [0, 16], sizes = [16, 8], strides = [1, 1]} : vector<16x96xf32> to vector<16x8xf32>
    %286 = vector.shape_cast %285 : vector<16x8xf32> to vector<2x8x8xf32>
    %287 = vector.extract_strided_slice %237 {offsets = [0, 48], sizes = [16, 8], strides = [1, 1]} : vector<16x96xf32> to vector<16x8xf32>
    %288 = vector.shape_cast %287 : vector<16x8xf32> to vector<2x8x8xf32>
    %289 = vector.extract_strided_slice %237 {offsets = [0, 80], sizes = [16, 8], strides = [1, 1]} : vector<16x96xf32> to vector<16x8xf32>
    %290 = vector.shape_cast %289 : vector<16x8xf32> to vector<2x8x8xf32>
    "tpu.trace_start"() <{level = 10 : i32, message = "bid,bjd->bij"}> : () -> ()
    %cst_99 = arith.constant dense<0.000000e+00> : vector<2x8x8xf32>
    %291 = tpu.matmul %286, %288, %cst_99 {dimension_numbers = #tpu.dot_dimension_numbers<[2], [2], [1], [1], [0, 0, 0, 1, 1, 1], [0], [0]>} : vector<2x8x8xf32>, vector<2x8x8xf32>, vector<2x8x8xf32> -> vector<2x8x8xf32>
    "tpu.trace_stop"() : () -> ()
    %cst_100 = arith.constant dense<0xFF800000> : vector<2x8xf32>
    %292 = vector.multi_reduction <maximumf>, %291, %cst_100 [2] : vector<2x8x8xf32> to vector<2x8xf32>
    %293 = vector.shape_cast %292 : vector<2x8xf32> to vector<2x8x1xf32>
    %294 = vector.broadcast %293 : vector<2x8x1xf32> to vector<2x8x8xf32>
    %295 = arith.subf %291, %294 : vector<2x8x8xf32>
    %296 = math.exp %295 : vector<2x8x8xf32>
    %cst_101 = arith.constant dense<0.000000e+00> : vector<2x8xf32>
    %297 = vector.multi_reduction <add>, %296, %cst_101 [2] : vector<2x8x8xf32> to vector<2x8xf32>
    %298 = vector.shape_cast %297 : vector<2x8xf32> to vector<2x8x1xf32>
    %299 = tpu.reciprocal %298 {approx = true} : vector<2x8x1xf32> -> vector<2x8x1xf32>
    %300 = vector.broadcast %299 : vector<2x8x1xf32> to vector<2x8x8xf32>
    %301 = arith.mulf %296, %300 : vector<2x8x8xf32>
    "tpu.trace_start"() <{level = 10 : i32, message = "bij,bjd->bid"}> : () -> ()
    %cst_102 = arith.constant dense<0.000000e+00> : vector<2x8x8xf32>
    %302 = tpu.matmul %301, %290, %cst_102 {dimension_numbers = #tpu.dot_dimension_numbers<[2], [1], [1], [2], [0, 0, 0, 1, 1, 2], [0], [0]>} : vector<2x8x8xf32>, vector<2x8x8xf32>, vector<2x8x8xf32> -> vector<2x8x8xf32>
    "tpu.trace_stop"() : () -> ()
    %303 = vector.shape_cast %302 : vector<2x8x8xf32> to vector<16x8xf32>
    %304 = vector.extract_strided_slice %239 {offsets = [16, 0], sizes = [8, 32], strides = [1, 1]} : vector<32x32xf32> to vector<8x32xf32>
    %cst_103 = arith.constant dense<0.000000e+00> : vector<16x32xf32>
    %305 = tpu.matmul %303, %304, %cst_103 {dimension_numbers = #tpu.dot_dimension_numbers<[1], [0], [0], [1], [0, 0, 1, 1], [], []>} : vector<16x8xf32>, vector<8x32xf32>, vector<16x32xf32> -> vector<16x32xf32>
    %306 = arith.addf %284, %305 : vector<16x32xf32>
    %307 = vector.extract_strided_slice %237 {offsets = [0, 24], sizes = [16, 8], strides = [1, 1]} : vector<16x96xf32> to vector<16x8xf32>
    %308 = vector.shape_cast %307 : vector<16x8xf32> to vector<2x8x8xf32>
    %309 = vector.extract_strided_slice %237 {offsets = [0, 56], sizes = [16, 8], strides = [1, 1]} : vector<16x96xf32> to vector<16x8xf32>
    %310 = vector.shape_cast %309 : vector<16x8xf32> to vector<2x8x8xf32>
    %311 = vector.extract_strided_slice %237 {offsets = [0, 88], sizes = [16, 8], strides = [1, 1]} : vector<16x96xf32> to vector<16x8xf32>
    %312 = vector.shape_cast %311 : vector<16x8xf32> to vector<2x8x8xf32>
    "tpu.trace_start"() <{level = 10 : i32, message = "bid,bjd->bij"}> : () -> ()
    %cst_104 = arith.constant dense<0.000000e+00> : vector<2x8x8xf32>
    %313 = tpu.matmul %308, %310, %cst_104 {dimension_numbers = #tpu.dot_dimension_numbers<[2], [2], [1], [1], [0, 0, 0, 1, 1, 1], [0], [0]>} : vector<2x8x8xf32>, vector<2x8x8xf32>, vector<2x8x8xf32> -> vector<2x8x8xf32>
    "tpu.trace_stop"() : () -> ()
    %cst_105 = arith.constant dense<0xFF800000> : vector<2x8xf32>
    %314 = vector.multi_reduction <maximumf>, %313, %cst_105 [2] : vector<2x8x8xf32> to vector<2x8xf32>
    %315 = vector.shape_cast %314 : vector<2x8xf32> to vector<2x8x1xf32>
    %316 = vector.broadcast %315 : vector<2x8x1xf32> to vector<2x8x8xf32>
    %317 = arith.subf %313, %316 : vector<2x8x8xf32>
    %318 = math.exp %317 : vector<2x8x8xf32>
    %cst_106 = arith.constant dense<0.000000e+00> : vector<2x8xf32>
    %319 = vector.multi_reduction <add>, %318, %cst_106 [2] : vector<2x8x8xf32> to vector<2x8xf32>
    %320 = vector.shape_cast %319 : vector<2x8xf32> to vector<2x8x1xf32>
    %321 = tpu.reciprocal %320 {approx = true} : vector<2x8x1xf32> -> vector<2x8x1xf32>
    %322 = vector.broadcast %321 : vector<2x8x1xf32> to vector<2x8x8xf32>
    %323 = arith.mulf %318, %322 : vector<2x8x8xf32>
    "tpu.trace_start"() <{level = 10 : i32, message = "bij,bjd->bid"}> : () -> ()
    %cst_107 = arith.constant dense<0.000000e+00> : vector<2x8x8xf32>
    %324 = tpu.matmul %323, %312, %cst_107 {dimension_numbers = #tpu.dot_dimension_numbers<[2], [1], [1], [2], [0, 0, 0, 1, 1, 2], [0], [0]>} : vector<2x8x8xf32>, vector<2x8x8xf32>, vector<2x8x8xf32> -> vector<2x8x8xf32>
    "tpu.trace_stop"() : () -> ()
    %325 = vector.shape_cast %324 : vector<2x8x8xf32> to vector<16x8xf32>
    %326 = vector.extract_strided_slice %239 {offsets = [24, 0], sizes = [8, 32], strides = [1, 1]} : vector<32x32xf32> to vector<8x32xf32>
    %cst_108 = arith.constant dense<0.000000e+00> : vector<16x32xf32>
    %327 = tpu.matmul %325, %326, %cst_108 {dimension_numbers = #tpu.dot_dimension_numbers<[1], [0], [0], [1], [0, 0, 1, 1], [], []>} : vector<16x8xf32>, vector<8x32xf32>, vector<16x32xf32> -> vector<16x32xf32>
    %328 = arith.addf %306, %327 : vector<16x32xf32>
    %329 = arith.addf %203, %328 : vector<16x32xf32>
    %330 = vector.broadcast %208 : vector<1x32xf32> to vector<16x32xf32>
    %331 = arith.addf %329, %330 : vector<16x32xf32>
    %cst_109 = arith.constant dense<0.000000e+00> : vector<16xf32>
    %332 = vector.multi_reduction <add>, %331, %cst_109 [1] : vector<16x32xf32> to vector<16xf32>
    %333 = vector.shape_cast %332 : vector<16xf32> to vector<16x1xf32>
    %cst_110 = arith.constant 3.200000e+01 : f32
    %334 = vector.broadcast %cst_110 : f32 to vector<16x1xf32>
    %335 = arith.divf %333, %334 : vector<16x1xf32>
    %336 = vector.broadcast %335 : vector<16x1xf32> to vector<16x32xf32>
    %337 = arith.subf %331, %336 : vector<16x32xf32>
    %338 = arith.mulf %337, %337 : vector<16x32xf32>
    %cst_111 = arith.constant dense<0.000000e+00> : vector<16xf32>
    %339 = vector.multi_reduction <add>, %338, %cst_111 [1] : vector<16x32xf32> to vector<16xf32>
    %340 = vector.shape_cast %339 : vector<16xf32> to vector<16x1xf32>
    %cst_112 = arith.constant 3.200000e+01 : f32
    %341 = vector.broadcast %cst_112 : f32 to vector<16x1xf32>
    %342 = arith.divf %340, %341 : vector<16x1xf32>
    %343 = vector.broadcast %335 : vector<16x1xf32> to vector<16x32xf32>
    %344 = arith.subf %331, %343 : vector<16x32xf32>
    %cst_113 = arith.constant 9.99999974E-6 : f32
    %345 = vector.broadcast %cst_113 : f32 to vector<16x1xf32>
    %346 = arith.addf %342, %345 : vector<16x1xf32>
    %347 = math.rsqrt %346 : vector<16x1xf32>
    %348 = vector.broadcast %347 : vector<16x1xf32> to vector<16x32xf32>
    %349 = arith.mulf %344, %348 : vector<16x32xf32>
    %350 = vector.broadcast %209 : vector<1x32xf32> to vector<16x32xf32>
    %351 = arith.mulf %349, %350 : vector<16x32xf32>
    %352 = vector.broadcast %210 : vector<1x32xf32> to vector<16x32xf32>
    %353 = arith.addf %351, %352 : vector<16x32xf32>
    %c0_114 = arith.constant 0 : index
    %c1_115 = arith.constant 1 : index
    %c0_116 = arith.constant 0 : index
    %c0_117 = arith.constant 0 : index
    %354 = vector.load %arg4[%c0_114, %c1_115, %c0_116, %c0_117] : memref<1x2x32x64xf32, #tpu.memory_space<vmem>>, vector<1x1x32x64xf32>
    %355 = vector.shape_cast %354 : vector<1x1x32x64xf32> to vector<32x64xf32>
    %cst_118 = arith.constant dense<0.000000e+00> : vector<16x64xf32>
    %356 = tpu.matmul %353, %355, %cst_118 {dimension_numbers = #tpu.dot_dimension_numbers<[1], [0], [0], [1], [0, 0, 1, 1], [], []>} : vector<16x32xf32>, vector<32x64xf32>, vector<16x64xf32> -> vector<16x64xf32>
    %357 = vector.broadcast %212 : vector<1x64xf32> to vector<16x64xf32>
    %358 = arith.addf %356, %357 : vector<16x64xf32>
    %cst_119 = arith.constant 5.000000e-01 : f32
    %359 = vector.broadcast %cst_119 : f32 to vector<16x64xf32>
    %360 = arith.mulf %359, %358 : vector<16x64xf32>
    %cst_120 = arith.constant 0.707106769 : f32
    %361 = vector.broadcast %cst_120 : f32 to vector<16x64xf32>
    %362 = arith.mulf %358, %361 : vector<16x64xf32>
    %363 = math.absf %362 : vector<16x64xf32>
    %cst_121 = arith.constant 0.327591091 : f32
    %364 = vector.broadcast %cst_121 : f32 to vector<16x64xf32>
    %365 = arith.mulf %364, %363 : vector<16x64xf32>
    %cst_122 = arith.constant 1.000000e+00 : f32
    %366 = vector.broadcast %cst_122 : f32 to vector<16x64xf32>
    %367 = arith.addf %366, %365 : vector<16x64xf32>
    %cst_123 = arith.constant 1.000000e+00 : f32
    %368 = vector.broadcast %cst_123 : f32 to vector<16x64xf32>
    %369 = arith.divf %368, %367 : vector<16x64xf32>
    %cst_124 = arith.constant 1.06140542 : f32
    %370 = vector.broadcast %cst_124 : f32 to vector<16x64xf32>
    %371 = arith.mulf %369, %370 : vector<16x64xf32>
    %cst_125 = arith.constant -1.45315206 : f32
    %372 = vector.broadcast %cst_125 : f32 to vector<16x64xf32>
    %373 = arith.addf %372, %371 : vector<16x64xf32>
    %374 = arith.mulf %369, %373 : vector<16x64xf32>
    %cst_126 = arith.constant 1.42141378 : f32
    %375 = vector.broadcast %cst_126 : f32 to vector<16x64xf32>
    %376 = arith.addf %375, %374 : vector<16x64xf32>
    %377 = arith.mulf %369, %376 : vector<16x64xf32>
    %cst_127 = arith.constant -0.284496725 : f32
    %378 = vector.broadcast %cst_127 : f32 to vector<16x64xf32>
    %379 = arith.addf %378, %377 : vector<16x64xf32>
    %380 = arith.mulf %369, %379 : vector<16x64xf32>
    %cst_128 = arith.constant 0.254829586 : f32
    %381 = vector.broadcast %cst_128 : f32 to vector<16x64xf32>
    %382 = arith.addf %381, %380 : vector<16x64xf32>
    %383 = arith.mulf %369, %382 : vector<16x64xf32>
    %cst_129 = arith.constant 0.000000e+00 : f32
    %384 = vector.broadcast %cst_129 : f32 to vector<16x64xf32>
    %385 = arith.subf %384, %363 : vector<16x64xf32>
    %386 = arith.mulf %385, %363 : vector<16x64xf32>
    %387 = math.exp %386 : vector<16x64xf32>
    %388 = arith.mulf %383, %387 : vector<16x64xf32>
    %cst_130 = arith.constant 1.000000e+00 : f32
    %389 = vector.broadcast %cst_130 : f32 to vector<16x64xf32>
    %390 = arith.subf %389, %388 : vector<16x64xf32>
    %cst_131 = arith.constant 0.000000e+00 : f32
    %391 = vector.broadcast %cst_131 : f32 to vector<16x64xf32>
    %392 = arith.cmpf oge, %362, %391 : vector<16x64xf32>
    %cst_132 = arith.constant 0.000000e+00 : f32
    %393 = vector.broadcast %cst_132 : f32 to vector<16x64xf32>
    %394 = arith.subf %393, %390 : vector<16x64xf32>
    %395 = arith.select %392, %390, %394 : vector<16x64xi1>, vector<16x64xf32>
    %cst_133 = arith.constant 1.000000e+00 : f32
    %396 = vector.broadcast %cst_133 : f32 to vector<16x64xf32>
    %397 = arith.addf %396, %395 : vector<16x64xf32>
    %398 = arith.mulf %360, %397 : vector<16x64xf32>
    %c0_134 = arith.constant 0 : index
    %c1_135 = arith.constant 1 : index
    %c0_136 = arith.constant 0 : index
    %c0_137 = arith.constant 0 : index
    %399 = vector.load %arg5[%c0_134, %c1_135, %c0_136, %c0_137] : memref<1x2x64x32xf32, #tpu.memory_space<vmem>>, vector<1x1x64x32xf32>
    %400 = vector.shape_cast %399 : vector<1x1x64x32xf32> to vector<64x32xf32>
    %cst_138 = arith.constant dense<0.000000e+00> : vector<16x32xf32>
    %401 = tpu.matmul %398, %400, %cst_138 {dimension_numbers = #tpu.dot_dimension_numbers<[1], [0], [0], [1], [0, 0, 1, 1], [], []>} : vector<16x64xf32>, vector<64x32xf32>, vector<16x32xf32> -> vector<16x32xf32>
    %402 = vector.broadcast %211 : vector<1x32xf32> to vector<16x32xf32>
    %403 = arith.addf %401, %402 : vector<16x32xf32>
    %404 = arith.addf %331, %403 : vector<16x32xf32>
    %405 = vector.shape_cast %404 : vector<16x32xf32> to vector<2x8x32xf32>
    %c0_139 = arith.constant 0 : index
    %c0_140 = arith.constant 0 : index
    %c0_141 = arith.constant 0 : index
    %c0_142 = arith.constant 0 : index
    %406 = vector.load %arg7[%c0_139, %c0_140, %c0_141, %c0_142] : memref<1x2x8x32xf32, #tpu.memory_space<vmem>>, vector<1x2x8x32xf32>
    %407 = vector.shape_cast %406 : vector<1x2x8x32xf32> to vector<2x8x32xf32>
    %408 = vector.shape_cast %405 : vector<2x8x32xf32> to vector<1x2x8x32xf32>
    tpu.vector_store %arg7[%c0_139, %c0_140, %c0_141, %c0_142], %408 {strides = array<i32>} : memref<1x2x8x32xf32, #tpu.memory_space<vmem>>, vector<1x2x8x32xf32>,
    return
  }
  func.func @transform_0(%arg0: i32) -> (i32, i32, i32, i32) {
    %c0_i32 = arith.constant 0 : i32
    %c0_i32_0 = arith.constant 0 : i32
    %c0_i32_1 = arith.constant 0 : i32
    %c0_i32_2 = arith.constant 0 : i32
    return %arg0, %c0_i32, %c0_i32_0, %c0_i32_1 : i32, i32, i32, i32
  }
  func.func @transform_1(%arg0: i32) -> (i32, i32, i32, i32) {
    %c0_i32 = arith.constant 0 : i32
    %c0_i32_0 = arith.constant 0 : i32
    %c0_i32_1 = arith.constant 0 : i32
    %c0_i32_2 = arith.constant 0 : i32
    return %arg0, %c0_i32, %c0_i32_0, %c0_i32_1 : i32, i32, i32, i32
  }
  func.func @transform_2(%arg0: i32) -> (i32, i32, i32, i32) {
    %c0_i32 = arith.constant 0 : i32
    %c0_i32_0 = arith.constant 0 : i32
    %c0_i32_1 = arith.constant 0 : i32
    %c0_i32_2 = arith.constant 0 : i32
    return %arg0, %c0_i32, %c0_i32_0, %c0_i32_1 : i32, i32, i32, i32
  }
  func.func @transform_3(%arg0: i32) -> (i32, i32, i32, i32) {
    %c0_i32 = arith.constant 0 : i32
    %c0_i32_0 = arith.constant 0 : i32
    %c0_i32_1 = arith.constant 0 : i32
    %c0_i32_2 = arith.constant 0 : i32
    return %arg0, %c0_i32, %c0_i32_0, %c0_i32_1 : i32, i32, i32, i32
  }
  func.func @transform_4(%arg0: i32) -> (i32, i32, i32, i32) {
    %c0_i32 = arith.constant 0 : i32
    %c0_i32_0 = arith.constant 0 : i32
    %c0_i32_1 = arith.constant 0 : i32
    %c0_i32_2 = arith.constant 0 : i32
    return %arg0, %c0_i32, %c0_i32_0, %c0_i32_1 : i32, i32, i32, i32
  }
  func.func @transform_5(%arg0: i32) -> (i32, i32, i32, i32) {
    %c0_i32 = arith.constant 0 : i32
    %c0_i32_0 = arith.constant 0 : i32
    %c0_i32_1 = arith.constant 0 : i32
    %c0_i32_2 = arith.constant 0 : i32
    return %arg0, %c0_i32, %c0_i32_0, %c0_i32_1 : i32, i32, i32, i32
  }
  func.func @transform_6(%arg0: i32) -> (i32, i32, i32, i32) {
    %c0_i32 = arith.constant 0 : i32
    %c0_i32_0 = arith.constant 0 : i32
    %c0_i32_1 = arith.constant 0 : i32
    %c0_i32_2 = arith.constant 0 : i32
    return %arg0, %c0_i32, %c0_i32_0, %c0_i32_1 : i32, i32, i32, i32
  }
}

</mosaic_0001>

<llo_original>
// kernel: tpu_custom_call.1
$region0: #{tpu_custom_call.1}
  #allocation0 [shape = 'u32[]', space=smem, size = 0x4, offset = 0x4, fixed_abs, tag = 'smem constant byte address 0x4 - core index']
  #allocation1 [shape = 'u32[144,128]{1,0:T(1,128)}', space=vmem, size = 0x12000, scoped, tag = 'internal scratch']
  %s0 = inlined_call_operand.hbm [shape: f32[2,2,8,32], index: 0, kind: input, shape index: {}]
  %s1 = inlined_call_operand.vmem [shape: f32[2,2,32,96], index: 1, kind: input, shape index: {}]
  %s2 = inlined_call_operand.vmem [shape: f32[2,2,32,32], index: 2, kind: input, shape index: {}]
  %s3 = inlined_call_operand.vmem [shape: f32[2,2,32,64], index: 3, kind: input, shape index: {}]
  %s4 = inlined_call_operand.vmem [shape: f32[2,2,64,32], index: 4, kind: input, shape index: {}]
  %s5 = inlined_call_operand.hbm [shape: f32[2,2,8,128], index: 5, kind: input, shape index: {}]
  %s6 = inlined_call_operand.hbm [shape: f32[2,2,8,32], index: 6, kind: output, shape index: {}]
  %s7 = sld [smem:[#allocation0]]
  $region65: #{tpu_custom_call.1} parent=0
    _
  %s9 = ssub.s32 1, %s7
  %s10 = scalar_select 0, %s9, %s7
  $region1: #{tpu_custom_call.1} parent=0
    #allocation2 [shape = 'u8[16384]{0}', space=vmem, size = 0x4000, scoped, tag = 'input window, operand 0']
    #allocation3 [shape = 's32[2]{0}', space=sflag, size = 0x8, scoped, tag = 'scoped memory for tpu_custom_call.1']
    #allocation4 [shape = 's32[2]{0}', space=sflag, size = 0x8, scoped, tag = 'scoped memory for tpu_custom_call.1']
    #allocation5 [shape = 'u8[16384]{0}', space=vmem, size = 0x4000, scoped, tag = 'input window, operand 5']
    #allocation6 [shape = 's32[2]{0}', space=sflag, size = 0x8, scoped, tag = 'scoped memory for tpu_custom_call.1']
    #allocation7 [shape = 'u8[16384]{0}', space=vmem, size = 0x4000, scoped, tag = 'output window, operand 0']
    %11 = vsyncpa [#allocation3], 0
    %s12 = scalar_lea.sflag [#allocation3], 1
    %13 = vsyncpa %s12, 0
    %14 = vsyncpa [#allocation6], 0
    %s15 = scalar_lea.sflag [#allocation6], 1
    %16 = vsyncpa %s15, 0
    %17 = vsyncpa [#allocation4], 0
    %s18 = scalar_lea.sflag [#allocation4], 1
    %19 = vsyncpa %s18, 0
    loop: start=0, step=1, limit=4
    $region2: #{tpu_custom_call.1} parent=1 // loop_pre_header
      _
    $region3: #{tpu_custom_call.1} parent=1 // loop_header
      %s21 = sphi 0, %s25
      %p22 = scmp.ge.s32.totalorder %s21, 4
      %s31 = sphi 0, %s33
      %s34 = sphi 0, %s31
      %s35 = sphi 0, %s34
      %s51 = sphi 0, %s35
      %s57 = sphi 0, %s59
      %s60 = sphi 0, %s57
      %s61 = sphi 0, %s60
      %s77 = sphi 0, %s61
      %s83 = sphi 0, %s85
      %s86 = sphi 0, %s83
      %s87 = sphi 0, %s86
      %s103 = sphi 0, %s87
      %s109 = sphi 0, %s111
      %s112 = sphi 0, %s109
      %s113 = sphi 0, %s112
      %s129 = sphi 0, %s113
      %s135 = sphi 0, %s137
      %s138 = sphi 0, %s135
      %s139 = sphi 0, %s138
      %s155 = sphi 0, %s139
      %s161 = sphi 0, %s163
      %s164 = sphi 0, %s161
      %s165 = sphi 0, %s164
      %s181 = sphi 0, %s165
      %s187 = sphi 0, %s189
      %s190 = sphi 0, %s187
      %s191 = sphi 0, %s190
      %s207 = sphi 0, %s191
    $region4: #{tpu_custom_call.1} parent=1 // loop_header_branch
      %24 = sbr.rel (%p22) target = $region8
    $region5: #{tpu_custom_call.1} parent=1 // loop_body
      %s26 = ssub.s32 %s21, 1
      %s27 = ssub.s32 %s21, 2
      %s28 = sadd.s32 %s21, 1
      %s29 = ssub.s32 %s21, %s28
      %p30 = scmp.eq.s32.totalorder %s29, 0
      %s32 = sadd.s32 %s31, 1
      %s33 = scalar_select %p30, %s31, %s32
      %p36 = pneg %p30
      %p37 = scmp.eq.s32.totalorder %s21, 1
      %p38 = por %p36, %p37
      %p39 = scmp.ne.s32.totalorder %s31, %s34
      %p40 = scmp.eq.s32.totalorder %s21, 0
      %p41 = por %p39, %p40
      %p42 = scmp.ne.s32.totalorder %s31, %s34
      %p43 = scmp.eq.s32.totalorder %s26, 1
      %p44 = por %p42, %p43
      %p45 = scmp.ne.s32.totalorder %s34, %s35
      %p46 = scmp.eq.s32.totalorder %s26, 0
      %p47 = por %p45, %p46
      %p48 = scmp.ne.s32.totalorder %s34, %s35
      %p49 = scmp.eq.s32.totalorder %s27, 1
      %p50 = por %p48, %p49
      %p52 = scmp.ne.s32.totalorder %s35, %s51
      %p53 = scmp.eq.s32.totalorder %s27, 0
      %p54 = por %p52, %p53
      %s55 = ssub.s32 %s21, %s28
      %p56 = scmp.eq.s32.totalorder %s55, 0
      %s58 = sadd.s32 %s57, 1
      %s59 = scalar_select %p56, %s57, %s58
      %p62 = pneg %p56
      %p63 = scmp.eq.s32.totalorder %s21, 1
      %p64 = por %p62, %p63
      %p65 = scmp.ne.s32.totalorder %s57, %s60
      %p66 = scmp.eq.s32.totalorder %s21, 0
      %p67 = por %p65, %p66
      %p68 = scmp.ne.s32.totalorder %s57, %s60
      %p69 = scmp.eq.s32.totalorder %s26, 1
      %p70 = por %p68, %p69
      %p71 = scmp.ne.s32.totalorder %s60, %s61
      %p72 = scmp.eq.s32.totalorder %s26, 0
      %p73 = por %p71, %p72
      %p74 = scmp.ne.s32.totalorder %s60, %s61
      %p75 = scmp.eq.s32.totalorder %s27, 1
      %p76 = por %p74, %p75
      %p78 = scmp.ne.s32.totalorder %s61, %s77
      %p79 = scmp.eq.s32.totalorder %s27, 0
      %p80 = por %p78, %p79
      %s81 = ssub.s32 %s21, %s28
      %p82 = scmp.eq.s32.totalorder %s81, 0
      %s84 = sadd.s32 %s83, 1
      %s85 = scalar_select %p82, %s83, %s84
      %p88 = pneg %p82
      %p89 = scmp.eq.s32.totalorder %s21, 1
      %p90 = por %p88, %p89
      %p91 = scmp.ne.s32.totalorder %s83, %s86
      %p92 = scmp.eq.s32.totalorder %s21, 0
      %p93 = por %p91, %p92
      %p94 = scmp.ne.s32.totalorder %s83, %s86
      %p95 = scmp.eq.s32.totalorder %s26, 1
      %p96 = por %p94, %p95
      %p97 = scmp.ne.s32.totalorder %s86, %s87
      %p98 = scmp.eq.s32.totalorder %s26, 0
      %p99 = por %p97, %p98
      %p100 = scmp.ne.s32.totalorder %s86, %s87
      %p101 = scmp.eq.s32.totalorder %s27, 1
      %p102 = por %p100, %p101
      %p104 = scmp.ne.s32.totalorder %s87, %s103
      %p105 = scmp.eq.s32.totalorder %s27, 0
      %p106 = por %p104, %p105
      %s107 = ssub.s32 %s21, %s28
      %p108 = scmp.eq.s32.totalorder %s107, 0
      %s110 = sadd.s32 %s109, 1
      %s111 = scalar_select %p108, %s109, %s110
      %p114 = pneg %p108
      %p115 = scmp.eq.s32.totalorder %s21, 1
      %p116 = por %p114, %p115
      %p117 = scmp.ne.s32.totalorder %s109, %s112
      %p118 = scmp.eq.s32.totalorder %s21, 0
      %p119 = por %p117, %p118
      %p120 = scmp.ne.s32.totalorder %s109, %s112
      %p121 = scmp.eq.s32.totalorder %s26, 1
      %p122 = por %p120, %p121
      %p123 = scmp.ne.s32.totalorder %s112, %s113
      %p124 = scmp.eq.s32.totalorder %s26, 0
      %p125 = por %p123, %p124
      %p126 = scmp.ne.s32.totalorder %s112, %s113
      %p127 = scmp.eq.s32.totalorder %s27, 1
      %p128 = por %p126, %p127
      %p130 = scmp.ne.s32.totalorder %s113, %s129
      %p131 = scmp.eq.s32.totalorder %s27, 0
      %p132 = por %p130, %p131
      %s133 = ssub.s32 %s21, %s28
      %p134 = scmp.eq.s32.totalorder %s133, 0
      %s136 = sadd.s32 %s135, 1
      %s137 = scalar_select %p134, %s135, %s136
      %p140 = pneg %p134
      %p141 = scmp.eq.s32.totalorder %s21, 1
      %p142 = por %p140, %p141
      %p143 = scmp.ne.s32.totalorder %s135, %s138
      %p144 = scmp.eq.s32.totalorder %s21, 0
      %p145 = por %p143, %p144
      %p146 = scmp.ne.s32.totalorder %s135, %s138
      %p147 = scmp.eq.s32.totalorder %s26, 1
      %p148 = por %p146, %p147
      %p149 = scmp.ne.s32.totalorder %s138, %s139
      %p150 = scmp.eq.s32.totalorder %s26, 0
      %p151 = por %p149, %p150
      %p152 = scmp.ne.s32.totalorder %s138, %s139
      %p153 = scmp.eq.s32.totalorder %s27, 1
      %p154 = por %p152, %p153
      %p156 = scmp.ne.s32.totalorder %s139, %s155
      %p157 = scmp.eq.s32.totalorder %s27, 0
      %p158 = por %p156, %p157
      %s159 = ssub.s32 %s21, %s28
      %p160 = scmp.eq.s32.totalorder %s159, 0
      %s162 = sadd.s32 %s161, 1
      %s163 = scalar_select %p160, %s161, %s162
      %p166 = pneg %p160
      %p167 = scmp.eq.s32.totalorder %s21, 1
      %p168 = por %p166, %p167
      %p169 = scmp.ne.s32.totalorder %s161, %s164
      %p170 = scmp.eq.s32.totalorder %s21, 0
      %p171 = por %p169, %p170
      %p172 = scmp.ne.s32.totalorder %s161, %s164
      %p173 = scmp.eq.s32.totalorder %s26, 1
      %p174 = por %p172, %p173
      %p175 = scmp.ne.s32.totalorder %s164, %s165
      %p176 = scmp.eq.s32.totalorder %s26, 0
      %p177 = por %p175, %p176
      %p178 = scmp.ne.s32.totalorder %s164, %s165
      %p179 = scmp.eq.s32.totalorder %s27, 1
      %p180 = por %p178, %p179
      %p182 = scmp.ne.s32.totalorder %s165, %s181
      %p183 = scmp.eq.s32.totalorder %s27, 0
      %p184 = por %p182, %p183
      %s185 = ssub.s32 %s21, %s28
      %p186 = scmp.eq.s32.totalorder %s185, 0
      %s188 = sadd.s32 %s187, 1
      %s189 = scalar_select %p186, %s187, %s188
      %p192 = pneg %p186
      %p193 = scmp.eq.s32.totalorder %s21, 1
      %p194 = por %p192, %p193
      %p195 = scmp.ne.s32.totalorder %s187, %s190
      %p196 = scmp.eq.s32.totalorder %s21, 0
      %p197 = por %p195, %p196
      %p198 = scmp.ne.s32.totalorder %s187, %s190
      %p199 = scmp.eq.s32.totalorder %s26, 1
      %p200 = por %p198, %p199
      %p201 = scmp.ne.s32.totalorder %s190, %s191
      %p202 = scmp.eq.s32.totalorder %s26, 0
      %p203 = por %p201, %p202
      %p204 = scmp.ne.s32.totalorder %s190, %s191
      %p205 = scmp.eq.s32.totalorder %s27, 1
      %p206 = por %p204, %p205
      %p208 = scmp.ne.s32.totalorder %s191, %s207
      %p209 = scmp.eq.s32.totalorder %s27, 0
      %p210 = por %p208, %p209
      %p211 = scmp.le.s32.totalorder 1, %s21
      %p212 = scmp.lt.s32.totalorder %s21, 3
      %p213 = pnand %p211, %p212
      %p214 = pneg %p213
      // Predicated region
      $region9: #{tpu_custom_call.1} parent=5 // pred_check
        _
      $region10: #{tpu_custom_call.1} parent=5 // pred_check_branch
        %216 = sbr.rel (%p213) target = $region12
      $region11: #{tpu_custom_call.1} parent=5 // pred_region
        %s217 = ssub.s32 %s21, 1
      $region12: #{tpu_custom_call.1} parent=5 // pred_fallthru
        _
      %p218 = scmp.lt.s32.totalorder %s21, 2
      // Predicated region
      $region13: #{tpu_custom_call.1} parent=5 // pred_check
        %p219 = pneg %p218
      $region14: #{tpu_custom_call.1} parent=5 // pred_check_branch
        %221 = sbr.rel (%p219) target = $region16
      $region15: #{tpu_custom_call.1} parent=5 // pred_region
        // Predicated region
        $region17: #{tpu_custom_call.1} parent=15 // pred_check
          %p222 = pneg %p41
        $region18: #{tpu_custom_call.1} parent=15 // pred_check_branch
          %224 = sbr.rel (%p222) target = $region20
        $region19: #{tpu_custom_call.1} parent=15 // pred_region
          %s225 = sand.u32 %s31, 1
          %s226 = scalar_lea.sflag [#allocation3], %s225
          %s227 = sand.u32 %s31, 1
          %s228 = smul.addr %s227, 16
          %s229 = scalar_lea.vmem [#allocation2], %s228
          %s231 = ssub.s32 256, 256
          %232 = vsyncadd %s226, %s231
          %s233 = smul.addr %s21, 2
          %s234 = smul.addr %s233, 128
          %s235 = scalar_lea.hbm %s0, %s234
          %s236 = sshll.u32 %s229, 4
          %s237 = int_to_ptr.vmem [resolvable:$true] %s236
          %242 = dma.hbm_to_vmem [thread:$0]  %s235, 256, %s237, %s226, 128, 128, 8
        $region20: #{tpu_custom_call.1} parent=15 // pred_fallthru
          _
        // Predicated region
        $region21: #{tpu_custom_call.1} parent=15 // pred_check
          %p243 = pneg %p67
        $region22: #{tpu_custom_call.1} parent=15 // pred_check_branch
          %245 = sbr.rel (%p243) target = $region24
        $region23: #{tpu_custom_call.1} parent=15 // pred_region
          %p246 = scmp.lt.s32.totalorder %s21, 1
          %s247 = scalar_select %p246, %s21, 1
          %s248 = smul.addr %s247, 8
          %s249 = smul.addr %s248, 8
          %s250 = scalar_lea.vmem %s1, %s249
        $region24: #{tpu_custom_call.1} parent=15 // pred_fallthru
          _
        // Predicated region
        $region25: #{tpu_custom_call.1} parent=15 // pred_check
          %p251 = pneg %p93
        $region26: #{tpu_custom_call.1} parent=15 // pred_check_branch
          %253 = sbr.rel (%p251) target = $region28
        $region27: #{tpu_custom_call.1} parent=15 // pred_region
          %p254 = scmp.lt.s32.totalorder %s21, 1
          %s255 = scalar_select %p254, %s21, 1
          %s256 = smul.addr %s255, 8
          %s257 = smul.addr %s256, 8
          %s258 = scalar_lea.vmem %s2, %s257
        $region28: #{tpu_custom_call.1} parent=15 // pred_fallthru
          _
        // Predicated region
        $region29: #{tpu_custom_call.1} parent=15 // pred_check
          %p259 = pneg %p119
        $region30: #{tpu_custom_call.1} parent=15 // pred_check_branch
          %261 = sbr.rel (%p259) target = $region32
        $region31: #{tpu_custom_call.1} parent=15 // pred_region
          %p262 = scmp.lt.s32.totalorder %s21, 1
          %s263 = scalar_select %p262, %s21, 1
          %s264 = smul.addr %s263, 8
          %s265 = smul.addr %s264, 8
          %s266 = scalar_lea.vmem %s3, %s265
        $region32: #{tpu_custom_call.1} parent=15 // pred_fallthru
          _
        // Predicated region
        $region33: #{tpu_custom_call.1} parent=15 // pred_check
          %p267 = pneg %p145
        $region34: #{tpu_custom_call.1} parent=15 // pred_check_branch
          %269 = sbr.rel (%p267) target = $region36
        $region35: #{tpu_custom_call.1} parent=15 // pred_region
          %p270 = scmp.lt.s32.totalorder %s21, 1
          %s271 = scalar_select %p270, %s21, 1
          %s272 = smul.addr %s271, 16
          %s273 = smul.addr %s272, 8
          %s274 = scalar_lea.vmem %s4, %s273
        $region36: #{tpu_custom_call.1} parent=15 // pred_fallthru
          _
        // Predicated region
        $region37: #{tpu_custom_call.1} parent=15 // pred_check
          %p275 = pneg %p171
        $region38: #{tpu_custom_call.1} parent=15 // pred_check_branch
          %277 = sbr.rel (%p275) target = $region40
        $region39: #{tpu_custom_call.1} parent=15 // pred_region
          %s278 = sand.u32 %s161, 1
          %s279 = scalar_lea.sflag [#allocation6], %s278
          %s280 = sand.u32 %s161, 1
          %s281 = smul.addr %s280, 16
          %s282 = scalar_lea.vmem [#allocation5], %s281
          %s284 = ssub.s32 256, 256
          %285 = vsyncadd %s279, %s284
          %s286 = smul.addr %s21, 2
          %s287 = smul.addr %s286, 128
          %s288 = scalar_lea.hbm %s5, %s287
          %s289 = sshll.u32 %s282, 4
          %s290 = int_to_ptr.vmem [resolvable:$true] %s289
          %295 = dma.hbm_to_vmem [thread:$0]  %s288, 256, %s290, %s279, 128, 128, 8
        $region40: #{tpu_custom_call.1} parent=15 // pred_fallthru
          _
      $region16: #{tpu_custom_call.1} parent=5 // pred_fallthru
        _
      %p296 = scmp.le.s32.totalorder 1, %s21
      %p297 = scmp.lt.s32.totalorder %s21, 3
      %p298 = pnand %p296, %p297
      %p299 = pneg %p298
      // Predicated region
      $region41: #{tpu_custom_call.1} parent=5 // pred_check
        _
      $region42: #{tpu_custom_call.1} parent=5 // pred_check_branch
        %301 = sbr.rel (%p298) target = $region44
      $region43: #{tpu_custom_call.1} parent=5 // pred_region
        %s302 = ssub.s32 %s21, 1
        %s303 = sand.u32 %s34, 1
        %s304 = scalar_lea.sflag [#allocation3], %s303
        %s305 = sand.u32 %s34, 1
        %s306 = smul.addr %s305, 16
        %s307 = scalar_lea.vmem [#allocation2], %s306
        // Predicated region
        $region45: #{tpu_custom_call.1} parent=43 // pred_check
          %p308 = pneg %p47
        $region46: #{tpu_custom_call.1} parent=43 // pred_check_branch
          %310 = sbr.rel (%p308) target = $region48
        $region47: #{tpu_custom_call.1} parent=43 // pred_region
          %311 = dma.done %s304, 256
        $region48: #{tpu_custom_call.1} parent=43 // pred_fallthru
          _
        %s312 = sand.u32 %s164, 1
        %s313 = scalar_lea.sflag [#allocation6], %s312
        %s314 = sand.u32 %s164, 1
        %s315 = smul.addr %s314, 16
        %s316 = scalar_lea.vmem [#allocation5], %s315
        // Predicated region
        $region49: #{tpu_custom_call.1} parent=43 // pred_check
          %p317 = pneg %p177
        $region50: #{tpu_custom_call.1} parent=43 // pred_check_branch
          %319 = sbr.rel (%p317) target = $region52
        $region51: #{tpu_custom_call.1} parent=43 // pred_region
          %320 = dma.done %s313, 256
        $region52: #{tpu_custom_call.1} parent=43 // pred_fallthru
          _
        %s321 = sand.u32 %s34, 1
        %s322 = scalar_lea.sflag [#allocation3], %s321
        %s323 = sand.u32 %s34, 1
        %s324 = smul.addr %s323, 16
        %s325 = scalar_lea.vmem [#allocation2], %s324
        %p326 = pneg %p47
        %p327 = pneg %p44
        %p328 = scmp.lt.s32.totalorder %s26, 1
        %s329 = scalar_select %p328, %s26, 1
        %s330 = smul.addr %s329, 8
        %s331 = smul.addr %s330, 8
        %s332 = scalar_lea.vmem %s1, %s331
        %p333 = pneg %p73
        %p334 = pneg %p70
        %p335 = scmp.lt.s32.totalorder %s26, 1
        %s336 = scalar_select %p335, %s26, 1
        %s337 = smul.addr %s336, 8
        %s338 = smul.addr %s337, 8
        %s339 = scalar_lea.vmem %s2, %s338
        %p340 = pneg %p99
        %p341 = pneg %p96
        %p342 = scmp.lt.s32.totalorder %s26, 1
        %s343 = scalar_select %p342, %s26, 1
        %s344 = smul.addr %s343, 8
        %s345 = smul.addr %s344, 8
        %s346 = scalar_lea.vmem %s3, %s345
        %p347 = pneg %p125
        %p348 = pneg %p122
        %p349 = scmp.lt.s32.totalorder %s26, 1
        %s350 = scalar_select %p349, %s26, 1
        %s351 = smul.addr %s350, 16
        %s352 = smul.addr %s351, 8
        %s353 = scalar_lea.vmem %s4, %s352
        %p354 = pneg %p151
        %p355 = pneg %p148
        %s356 = sand.u32 %s164, 1
        %s357 = scalar_lea.sflag [#allocation6], %s356
        %s358 = sand.u32 %s164, 1
        %s359 = smul.addr %s358, 16
        %s360 = scalar_lea.vmem [#allocation5], %s359
        %p361 = pneg %p177
        %p362 = pneg %p174
        %p363 = pneg %p203
        %p364 = pneg %p200
        %s365 = sand.u32 %s190, 1
        %s366 = scalar_lea.sflag [#allocation4], %s365
        %s367 = sand.u32 %s190, 1
        %s368 = smul.addr %s367, 16
        %s369 = scalar_lea.vmem [#allocation7], %s368
        %p370 = scmp.lt.s32.totalorder %s26, 1
        %s371 = scalar_select %p370, %s26, 1
        %s372 = smul.addr %s371, 8
        %s373 = smul.addr %s372, 8
        %s374 = scalar_lea.vmem %s1, %s373
        %p375 = scmp.lt.s32.totalorder %s26, 1
        %s376 = scalar_select %p375, %s26, 1
        %s377 = smul.addr %s376, 8
        %s378 = smul.addr %s377, 8
        %s379 = scalar_lea.vmem %s2, %s378
        %p380 = scmp.lt.s32.totalorder %s26, 1
        %s381 = scalar_select %p380, %s26, 1
        %s382 = smul.addr %s381, 8
        %s383 = smul.addr %s382, 8
        %s384 = scalar_lea.vmem %s3, %s383
        %p385 = scmp.lt.s32.totalorder %s26, 1
        %s386 = scalar_select %p385, %s26, 1
        %s387 = smul.addr %s386, 16
        %s388 = smul.addr %s387, 8
        %s389 = scalar_lea.vmem %s4, %s388
        %v390 = vld [vmem:[%s307] sm:$0xff]
        %v391 = vld [vmem:[%s307 + $0x8] sm:$0xff]
        %v392 = vld [vmem:[%s316] sm:$0xff]
        %vm393 = vcmask 261120
        %v394 = vsel %vm393, %v390, 0.0
        %395 = vadd.xlane.f32.xlu0 %v394
        %v396 = vpop.xlane.xlu0 %395
        %v397 = vsel %vm393, %v391, 0.0
        %398 = vadd.xlane.f32.xlu0 %v397
        %v399 = vpop.xlane.xlu0 %398
        %v400 = vrcp.pop 32.0
        %v401 = vmul.f32 %v396, %v400
        %v402 = vmul.f32 %v399, %v400
        %v403 = vsub.f32 %v390, %v401
        %v404 = vsub.f32 %v391, %v402
        %v405 = vmul.f32 %v403, %v403
        %v406 = vmul.f32 %v404, %v404
        %v407 = vsel %vm393, %v405, 0.0
        %408 = vadd.xlane.f32.xlu0 %v407
        %v409 = vpop.xlane.xlu0 %408
        %v410 = vsel %vm393, %v406, 0.0
        %411 = vadd.xlane.f32.xlu0 %v410
        %v412 = vpop.xlane.xlu0 %411
        %v413 = vmul.f32 %v409, %v400
        %v414 = vmul.f32 %v412, %v400
        %v415 = vadd.f32 %v413, 1e-05
        %v416 = vadd.f32 %v414, 1e-05
        %v417 = vrsqrt.pop %v415
        %v418 = vrsqrt.pop %v416
        %v419 = vmul.f32 %v403, %v417
        %v420 = vmul.f32 %v404, %v418
        %v421 = vlaneseq
        %v422 = vshrl.u32 %v421, 7
        %v423 = vsub.s32 0, %v422
        %v424 = vrot.slane %v392, %v423
        %v425 = vmul.f32 %v419, %v424
        %v426 = vmul.f32 %v420, %v424
        %v427 = vlaneseq
        %v428 = vshrl.u32 %v427, 7
        %v429 = vsub.s32 1, %v428
        %v430 = vrot.slane %v392, %v429
        %v431 = vadd.f32 %v425, %v430
        %v432 = vadd.f32 %v426, %v430
        %v433 = vld [vmem:[%s374] sm:$0xff]
        %v434 = vld [vmem:[%s374 + $0x8] sm:$0xff]
        %v435 = vld [vmem:[%s374 + $0x10] sm:$0xff]
        %v436 = vld [vmem:[%s374 + $0x18] sm:$0xff]
        %v438 = vsel %vm393, %v431, 0
        %v441 = vsel %vm393, %v432, 0
        %443 = vmatprep.subr.mxu0 0.0
        %444 = vmatpush1.msra.mxu0 0.0
        %445 = vmatprep.subr.mxu0 0.0
        %446 = vmatpush1.msra.mxu0 0.0
        %447 = vmatprep.subr.mxu0 0.0
        %448 = vmatpush1.msra.mxu0 0.0
        %449 = vmatprep.subr.mxu0 0.0
        %450 = vmatpush1.msra.mxu0 0.0
        %451 = vmatprep.subr.mxu0 0.0
        %452 = vmatpush1.msra.mxu0 0.0
        %453 = vmatprep.subr.mxu0 0.0
        %454 = vmatpush1.msra.mxu0 0.0
        %455 = vmatprep.subr.mxu0 0.0
        %456 = vmatpush1.msra.mxu0 0.0
        %457 = vmatprep.subr.mxu0 0.0
        %458 = vmatpush1.msra.mxu0 0.0
        %459 = vmatprep.subr.mxu0 0.0
        %460 = vmatpush1.msra.mxu0 0.0
        %461 = vmatprep.subr.mxu0 0.0
        %462 = vmatpush1.msra.mxu0 0.0
        %463 = vmatprep.subr.mxu0 0.0
        %464 = vmatpush1.msra.mxu0 0.0
        %465 = vmatprep.subr.mxu0 0.0
        %466 = vmatpush1.msra.mxu0 0.0
        %467 = vmatprep.subr.mxu0 0.0
        %468 = vmatpush1.msra.mxu0 %v436
        %469 = vmatprep.subr.mxu0 0.0
        %470 = vmatpush1.msra.mxu0 %v435
        %471 = vmatprep.subr.mxu0 0.0
        %472 = vmatpush1.msra.mxu0 %v434
        %473 = vmatprep.subr.mxu0 0.0
        %474 = vmatpush1.msra.mxu0 %v433
        %475 = vmatprep.subr.mxu0 0.0
        %476 = vmatpush2.msra.mxu0 0.0
        %477 = vmatprep.subr.mxu0 0.0
        %478 = vmatpush2.msra.mxu0 0.0
        %479 = vmatprep.subr.mxu0 0.0
        %480 = vmatpush2.msra.mxu0 0.0
        %481 = vmatprep.subr.mxu0 0.0
        %482 = vmatpush2.msra.mxu0 0.0
        %483 = vmatprep.subr.mxu0 0.0
        %484 = vmatpush2.msra.mxu0 0.0
        %485 = vmatprep.subr.mxu0 0.0
        %486 = vmatpush2.msra.mxu0 0.0
        %487 = vmatprep.subr.mxu0 0.0
        %488 = vmatpush2.msra.mxu0 0.0
        %489 = vmatprep.subr.mxu0 0.0
        %490 = vmatpush2.msra.mxu0 0.0
        %491 = vmatprep.subr.mxu0 0.0
        %492 = vmatpush2.msra.mxu0 0.0
        %493 = vmatprep.subr.mxu0 0.0
        %494 = vmatpush2.msra.mxu0 0.0
        %495 = vmatprep.subr.mxu0 0.0
        %496 = vmatpush2.msra.mxu0 0.0
        %497 = vmatprep.subr.mxu0 0.0
        %498 = vmatpush2.msra.mxu0 0.0
        %499 = vmatprep.subr.mxu0 0.0
        %500 = vmatpush2.msra.mxu0 0.0
        %501 = vmatprep.subr.mxu0 0.0
        %502 = vmatpush2.msra.mxu0 0.0
        %503 = vmatprep.subr.mxu0 0.0
        %504 = vmatpush2.msra.mxu0 0.0
        %505 = vmatprep.subr.mxu0 0.0
        %506 = vmatpush2.msra.mxu0 0.0
        %507 = vmatprep.mubr.f32.mxu0 0.0
        %508 = vmatmul.mubr.f32.gmra.mxu0 %v438
        %v509 = vpop.f32.mrf.mxu0
        %v510 = vadd.f32 0.0, %v509
        %v511 = vpop.f32.mrf.mxu0
        %512 = vmatprep.mubr.f32.mxu0 0.0
        %513 = vmatmul.mubr.f32.gmra.mxu0 %v441
        %v514 = vpop.f32.mrf.mxu0
        %v515 = vadd.f32 0.0, %v514
        %v516 = vpop.f32.mrf.mxu0
        %517 = vdwg.mxu0
        %v518 = vld [vmem:[%s379] sm:$0xff]
        %v519 = vld [vmem:[%s379 + $0x8] sm:$0xff]
        %v520 = vld [vmem:[%s379 + $0x10] sm:$0xff]
        %v521 = vld [vmem:[%s379 + $0x18] sm:$0xff]
        %523 = vrot.lane.b32.xlu0 %v510, 96
        %v524 = vpop.permute.xlu0 %523
        %vm525 = vcmask 64512
        %v526 = vsel %vm525, %v510, 0
        %v528 = vsel %vm525, %v524, 0
        %530 = vmatprep.subr.mxu0 0.0
        %531 = vmatpush1.xpose.msra.mxu0 0.0
        %532 = vmatprep.subr.mxu0 0.0
        %533 = vmatpush1.xpose.msra.mxu0 0.0
        %534 = vmatprep.subr.mxu0 0.0
        %535 = vmatpush1.xpose.msra.mxu0 0.0
        %536 = vmatprep.subr.mxu0 0.0
        %537 = vmatpush1.xpose.msra.mxu0 0.0
        %538 = vmatprep.subr.mxu0 0.0
        %539 = vmatpush1.xpose.msra.mxu0 0.0
        %540 = vmatprep.subr.mxu0 0.0
        %541 = vmatpush1.xpose.msra.mxu0 0.0
        %542 = vmatprep.subr.mxu0 0.0
        %543 = vmatpush1.xpose.msra.mxu0 0.0
        %544 = vmatprep.subr.mxu0 0.0
        %545 = vmatpush1.xpose.msra.mxu0 0.0
        %546 = vmatprep.subr.mxu0 0.0
        %547 = vmatpush1.xpose.msra.mxu0 0.0
        %548 = vmatprep.subr.mxu0 0.0
        %549 = vmatpush1.xpose.msra.mxu0 0.0
        %550 = vmatprep.subr.mxu0 0.0
        %551 = vmatpush1.xpose.msra.mxu0 0.0
        %552 = vmatprep.subr.mxu0 0.0
        %553 = vmatpush1.xpose.msra.mxu0 0.0
        %554 = vmatprep.subr.mxu0 0.0
        %555 = vmatpush1.xpose.msra.mxu0 0.0
        %556 = vmatprep.subr.mxu0 0.0
        %557 = vmatpush1.xpose.msra.mxu0 0.0
        %558 = vmatprep.subr.mxu0 0.0
        %559 = vmatpush1.xpose.msra.mxu0 0.0
        %560 = vmatprep.subr.mxu0 0.0
        %561 = vmatpush1.xpose.msra.mxu0 %v528
        %562 = vmatprep.subr.mxu0 0.0
        %563 = vmatpush2.xpose.msra.mxu0 0.0
        %564 = vmatprep.subr.mxu0 0.0
        %565 = vmatpush2.xpose.msra.mxu0 0.0
        %566 = vmatprep.subr.mxu0 0.0
        %567 = vmatpush2.xpose.msra.mxu0 0.0
        %568 = vmatprep.subr.mxu0 0.0
        %569 = vmatpush2.xpose.msra.mxu0 0.0
        %570 = vmatprep.subr.mxu0 0.0
        %571 = vmatpush2.xpose.msra.mxu0 0.0
        %572 = vmatprep.subr.mxu0 0.0
        %573 = vmatpush2.xpose.msra.mxu0 0.0
        %574 = vmatprep.subr.mxu0 0.0
        %575 = vmatpush2.xpose.msra.mxu0 0.0
        %576 = vmatprep.subr.mxu0 0.0
        %577 = vmatpush2.xpose.msra.mxu0 0.0
        %578 = vmatprep.subr.mxu0 0.0
        %579 = vmatpush2.xpose.msra.mxu0 0.0
        %580 = vmatprep.subr.mxu0 0.0
        %581 = vmatpush2.xpose.msra.mxu0 0.0
        %582 = vmatprep.subr.mxu0 0.0
        %583 = vmatpush2.xpose.msra.mxu0 0.0
        %584 = vmatprep.subr.mxu0 0.0
        %585 = vmatpush2.xpose.msra.mxu0 0.0
        %586 = vmatprep.subr.mxu0 0.0
        %587 = vmatpush2.xpose.msra.mxu0 0.0
        %588 = vmatprep.subr.mxu0 0.0
        %589 = vmatpush2.xpose.msra.mxu0 0.0
        %590 = vmatprep.subr.mxu0 0.0
        %591 = vmatpush2.xpose.msra.mxu0 0.0
        %592 = vmatprep.subr.mxu0 0.0
        %593 = vmatpush2.xpose.msra.mxu0 0.0
        %594 = vmatprep.mubr.f32.mxu0 0.0
        %595 = vmatmul.mubr.f32.gmra.mxu0 %v526
        %v596 = vpop.f32.mrf.mxu0
        %v597 = vadd.f32 0.0, %v596
        %v598 = vpop.f32.mrf.mxu0
        %599 = vdwg.mxu0
        %601 = vrot.lane.b32.xlu0 %v515, 96
        %v602 = vpop.permute.xlu0 %601
        %v603 = vsel %vm525, %v515, 0
        %v605 = vsel %vm525, %v602, 0
        %607 = vmatprep.subr.mxu0 0.0
        %608 = vmatpush1.xpose.msra.mxu0 0.0
        %609 = vmatprep.subr.mxu0 0.0
        %610 = vmatpush1.xpose.msra.mxu0 0.0
        %611 = vmatprep.subr.mxu0 0.0
        %612 = vmatpush1.xpose.msra.mxu0 0.0
        %613 = vmatprep.subr.mxu0 0.0
        %614 = vmatpush1.xpose.msra.mxu0 0.0
        %615 = vmatprep.subr.mxu0 0.0
        %616 = vmatpush1.xpose.msra.mxu0 0.0
        %617 = vmatprep.subr.mxu0 0.0
        %618 = vmatpush1.xpose.msra.mxu0 0.0
        %619 = vmatprep.subr.mxu0 0.0
        %620 = vmatpush1.xpose.msra.mxu0 0.0
        %621 = vmatprep.subr.mxu0 0.0
        %622 = vmatpush1.xpose.msra.mxu0 0.0
        %623 = vmatprep.subr.mxu0 0.0
        %624 = vmatpush1.xpose.msra.mxu0 0.0
        %625 = vmatprep.subr.mxu0 0.0
        %626 = vmatpush1.xpose.msra.mxu0 0.0
        %627 = vmatprep.subr.mxu0 0.0
        %628 = vmatpush1.xpose.msra.mxu0 0.0
        %629 = vmatprep.subr.mxu0 0.0
        %630 = vmatpush1.xpose.msra.mxu0 0.0
        %631 = vmatprep.subr.mxu0 0.0
        %632 = vmatpush1.xpose.msra.mxu0 0.0
        %633 = vmatprep.subr.mxu0 0.0
        %634 = vmatpush1.xpose.msra.mxu0 0.0
        %635 = vmatprep.subr.mxu0 0.0
        %636 = vmatpush1.xpose.msra.mxu0 0.0
        %637 = vmatprep.subr.mxu0 0.0
        %638 = vmatpush1.xpose.msra.mxu0 %v605
        %639 = vmatprep.subr.mxu0 0.0
        %640 = vmatpush2.xpose.msra.mxu0 0.0
        %641 = vmatprep.subr.mxu0 0.0
        %642 = vmatpush2.xpose.msra.mxu0 0.0
        %643 = vmatprep.subr.mxu0 0.0
        %644 = vmatpush2.xpose.msra.mxu0 0.0
        %645 = vmatprep.subr.mxu0 0.0
        %646 = vmatpush2.xpose.msra.mxu0 0.0
        %647 = vmatprep.subr.mxu0 0.0
        %648 = vmatpush2.xpose.msra.mxu0 0.0
        %649 = vmatprep.subr.mxu0 0.0
        %650 = vmatpush2.xpose.msra.mxu0 0.0
        %651 = vmatprep.subr.mxu0 0.0
        %652 = vmatpush2.xpose.msra.mxu0 0.0
        %653 = vmatprep.subr.mxu0 0.0
        %654 = vmatpush2.xpose.msra.mxu0 0.0
        %655 = vmatprep.subr.mxu0 0.0
        %656 = vmatpush2.xpose.msra.mxu0 0.0
        %657 = vmatprep.subr.mxu0 0.0
        %658 = vmatpush2.xpose.msra.mxu0 0.0
        %659 = vmatprep.subr.mxu0 0.0
        %660 = vmatpush2.xpose.msra.mxu0 0.0
        %661 = vmatprep.subr.mxu0 0.0
        %662 = vmatpush2.xpose.msra.mxu0 0.0
        %663 = vmatprep.subr.mxu0 0.0
        %664 = vmatpush2.xpose.msra.mxu0 0.0
        %665 = vmatprep.subr.mxu0 0.0
        %666 = vmatpush2.xpose.msra.mxu0 0.0
        %667 = vmatprep.subr.mxu0 0.0
        %668 = vmatpush2.xpose.msra.mxu0 0.0
        %669 = vmatprep.subr.mxu0 0.0
        %670 = vmatpush2.xpose.msra.mxu0 0.0
        %671 = vmatprep.mubr.f32.mxu0 0.0
        %672 = vmatmul.mubr.f32.gmra.mxu0 %v603
        %v673 = vpop.f32.mrf.mxu0
        %v674 = vadd.f32 0.0, %v673
        %v675 = vpop.f32.mrf.mxu0
        %676 = vdwg.mxu0
        %v677 = vsel %vm525, %v597, -inf
        %678 = vmax.xlane.f32.xlu0 %v677
        %v679 = vpop.xlane.xlu0 %678
        %v680 = vsel %vm525, %v674, -inf
        %681 = vmax.xlane.f32.xlu0 %v680
        %v682 = vpop.xlane.xlu0 %681
        %v683 = vsub.f32 %v597, %v679
        %v684 = vsub.f32 %v674, %v682
        %v685 = vmul.f32 %v683, 1.442695
        %v686 = vpow.pop %v685
        %v687 = vmul.f32 %v684, 1.442695
        %v688 = vpow.pop %v687
        %v689 = vsel %vm525, %v686, 0.0
        %690 = vadd.xlane.f32.xlu0 %v689
        %v691 = vpop.xlane.xlu0 %690
        %v692 = vsel %vm525, %v688, 0.0
        %693 = vadd.xlane.f32.xlu0 %v692
        %v694 = vpop.xlane.xlu0 %693
        %v695 = vrcp.pop %v691
        %v696 = vrcp.pop %v694
        %v697 = vmul.f32 %v686, %v695
        %v698 = vmul.f32 %v688, %v696
        %699 = vrot.lane.b32.xlu0 %v510, 64
        %v700 = vpop.permute.xlu0 %699
        %v703 = vsel %vm525, %v697, 0
        %705 = vmatprep.subr.mxu0 0.0
        %706 = vmatpush1.msra.mxu0 0.0
        %707 = vmatprep.subr.mxu0 0.0
        %708 = vmatpush1.msra.mxu0 0.0
        %709 = vmatprep.subr.mxu0 0.0
        %710 = vmatpush1.msra.mxu0 0.0
        %711 = vmatprep.subr.mxu0 0.0
        %712 = vmatpush1.msra.mxu0 0.0
        %713 = vmatprep.subr.mxu0 0.0
        %714 = vmatpush1.msra.mxu0 0.0
        %715 = vmatprep.subr.mxu0 0.0
        %716 = vmatpush1.msra.mxu0 0.0
        %717 = vmatprep.subr.mxu0 0.0
        %718 = vmatpush1.msra.mxu0 0.0
        %719 = vmatprep.subr.mxu0 0.0
        %720 = vmatpush1.msra.mxu0 0.0
        %721 = vmatprep.subr.mxu0 0.0
        %722 = vmatpush1.msra.mxu0 0.0
        %723 = vmatprep.subr.mxu0 0.0
        %724 = vmatpush1.msra.mxu0 0.0
        %725 = vmatprep.subr.mxu0 0.0
        %726 = vmatpush1.msra.mxu0 0.0
        %727 = vmatprep.subr.mxu0 0.0
        %728 = vmatpush1.msra.mxu0 0.0
        %729 = vmatprep.subr.mxu0 0.0
        %730 = vmatpush1.msra.mxu0 0.0
        %731 = vmatprep.subr.mxu0 0.0
        %732 = vmatpush1.msra.mxu0 0.0
        %733 = vmatprep.subr.mxu0 0.0
        %734 = vmatpush1.msra.mxu0 0.0
        %735 = vmatprep.subr.mxu0 0.0
        %736 = vmatpush1.msra.mxu0 %v700
        %737 = vmatprep.subr.mxu0 0.0
        %738 = vmatpush2.msra.mxu0 0.0
        %739 = vmatprep.subr.mxu0 0.0
        %740 = vmatpush2.msra.mxu0 0.0
        %741 = vmatprep.subr.mxu0 0.0
        %742 = vmatpush2.msra.mxu0 0.0
        %743 = vmatprep.subr.mxu0 0.0
        %744 = vmatpush2.msra.mxu0 0.0
        %745 = vmatprep.subr.mxu0 0.0
        %746 = vmatpush2.msra.mxu0 0.0
        %747 = vmatprep.subr.mxu0 0.0
        %748 = vmatpush2.msra.mxu0 0.0
        %749 = vmatprep.subr.mxu0 0.0
        %750 = vmatpush2.msra.mxu0 0.0
        %751 = vmatprep.subr.mxu0 0.0
        %752 = vmatpush2.msra.mxu0 0.0
        %753 = vmatprep.subr.mxu0 0.0
        %754 = vmatpush2.msra.mxu0 0.0
        %755 = vmatprep.subr.mxu0 0.0
        %756 = vmatpush2.msra.mxu0 0.0
        %757 = vmatprep.subr.mxu0 0.0
        %758 = vmatpush2.msra.mxu0 0.0
        %759 = vmatprep.subr.mxu0 0.0
        %760 = vmatpush2.msra.mxu0 0.0
        %761 = vmatprep.subr.mxu0 0.0
        %762 = vmatpush2.msra.mxu0 0.0
        %763 = vmatprep.subr.mxu0 0.0
        %764 = vmatpush2.msra.mxu0 0.0
        %765 = vmatprep.subr.mxu0 0.0
        %766 = vmatpush2.msra.mxu0 0.0
        %767 = vmatprep.subr.mxu0 0.0
        %768 = vmatpush2.msra.mxu0 0.0
        %769 = vmatprep.mubr.f32.mxu0 0.0
        %770 = vmatmul.mubr.f32.gmra.mxu0 %v703
        %v771 = vpop.f32.mrf.mxu0
        %v772 = vadd.f32 0.0, %v771
        %v773 = vpop.f32.mrf.mxu0
        %774 = vdwg.mxu0
        %775 = vrot.lane.b32.xlu0 %v515, 64
        %v776 = vpop.permute.xlu0 %775
        %v779 = vsel %vm525, %v698, 0
        %781 = vmatprep.subr.mxu0 0.0
        %782 = vmatpush1.msra.mxu0 0.0
        %783 = vmatprep.subr.mxu0 0.0
        %784 = vmatpush1.msra.mxu0 0.0
        %785 = vmatprep.subr.mxu0 0.0
        %786 = vmatpush1.msra.mxu0 0.0
        %787 = vmatprep.subr.mxu0 0.0
        %788 = vmatpush1.msra.mxu0 0.0
        %789 = vmatprep.subr.mxu0 0.0
        %790 = vmatpush1.msra.mxu0 0.0
        %791 = vmatprep.subr.mxu0 0.0
        %792 = vmatpush1.msra.mxu0 0.0
        %793 = vmatprep.subr.mxu0 0.0
        %794 = vmatpush1.msra.mxu0 0.0
        %795 = vmatprep.subr.mxu0 0.0
        %796 = vmatpush1.msra.mxu0 0.0
        %797 = vmatprep.subr.mxu0 0.0
        %798 = vmatpush1.msra.mxu0 0.0
        %799 = vmatprep.subr.mxu0 0.0
        %800 = vmatpush1.msra.mxu0 0.0
        %801 = vmatprep.subr.mxu0 0.0
        %802 = vmatpush1.msra.mxu0 0.0
        %803 = vmatprep.subr.mxu0 0.0
        %804 = vmatpush1.msra.mxu0 0.0
        %805 = vmatprep.subr.mxu0 0.0
        %806 = vmatpush1.msra.mxu0 0.0
        %807 = vmatprep.subr.mxu0 0.0
        %808 = vmatpush1.msra.mxu0 0.0
        %809 = vmatprep.subr.mxu0 0.0
        %810 = vmatpush1.msra.mxu0 0.0
        %811 = vmatprep.subr.mxu0 0.0
        %812 = vmatpush1.msra.mxu0 %v776
        %813 = vmatprep.subr.mxu0 0.0
        %814 = vmatpush2.msra.mxu0 0.0
        %815 = vmatprep.subr.mxu0 0.0
        %816 = vmatpush2.msra.mxu0 0.0
        %817 = vmatprep.subr.mxu0 0.0
        %818 = vmatpush2.msra.mxu0 0.0
        %819 = vmatprep.subr.mxu0 0.0
        %820 = vmatpush2.msra.mxu0 0.0
        %821 = vmatprep.subr.mxu0 0.0
        %822 = vmatpush2.msra.mxu0 0.0
        %823 = vmatprep.subr.mxu0 0.0
        %824 = vmatpush2.msra.mxu0 0.0
        %825 = vmatprep.subr.mxu0 0.0
        %826 = vmatpush2.msra.mxu0 0.0
        %827 = vmatprep.subr.mxu0 0.0
        %828 = vmatpush2.msra.mxu0 0.0
        %829 = vmatprep.subr.mxu0 0.0
        %830 = vmatpush2.msra.mxu0 0.0
        %831 = vmatprep.subr.mxu0 0.0
        %832 = vmatpush2.msra.mxu0 0.0
        %833 = vmatprep.subr.mxu0 0.0
        %834 = vmatpush2.msra.mxu0 0.0
        %835 = vmatprep.subr.mxu0 0.0
        %836 = vmatpush2.msra.mxu0 0.0
        %837 = vmatprep.subr.mxu0 0.0
        %838 = vmatpush2.msra.mxu0 0.0
        %839 = vmatprep.subr.mxu0 0.0
        %840 = vmatpush2.msra.mxu0 0.0
        %841 = vmatprep.subr.mxu0 0.0
        %842 = vmatpush2.msra.mxu0 0.0
        %843 = vmatprep.subr.mxu0 0.0
        %844 = vmatpush2.msra.mxu0 0.0
        %845 = vmatprep.mubr.f32.mxu0 0.0
        %846 = vmatmul.mubr.f32.gmra.mxu0 %v779
        %v847 = vpop.f32.mrf.mxu0
        %v848 = vadd.f32 0.0, %v847
        %v849 = vpop.f32.mrf.mxu0
        %850 = vdwg.mxu0
        %851 = vrot.lane.b32.xlu0 %v510, 120
        %v852 = vpop.permute.xlu0 %851
        %853 = vrot.lane.b32.xlu0 %v510, 88
        %v854 = vpop.permute.xlu0 %853
        %v855 = vsel %vm525, %v852, 0
        %v857 = vsel %vm525, %v854, 0
        %859 = vmatprep.subr.mxu0 0.0
        %860 = vmatpush1.xpose.msra.mxu0 0.0
        %861 = vmatprep.subr.mxu0 0.0
        %862 = vmatpush1.xpose.msra.mxu0 0.0
        %863 = vmatprep.subr.mxu0 0.0
        %864 = vmatpush1.xpose.msra.mxu0 0.0
        %865 = vmatprep.subr.mxu0 0.0
        %866 = vmatpush1.xpose.msra.mxu0 0.0
        %867 = vmatprep.subr.mxu0 0.0
        %868 = vmatpush1.xpose.msra.mxu0 0.0
        %869 = vmatprep.subr.mxu0 0.0
        %870 = vmatpush1.xpose.msra.mxu0 0.0
        %871 = vmatprep.subr.mxu0 0.0
        %872 = vmatpush1.xpose.msra.mxu0 0.0
        %873 = vmatprep.subr.mxu0 0.0
        %874 = vmatpush1.xpose.msra.mxu0 0.0
        %875 = vmatprep.subr.mxu0 0.0
        %876 = vmatpush1.xpose.msra.mxu0 0.0
        %877 = vmatprep.subr.mxu0 0.0
        %878 = vmatpush1.xpose.msra.mxu0 0.0
        %879 = vmatprep.subr.mxu0 0.0
        %880 = vmatpush1.xpose.msra.mxu0 0.0
        %881 = vmatprep.subr.mxu0 0.0
        %882 = vmatpush1.xpose.msra.mxu0 0.0
        %883 = vmatprep.subr.mxu0 0.0
        %884 = vmatpush1.xpose.msra.mxu0 0.0
        %885 = vmatprep.subr.mxu0 0.0
        %886 = vmatpush1.xpose.msra.mxu0 0.0
        %887 = vmatprep.subr.mxu0 0.0
        %888 = vmatpush1.xpose.msra.mxu0 0.0
        %889 = vmatprep.subr.mxu0 0.0
        %890 = vmatpush1.xpose.msra.mxu0 %v857
        %891 = vmatprep.subr.mxu0 0.0
        %892 = vmatpush2.xpose.msra.mxu0 0.0
        %893 = vmatprep.subr.mxu0 0.0
        %894 = vmatpush2.xpose.msra.mxu0 0.0
        %895 = vmatprep.subr.mxu0 0.0
        %896 = vmatpush2.xpose.msra.mxu0 0.0
        %897 = vmatprep.subr.mxu0 0.0
        %898 = vmatpush2.xpose.msra.mxu0 0.0
        %899 = vmatprep.subr.mxu0 0.0
        %900 = vmatpush2.xpose.msra.mxu0 0.0
        %901 = vmatprep.subr.mxu0 0.0
        %902 = vmatpush2.xpose.msra.mxu0 0.0
        %903 = vmatprep.subr.mxu0 0.0
        %904 = vmatpush2.xpose.msra.mxu0 0.0
        %905 = vmatprep.subr.mxu0 0.0
        %906 = vmatpush2.xpose.msra.mxu0 0.0
        %907 = vmatprep.subr.mxu0 0.0
        %908 = vmatpush2.xpose.msra.mxu0 0.0
        %909 = vmatprep.subr.mxu0 0.0
        %910 = vmatpush2.xpose.msra.mxu0 0.0
        %911 = vmatprep.subr.mxu0 0.0
        %912 = vmatpush2.xpose.msra.mxu0 0.0
        %913 = vmatprep.subr.mxu0 0.0
        %914 = vmatpush2.xpose.msra.mxu0 0.0
        %915 = vmatprep.subr.mxu0 0.0
        %916 = vmatpush2.xpose.msra.mxu0 0.0
        %917 = vmatprep.subr.mxu0 0.0
        %918 = vmatpush2.xpose.msra.mxu0 0.0
        %919 = vmatprep.subr.mxu0 0.0
        %920 = vmatpush2.xpose.msra.mxu0 0.0
        %921 = vmatprep.subr.mxu0 0.0
        %922 = vmatpush2.xpose.msra.mxu0 0.0
        %923 = vmatprep.mubr.f32.mxu0 0.0
        %924 = vmatmul.mubr.f32.gmra.mxu0 %v855
        %v925 = vpop.f32.mrf.mxu0
        %v926 = vadd.f32 0.0, %v925
        %v927 = vpop.f32.mrf.mxu0
        %928 = vdwg.mxu0
        %929 = vrot.lane.b32.xlu0 %v515, 120
        %v930 = vpop.permute.xlu0 %929
        %931 = vrot.lane.b32.xlu0 %v515, 88
        %v932 = vpop.permute.xlu0 %931
        %v933 = vsel %vm525, %v930, 0
        %v935 = vsel %vm525, %v932, 0
        %937 = vmatprep.subr.mxu0 0.0
        %938 = vmatpush1.xpose.msra.mxu0 0.0
        %939 = vmatprep.subr.mxu0 0.0
        %940 = vmatpush1.xpose.msra.mxu0 0.0
        %941 = vmatprep.subr.mxu0 0.0
        %942 = vmatpush1.xpose.msra.mxu0 0.0
        %943 = vmatprep.subr.mxu0 0.0
        %944 = vmatpush1.xpose.msra.mxu0 0.0
        %945 = vmatprep.subr.mxu0 0.0
        %946 = vmatpush1.xpose.msra.mxu0 0.0
        %947 = vmatprep.subr.mxu0 0.0
        %948 = vmatpush1.xpose.msra.mxu0 0.0
        %949 = vmatprep.subr.mxu0 0.0
        %950 = vmatpush1.xpose.msra.mxu0 0.0
        %951 = vmatprep.subr.mxu0 0.0
        %952 = vmatpush1.xpose.msra.mxu0 0.0
        %953 = vmatprep.subr.mxu0 0.0
        %954 = vmatpush1.xpose.msra.mxu0 0.0
        %955 = vmatprep.subr.mxu0 0.0
        %956 = vmatpush1.xpose.msra.mxu0 0.0
        %957 = vmatprep.subr.mxu0 0.0
        %958 = vmatpush1.xpose.msra.mxu0 0.0
        %959 = vmatprep.subr.mxu0 0.0
        %960 = vmatpush1.xpose.msra.mxu0 0.0
        %961 = vmatprep.subr.mxu0 0.0
        %962 = vmatpush1.xpose.msra.mxu0 0.0
        %963 = vmatprep.subr.mxu0 0.0
        %964 = vmatpush1.xpose.msra.mxu0 0.0
        %965 = vmatprep.subr.mxu0 0.0
        %966 = vmatpush1.xpose.msra.mxu0 0.0
        %967 = vmatprep.subr.mxu0 0.0
        %968 = vmatpush1.xpose.msra.mxu0 %v935
        %969 = vmatprep.subr.mxu0 0.0
        %970 = vmatpush2.xpose.msra.mxu0 0.0
        %971 = vmatprep.subr.mxu0 0.0
        %972 = vmatpush2.xpose.msra.mxu0 0.0
        %973 = vmatprep.subr.mxu0 0.0
        %974 = vmatpush2.xpose.msra.mxu0 0.0
        %975 = vmatprep.subr.mxu0 0.0
        %976 = vmatpush2.xpose.msra.mxu0 0.0
        %977 = vmatprep.subr.mxu0 0.0
        %978 = vmatpush2.xpose.msra.mxu0 0.0
        %979 = vmatprep.subr.mxu0 0.0
        %980 = vmatpush2.xpose.msra.mxu0 0.0
        %981 = vmatprep.subr.mxu0 0.0
        %982 = vmatpush2.xpose.msra.mxu0 0.0
        %983 = vmatprep.subr.mxu0 0.0
        %984 = vmatpush2.xpose.msra.mxu0 0.0
        %985 = vmatprep.subr.mxu0 0.0
        %986 = vmatpush2.xpose.msra.mxu0 0.0
        %987 = vmatprep.subr.mxu0 0.0
        %988 = vmatpush2.xpose.msra.mxu0 0.0
        %989 = vmatprep.subr.mxu0 0.0
        %990 = vmatpush2.xpose.msra.mxu0 0.0
        %991 = vmatprep.subr.mxu0 0.0
        %992 = vmatpush2.xpose.msra.mxu0 0.0
        %993 = vmatprep.subr.mxu0 0.0
        %994 = vmatpush2.xpose.msra.mxu0 0.0
        %995 = vmatprep.subr.mxu0 0.0
        %996 = vmatpush2.xpose.msra.mxu0 0.0
        %997 = vmatprep.subr.mxu0 0.0
        %998 = vmatpush2.xpose.msra.mxu0 0.0
        %999 = vmatprep.subr.mxu0 0.0
        %1000 = vmatpush2.xpose.msra.mxu0 0.0
        %1001 = vmatprep.mubr.f32.mxu0 0.0
        %1002 = vmatmul.mubr.f32.gmra.mxu0 %v933
        %v1003 = vpop.f32.mrf.mxu0
        %v1004 = vadd.f32 0.0, %v1003
        %v1005 = vpop.f32.mrf.mxu0
        %1006 = vdwg.mxu0
        %v1007 = vsel %vm525, %v926, -inf
        %1008 = vmax.xlane.f32.xlu0 %v1007
        %v1009 = vpop.xlane.xlu0 %1008
        %v1010 = vsel %vm525, %v1004, -inf
        %1011 = vmax.xlane.f32.xlu0 %v1010
        %v1012 = vpop.xlane.xlu0 %1011
        %v1013 = vsub.f32 %v926, %v1009
        %v1014 = vsub.f32 %v1004, %v1012
        %v1015 = vmul.f32 %v1013, 1.442695
        %v1016 = vpow.pop %v1015
        %v1017 = vmul.f32 %v1014, 1.442695
        %v1018 = vpow.pop %v1017
        %v1019 = vsel %vm525, %v1016, 0.0
        %1020 = vadd.xlane.f32.xlu0 %v1019
        %v1021 = vpop.xlane.xlu0 %1020
        %v1022 = vsel %vm525, %v1018, 0.0
        %1023 = vadd.xlane.f32.xlu0 %v1022
        %v1024 = vpop.xlane.xlu0 %1023
        %v1025 = vrcp.pop %v1021
        %v1026 = vrcp.pop %v1024
        %v1027 = vmul.f32 %v1016, %v1025
        %v1028 = vmul.f32 %v1018, %v1026
        %1029 = vrot.lane.b32.xlu0 %v510, 56
        %v1030 = vpop.permute.xlu0 %1029
        %v1033 = vsel %vm525, %v1027, 0
        %1035 = vmatprep.subr.mxu0 0.0
        %1036 = vmatpush1.msra.mxu0 0.0
        %1037 = vmatprep.subr.mxu0 0.0
        %1038 = vmatpush1.msra.mxu0 0.0
        %1039 = vmatprep.subr.mxu0 0.0
        %1040 = vmatpush1.msra.mxu0 0.0
        %1041 = vmatprep.subr.mxu0 0.0
        %1042 = vmatpush1.msra.mxu0 0.0
        %1043 = vmatprep.subr.mxu0 0.0
        %1044 = vmatpush1.msra.mxu0 0.0
        %1045 = vmatprep.subr.mxu0 0.0
        %1046 = vmatpush1.msra.mxu0 0.0
        %1047 = vmatprep.subr.mxu0 0.0
        %1048 = vmatpush1.msra.mxu0 0.0
        %1049 = vmatprep.subr.mxu0 0.0
        %1050 = vmatpush1.msra.mxu0 0.0
        %1051 = vmatprep.subr.mxu0 0.0
        %1052 = vmatpush1.msra.mxu0 0.0
        %1053 = vmatprep.subr.mxu0 0.0
        %1054 = vmatpush1.msra.mxu0 0.0
        %1055 = vmatprep.subr.mxu0 0.0
        %1056 = vmatpush1.msra.mxu0 0.0
        %1057 = vmatprep.subr.mxu0 0.0
        %1058 = vmatpush1.msra.mxu0 0.0
        %1059 = vmatprep.subr.mxu0 0.0
        %1060 = vmatpush1.msra.mxu0 0.0
        %1061 = vmatprep.subr.mxu0 0.0
        %1062 = vmatpush1.msra.mxu0 0.0
        %1063 = vmatprep.subr.mxu0 0.0
        %1064 = vmatpush1.msra.mxu0 0.0
        %1065 = vmatprep.subr.mxu0 0.0
        %1066 = vmatpush1.msra.mxu0 %v1030
        %1067 = vmatprep.subr.mxu0 0.0
        %1068 = vmatpush2.msra.mxu0 0.0
        %1069 = vmatprep.subr.mxu0 0.0
        %1070 = vmatpush2.msra.mxu0 0.0
        %1071 = vmatprep.subr.mxu0 0.0
        %1072 = vmatpush2.msra.mxu0 0.0
        %1073 = vmatprep.subr.mxu0 0.0
        %1074 = vmatpush2.msra.mxu0 0.0
        %1075 = vmatprep.subr.mxu0 0.0
        %1076 = vmatpush2.msra.mxu0 0.0
        %1077 = vmatprep.subr.mxu0 0.0
        %1078 = vmatpush2.msra.mxu0 0.0
        %1079 = vmatprep.subr.mxu0 0.0
        %1080 = vmatpush2.msra.mxu0 0.0
        %1081 = vmatprep.subr.mxu0 0.0
        %1082 = vmatpush2.msra.mxu0 0.0
        %1083 = vmatprep.subr.mxu0 0.0
        %1084 = vmatpush2.msra.mxu0 0.0
        %1085 = vmatprep.subr.mxu0 0.0
        %1086 = vmatpush2.msra.mxu0 0.0
        %1087 = vmatprep.subr.mxu0 0.0
        %1088 = vmatpush2.msra.mxu0 0.0
        %1089 = vmatprep.subr.mxu0 0.0
        %1090 = vmatpush2.msra.mxu0 0.0
        %1091 = vmatprep.subr.mxu0 0.0
        %1092 = vmatpush2.msra.mxu0 0.0
        %1093 = vmatprep.subr.mxu0 0.0
        %1094 = vmatpush2.msra.mxu0 0.0
        %1095 = vmatprep.subr.mxu0 0.0
        %1096 = vmatpush2.msra.mxu0 0.0
        %1097 = vmatprep.subr.mxu0 0.0
        %1098 = vmatpush2.msra.mxu0 0.0
        %1099 = vmatprep.mubr.f32.mxu0 0.0
        %1100 = vmatmul.mubr.f32.gmra.mxu0 %v1033
        %v1101 = vpop.f32.mrf.mxu0
        %v1102 = vadd.f32 0.0, %v1101
        %v1103 = vpop.f32.mrf.mxu0
        %1104 = vdwg.mxu0
        %1105 = vrot.lane.b32.xlu0 %v515, 56
        %v1106 = vpop.permute.xlu0 %1105
        %v1109 = vsel %vm525, %v1028, 0
        %1111 = vmatprep.subr.mxu0 0.0
        %1112 = vmatpush1.msra.mxu0 0.0
        %1113 = vmatprep.subr.mxu0 0.0
        %1114 = vmatpush1.msra.mxu0 0.0
        %1115 = vmatprep.subr.mxu0 0.0
        %1116 = vmatpush1.msra.mxu0 0.0
        %1117 = vmatprep.subr.mxu0 0.0
        %1118 = vmatpush1.msra.mxu0 0.0
        %1119 = vmatprep.subr.mxu0 0.0
        %1120 = vmatpush1.msra.mxu0 0.0
        %1121 = vmatprep.subr.mxu0 0.0
        %1122 = vmatpush1.msra.mxu0 0.0
        %1123 = vmatprep.subr.mxu0 0.0
        %1124 = vmatpush1.msra.mxu0 0.0
        %1125 = vmatprep.subr.mxu0 0.0
        %1126 = vmatpush1.msra.mxu0 0.0
        %1127 = vmatprep.subr.mxu0 0.0
        %1128 = vmatpush1.msra.mxu0 0.0
        %1129 = vmatprep.subr.mxu0 0.0
        %1130 = vmatpush1.msra.mxu0 0.0
        %1131 = vmatprep.subr.mxu0 0.0
        %1132 = vmatpush1.msra.mxu0 0.0
        %1133 = vmatprep.subr.mxu0 0.0
        %1134 = vmatpush1.msra.mxu0 0.0
        %1135 = vmatprep.subr.mxu0 0.0
        %1136 = vmatpush1.msra.mxu0 0.0
        %1137 = vmatprep.subr.mxu0 0.0
        %1138 = vmatpush1.msra.mxu0 0.0
        %1139 = vmatprep.subr.mxu0 0.0
        %1140 = vmatpush1.msra.mxu0 0.0
        %1141 = vmatprep.subr.mxu0 0.0
        %1142 = vmatpush1.msra.mxu0 %v1106
        %1143 = vmatprep.subr.mxu0 0.0
        %1144 = vmatpush2.msra.mxu0 0.0
        %1145 = vmatprep.subr.mxu0 0.0
        %1146 = vmatpush2.msra.mxu0 0.0
        %1147 = vmatprep.subr.mxu0 0.0
        %1148 = vmatpush2.msra.mxu0 0.0
        %1149 = vmatprep.subr.mxu0 0.0
        %1150 = vmatpush2.msra.mxu0 0.0
        %1151 = vmatprep.subr.mxu0 0.0
        %1152 = vmatpush2.msra.mxu0 0.0
        %1153 = vmatprep.subr.mxu0 0.0
        %1154 = vmatpush2.msra.mxu0 0.0
        %1155 = vmatprep.subr.mxu0 0.0
        %1156 = vmatpush2.msra.mxu0 0.0
        %1157 = vmatprep.subr.mxu0 0.0
        %1158 = vmatpush2.msra.mxu0 0.0
        %1159 = vmatprep.subr.mxu0 0.0
        %1160 = vmatpush2.msra.mxu0 0.0
        %1161 = vmatprep.subr.mxu0 0.0
        %1162 = vmatpush2.msra.mxu0 0.0
        %1163 = vmatprep.subr.mxu0 0.0
        %1164 = vmatpush2.msra.mxu0 0.0
        %1165 = vmatprep.subr.mxu0 0.0
        %1166 = vmatpush2.msra.mxu0 0.0
        %1167 = vmatprep.subr.mxu0 0.0
        %1168 = vmatpush2.msra.mxu0 0.0
        %1169 = vmatprep.subr.mxu0 0.0
        %1170 = vmatpush2.msra.mxu0 0.0
        %1171 = vmatprep.subr.mxu0 0.0
        %1172 = vmatpush2.msra.mxu0 0.0
        %1173 = vmatprep.subr.mxu0 0.0
        %1174 = vmatpush2.msra.mxu0 0.0
        %1175 = vmatprep.mubr.f32.mxu0 0.0
        %1176 = vmatmul.mubr.f32.gmra.mxu0 %v1109
        %v1177 = vpop.f32.mrf.mxu0
        %v1178 = vadd.f32 0.0, %v1177
        %v1179 = vpop.f32.mrf.mxu0
        %1180 = vdwg.mxu0
        %v1182 = vsel %vm525, %v1102, 0
        %v1185 = vsel %vm525, %v1178, 0
        %1187 = vmatprep.subr.mxu0 0.0
        %1188 = vmatpush1.msra.mxu0 0.0
        %1189 = vmatprep.subr.mxu0 0.0
        %1190 = vmatpush1.msra.mxu0 0.0
        %1191 = vmatprep.subr.mxu0 0.0
        %1192 = vmatpush1.msra.mxu0 0.0
        %1193 = vmatprep.subr.mxu0 0.0
        %1194 = vmatpush1.msra.mxu0 0.0
        %1195 = vmatprep.subr.mxu0 0.0
        %1196 = vmatpush1.msra.mxu0 0.0
        %1197 = vmatprep.subr.mxu0 0.0
        %1198 = vmatpush1.msra.mxu0 0.0
        %1199 = vmatprep.subr.mxu0 0.0
        %1200 = vmatpush1.msra.mxu0 0.0
        %1201 = vmatprep.subr.mxu0 0.0
        %1202 = vmatpush1.msra.mxu0 0.0
        %1203 = vmatprep.subr.mxu0 0.0
        %1204 = vmatpush1.msra.mxu0 0.0
        %1205 = vmatprep.subr.mxu0 0.0
        %1206 = vmatpush1.msra.mxu0 0.0
        %1207 = vmatprep.subr.mxu0 0.0
        %1208 = vmatpush1.msra.mxu0 0.0
        %1209 = vmatprep.subr.mxu0 0.0
        %1210 = vmatpush1.msra.mxu0 0.0
        %1211 = vmatprep.subr.mxu0 0.0
        %1212 = vmatpush1.msra.mxu0 0.0
        %1213 = vmatprep.subr.mxu0 0.0
        %1214 = vmatpush1.msra.mxu0 0.0
        %1215 = vmatprep.subr.mxu0 0.0
        %1216 = vmatpush1.msra.mxu0 0.0
        %1217 = vmatprep.subr.mxu0 0.0
        %1218 = vmatpush1.msra.mxu0 %v519
        %1219 = vmatprep.subr.mxu0 0.0
        %1220 = vmatpush2.msra.mxu0 0.0
        %1221 = vmatprep.subr.mxu0 0.0
        %1222 = vmatpush2.msra.mxu0 0.0
        %1223 = vmatprep.subr.mxu0 0.0
        %1224 = vmatpush2.msra.mxu0 0.0
        %1225 = vmatprep.subr.mxu0 0.0
        %1226 = vmatpush2.msra.mxu0 0.0
        %1227 = vmatprep.subr.mxu0 0.0
        %1228 = vmatpush2.msra.mxu0 0.0
        %1229 = vmatprep.subr.mxu0 0.0
        %1230 = vmatpush2.msra.mxu0 0.0
        %1231 = vmatprep.subr.mxu0 0.0
        %1232 = vmatpush2.msra.mxu0 0.0
        %1233 = vmatprep.subr.mxu0 0.0
        %1234 = vmatpush2.msra.mxu0 0.0
        %1235 = vmatprep.subr.mxu0 0.0
        %1236 = vmatpush2.msra.mxu0 0.0
        %1237 = vmatprep.subr.mxu0 0.0
        %1238 = vmatpush2.msra.mxu0 0.0
        %1239 = vmatprep.subr.mxu0 0.0
        %1240 = vmatpush2.msra.mxu0 0.0
        %1241 = vmatprep.subr.mxu0 0.0
        %1242 = vmatpush2.msra.mxu0 0.0
        %1243 = vmatprep.subr.mxu0 0.0
        %1244 = vmatpush2.msra.mxu0 0.0
        %1245 = vmatprep.subr.mxu0 0.0
        %1246 = vmatpush2.msra.mxu0 0.0
        %1247 = vmatprep.subr.mxu0 0.0
        %1248 = vmatpush2.msra.mxu0 0.0
        %1249 = vmatprep.subr.mxu0 0.0
        %1250 = vmatpush2.msra.mxu0 0.0
        %1251 = vmatprep.mubr.f32.mxu0 0.0
        %1252 = vmatmul.mubr.f32.gmra.mxu0 %v1182
        %v1253 = vpop.f32.mrf.mxu0
        %v1254 = vadd.f32 0.0, %v1253
        %v1255 = vpop.f32.mrf.mxu0
        %1256 = vmatprep.mubr.f32.mxu0 0.0
        %1257 = vmatmul.mubr.f32.gmra.mxu0 %v1185
        %v1258 = vpop.f32.mrf.mxu0
        %v1259 = vadd.f32 0.0, %v1258
        %v1260 = vpop.f32.mrf.mxu0
        %1261 = vdwg.mxu0
        %v1263 = vsel %vm525, %v772, 0
        %v1266 = vsel %vm525, %v848, 0
        %1268 = vmatprep.subr.mxu0 0.0
        %1269 = vmatpush1.msra.mxu0 0.0
        %1270 = vmatprep.subr.mxu0 0.0
        %1271 = vmatpush1.msra.mxu0 0.0
        %1272 = vmatprep.subr.mxu0 0.0
        %1273 = vmatpush1.msra.mxu0 0.0
        %1274 = vmatprep.subr.mxu0 0.0
        %1275 = vmatpush1.msra.mxu0 0.0
        %1276 = vmatprep.subr.mxu0 0.0
        %1277 = vmatpush1.msra.mxu0 0.0
        %1278 = vmatprep.subr.mxu0 0.0
        %1279 = vmatpush1.msra.mxu0 0.0
        %1280 = vmatprep.subr.mxu0 0.0
        %1281 = vmatpush1.msra.mxu0 0.0
        %1282 = vmatprep.subr.mxu0 0.0
        %1283 = vmatpush1.msra.mxu0 0.0
        %1284 = vmatprep.subr.mxu0 0.0
        %1285 = vmatpush1.msra.mxu0 0.0
        %1286 = vmatprep.subr.mxu0 0.0
        %1287 = vmatpush1.msra.mxu0 0.0
        %1288 = vmatprep.subr.mxu0 0.0
        %1289 = vmatpush1.msra.mxu0 0.0
        %1290 = vmatprep.subr.mxu0 0.0
        %1291 = vmatpush1.msra.mxu0 0.0
        %1292 = vmatprep.subr.mxu0 0.0
        %1293 = vmatpush1.msra.mxu0 0.0
        %1294 = vmatprep.subr.mxu0 0.0
        %1295 = vmatpush1.msra.mxu0 0.0
        %1296 = vmatprep.subr.mxu0 0.0
        %1297 = vmatpush1.msra.mxu0 0.0
        %1298 = vmatprep.subr.mxu0 0.0
        %1299 = vmatpush1.msra.mxu0 %v518
        %1300 = vmatprep.subr.mxu0 0.0
        %1301 = vmatpush2.msra.mxu0 0.0
        %1302 = vmatprep.subr.mxu0 0.0
        %1303 = vmatpush2.msra.mxu0 0.0
        %1304 = vmatprep.subr.mxu0 0.0
        %1305 = vmatpush2.msra.mxu0 0.0
        %1306 = vmatprep.subr.mxu0 0.0
        %1307 = vmatpush2.msra.mxu0 0.0
        %1308 = vmatprep.subr.mxu0 0.0
        %1309 = vmatpush2.msra.mxu0 0.0
        %1310 = vmatprep.subr.mxu0 0.0
        %1311 = vmatpush2.msra.mxu0 0.0
        %1312 = vmatprep.subr.mxu0 0.0
        %1313 = vmatpush2.msra.mxu0 0.0
        %1314 = vmatprep.subr.mxu0 0.0
        %1315 = vmatpush2.msra.mxu0 0.0
        %1316 = vmatprep.subr.mxu0 0.0
        %1317 = vmatpush2.msra.mxu0 0.0
        %1318 = vmatprep.subr.mxu0 0.0
        %1319 = vmatpush2.msra.mxu0 0.0
        %1320 = vmatprep.subr.mxu0 0.0
        %1321 = vmatpush2.msra.mxu0 0.0
        %1322 = vmatprep.subr.mxu0 0.0
        %1323 = vmatpush2.msra.mxu0 0.0
        %1324 = vmatprep.subr.mxu0 0.0
        %1325 = vmatpush2.msra.mxu0 0.0
        %1326 = vmatprep.subr.mxu0 0.0
        %1327 = vmatpush2.msra.mxu0 0.0
        %1328 = vmatprep.subr.mxu0 0.0
        %1329 = vmatpush2.msra.mxu0 0.0
        %1330 = vmatprep.subr.mxu0 0.0
        %1331 = vmatpush2.msra.mxu0 0.0
        %1332 = vmatprep.mubr.f32.mxu0 0.0
        %1333 = vmatmul.mubr.f32.gmra.mxu0 %v1263
        %v1334 = vpop.f32.mrf.mxu0
        %v1335 = vadd.f32 %v1254, %v1334
        %v1336 = vpop.f32.mrf.mxu0
        %1337 = vmatprep.mubr.f32.mxu0 0.0
        %1338 = vmatmul.mubr.f32.gmra.mxu0 %v1266
        %v1339 = vpop.f32.mrf.mxu0
        %v1340 = vadd.f32 %v1259, %v1339
        %v1341 = vpop.f32.mrf.mxu0
        %1342 = vdwg.mxu0
        %1343 = vrot.lane.b32.xlu0 %v510, 112
        %v1344 = vpop.permute.xlu0 %1343
        %1345 = vrot.lane.b32.xlu0 %v510, 80
        %v1346 = vpop.permute.xlu0 %1345
        %v1347 = vsel %vm525, %v1344, 0
        %v1349 = vsel %vm525, %v1346, 0
        %1351 = vmatprep.subr.mxu0 0.0
        %1352 = vmatpush1.xpose.msra.mxu0 0.0
        %1353 = vmatprep.subr.mxu0 0.0
        %1354 = vmatpush1.xpose.msra.mxu0 0.0
        %1355 = vmatprep.subr.mxu0 0.0
        %1356 = vmatpush1.xpose.msra.mxu0 0.0
        %1357 = vmatprep.subr.mxu0 0.0
        %1358 = vmatpush1.xpose.msra.mxu0 0.0
        %1359 = vmatprep.subr.mxu0 0.0
        %1360 = vmatpush1.xpose.msra.mxu0 0.0
        %1361 = vmatprep.subr.mxu0 0.0
        %1362 = vmatpush1.xpose.msra.mxu0 0.0
        %1363 = vmatprep.subr.mxu0 0.0
        %1364 = vmatpush1.xpose.msra.mxu0 0.0
        %1365 = vmatprep.subr.mxu0 0.0
        %1366 = vmatpush1.xpose.msra.mxu0 0.0
        %1367 = vmatprep.subr.mxu0 0.0
        %1368 = vmatpush1.xpose.msra.mxu0 0.0
        %1369 = vmatprep.subr.mxu0 0.0
        %1370 = vmatpush1.xpose.msra.mxu0 0.0
        %1371 = vmatprep.subr.mxu0 0.0
        %1372 = vmatpush1.xpose.msra.mxu0 0.0
        %1373 = vmatprep.subr.mxu0 0.0
        %1374 = vmatpush1.xpose.msra.mxu0 0.0
        %1375 = vmatprep.subr.mxu0 0.0
        %1376 = vmatpush1.xpose.msra.mxu0 0.0
        %1377 = vmatprep.subr.mxu0 0.0
        %1378 = vmatpush1.xpose.msra.mxu0 0.0
        %1379 = vmatprep.subr.mxu0 0.0
        %1380 = vmatpush1.xpose.msra.mxu0 0.0
        %1381 = vmatprep.subr.mxu0 0.0
        %1382 = vmatpush1.xpose.msra.mxu0 %v1349
        %1383 = vmatprep.subr.mxu0 0.0
        %1384 = vmatpush2.xpose.msra.mxu0 0.0
        %1385 = vmatprep.subr.mxu0 0.0
        %1386 = vmatpush2.xpose.msra.mxu0 0.0
        %1387 = vmatprep.subr.mxu0 0.0
        %1388 = vmatpush2.xpose.msra.mxu0 0.0
        %1389 = vmatprep.subr.mxu0 0.0
        %1390 = vmatpush2.xpose.msra.mxu0 0.0
        %1391 = vmatprep.subr.mxu0 0.0
        %1392 = vmatpush2.xpose.msra.mxu0 0.0
        %1393 = vmatprep.subr.mxu0 0.0
        %1394 = vmatpush2.xpose.msra.mxu0 0.0
        %1395 = vmatprep.subr.mxu0 0.0
        %1396 = vmatpush2.xpose.msra.mxu0 0.0
        %1397 = vmatprep.subr.mxu0 0.0
        %1398 = vmatpush2.xpose.msra.mxu0 0.0
        %1399 = vmatprep.subr.mxu0 0.0
        %1400 = vmatpush2.xpose.msra.mxu0 0.0
        %1401 = vmatprep.subr.mxu0 0.0
        %1402 = vmatpush2.xpose.msra.mxu0 0.0
        %1403 = vmatprep.subr.mxu0 0.0
        %1404 = vmatpush2.xpose.msra.mxu0 0.0
        %1405 = vmatprep.subr.mxu0 0.0
        %1406 = vmatpush2.xpose.msra.mxu0 0.0
        %1407 = vmatprep.subr.mxu0 0.0
        %1408 = vmatpush2.xpose.msra.mxu0 0.0
        %1409 = vmatprep.subr.mxu0 0.0
        %1410 = vmatpush2.xpose.msra.mxu0 0.0
        %1411 = vmatprep.subr.mxu0 0.0
        %1412 = vmatpush2.xpose.msra.mxu0 0.0
        %1413 = vmatprep.subr.mxu0 0.0
        %1414 = vmatpush2.xpose.msra.mxu0 0.0
        %1415 = vmatprep.mubr.f32.mxu0 0.0
        %1416 = vmatmul.mubr.f32.gmra.mxu0 %v1347
        %v1417 = vpop.f32.mrf.mxu0
        %v1418 = vadd.f32 0.0, %v1417
        %v1419 = vpop.f32.mrf.mxu0
        %1420 = vdwg.mxu0
        %1421 = vrot.lane.b32.xlu0 %v515, 112
        %v1422 = vpop.permute.xlu0 %1421
        %1423 = vrot.lane.b32.xlu0 %v515, 80
        %v1424 = vpop.permute.xlu0 %1423
        %v1425 = vsel %vm525, %v1422, 0
        %v1427 = vsel %vm525, %v1424, 0
        %1429 = vmatprep.subr.mxu0 0.0
        %1430 = vmatpush1.xpose.msra.mxu0 0.0
        %1431 = vmatprep.subr.mxu0 0.0
        %1432 = vmatpush1.xpose.msra.mxu0 0.0
        %1433 = vmatprep.subr.mxu0 0.0
        %1434 = vmatpush1.xpose.msra.mxu0 0.0
        %1435 = vmatprep.subr.mxu0 0.0
        %1436 = vmatpush1.xpose.msra.mxu0 0.0
        %1437 = vmatprep.subr.mxu0 0.0
        %1438 = vmatpush1.xpose.msra.mxu0 0.0
        %1439 = vmatprep.subr.mxu0 0.0
        %1440 = vmatpush1.xpose.msra.mxu0 0.0
        %1441 = vmatprep.subr.mxu0 0.0
        %1442 = vmatpush1.xpose.msra.mxu0 0.0
        %1443 = vmatprep.subr.mxu0 0.0
        %1444 = vmatpush1.xpose.msra.mxu0 0.0
        %1445 = vmatprep.subr.mxu0 0.0
        %1446 = vmatpush1.xpose.msra.mxu0 0.0
        %1447 = vmatprep.subr.mxu0 0.0
        %1448 = vmatpush1.xpose.msra.mxu0 0.0
        %1449 = vmatprep.subr.mxu0 0.0
        %1450 = vmatpush1.xpose.msra.mxu0 0.0
        %1451 = vmatprep.subr.mxu0 0.0
        %1452 = vmatpush1.xpose.msra.mxu0 0.0
        %1453 = vmatprep.subr.mxu0 0.0
        %1454 = vmatpush1.xpose.msra.mxu0 0.0
        %1455 = vmatprep.subr.mxu0 0.0
        %1456 = vmatpush1.xpose.msra.mxu0 0.0
        %1457 = vmatprep.subr.mxu0 0.0
        %1458 = vmatpush1.xpose.msra.mxu0 0.0
        %1459 = vmatprep.subr.mxu0 0.0
        %1460 = vmatpush1.xpose.msra.mxu0 %v1427
        %1461 = vmatprep.subr.mxu0 0.0
        %1462 = vmatpush2.xpose.msra.mxu0 0.0
        %1463 = vmatprep.subr.mxu0 0.0
        %1464 = vmatpush2.xpose.msra.mxu0 0.0
        %1465 = vmatprep.subr.mxu0 0.0
        %1466 = vmatpush2.xpose.msra.mxu0 0.0
        %1467 = vmatprep.subr.mxu0 0.0
        %1468 = vmatpush2.xpose.msra.mxu0 0.0
        %1469 = vmatprep.subr.mxu0 0.0
        %1470 = vmatpush2.xpose.msra.mxu0 0.0
        %1471 = vmatprep.subr.mxu0 0.0
        %1472 = vmatpush2.xpose.msra.mxu0 0.0
        %1473 = vmatprep.subr.mxu0 0.0
        %1474 = vmatpush2.xpose.msra.mxu0 0.0
        %1475 = vmatprep.subr.mxu0 0.0
        %1476 = vmatpush2.xpose.msra.mxu0 0.0
        %1477 = vmatprep.subr.mxu0 0.0
        %1478 = vmatpush2.xpose.msra.mxu0 0.0
        %1479 = vmatprep.subr.mxu0 0.0
        %1480 = vmatpush2.xpose.msra.mxu0 0.0
        %1481 = vmatprep.subr.mxu0 0.0
        %1482 = vmatpush2.xpose.msra.mxu0 0.0
        %1483 = vmatprep.subr.mxu0 0.0
        %1484 = vmatpush2.xpose.msra.mxu0 0.0
        %1485 = vmatprep.subr.mxu0 0.0
        %1486 = vmatpush2.xpose.msra.mxu0 0.0
        %1487 = vmatprep.subr.mxu0 0.0
        %1488 = vmatpush2.xpose.msra.mxu0 0.0
        %1489 = vmatprep.subr.mxu0 0.0
        %1490 = vmatpush2.xpose.msra.mxu0 0.0
        %1491 = vmatprep.subr.mxu0 0.0
        %1492 = vmatpush2.xpose.msra.mxu0 0.0
        %1493 = vmatprep.mubr.f32.mxu0 0.0
        %1494 = vmatmul.mubr.f32.gmra.mxu0 %v1425
        %v1495 = vpop.f32.mrf.mxu0
        %v1496 = vadd.f32 0.0, %v1495
        %v1497 = vpop.f32.mrf.mxu0
        %1498 = vdwg.mxu0
        %v1499 = vsel %vm525, %v1418, -inf
        %1500 = vmax.xlane.f32.xlu0 %v1499
        %v1501 = vpop.xlane.xlu0 %1500
        %v1502 = vsel %vm525, %v1496, -inf
        %1503 = vmax.xlane.f32.xlu0 %v1502
        %v1504 = vpop.xlane.xlu0 %1503
        %v1505 = vsub.f32 %v1418, %v1501
        %v1506 = vsub.f32 %v1496, %v1504
        %v1507 = vmul.f32 %v1505, 1.442695
        %v1508 = vpow.pop %v1507
        %v1509 = vmul.f32 %v1506, 1.442695
        %v1510 = vpow.pop %v1509
        %v1511 = vsel %vm525, %v1508, 0.0
        %1512 = vadd.xlane.f32.xlu0 %v1511
        %v1513 = vpop.xlane.xlu0 %1512
        %v1514 = vsel %vm525, %v1510, 0.0
        %1515 = vadd.xlane.f32.xlu0 %v1514
        %v1516 = vpop.xlane.xlu0 %1515
        %v1517 = vrcp.pop %v1513
        %v1518 = vrcp.pop %v1516
        %v1519 = vmul.f32 %v1508, %v1517
        %v1520 = vmul.f32 %v1510, %v1518
        %1521 = vrot.lane.b32.xlu0 %v510, 48
        %v1522 = vpop.permute.xlu0 %1521
        %v1525 = vsel %vm525, %v1519, 0
        %1527 = vmatprep.subr.mxu0 0.0
        %1528 = vmatpush1.msra.mxu0 0.0
        %1529 = vmatprep.subr.mxu0 0.0
        %1530 = vmatpush1.msra.mxu0 0.0
        %1531 = vmatprep.subr.mxu0 0.0
        %1532 = vmatpush1.msra.mxu0 0.0
        %1533 = vmatprep.subr.mxu0 0.0
        %1534 = vmatpush1.msra.mxu0 0.0
        %1535 = vmatprep.subr.mxu0 0.0
        %1536 = vmatpush1.msra.mxu0 0.0
        %1537 = vmatprep.subr.mxu0 0.0
        %1538 = vmatpush1.msra.mxu0 0.0
        %1539 = vmatprep.subr.mxu0 0.0
        %1540 = vmatpush1.msra.mxu0 0.0
        %1541 = vmatprep.subr.mxu0 0.0
        %1542 = vmatpush1.msra.mxu0 0.0
        %1543 = vmatprep.subr.mxu0 0.0
        %1544 = vmatpush1.msra.mxu0 0.0
        %1545 = vmatprep.subr.mxu0 0.0
        %1546 = vmatpush1.msra.mxu0 0.0
        %1547 = vmatprep.subr.mxu0 0.0
        %1548 = vmatpush1.msra.mxu0 0.0
        %1549 = vmatprep.subr.mxu0 0.0
        %1550 = vmatpush1.msra.mxu0 0.0
        %1551 = vmatprep.subr.mxu0 0.0
        %1552 = vmatpush1.msra.mxu0 0.0
        %1553 = vmatprep.subr.mxu0 0.0
        %1554 = vmatpush1.msra.mxu0 0.0
        %1555 = vmatprep.subr.mxu0 0.0
        %1556 = vmatpush1.msra.mxu0 0.0
        %1557 = vmatprep.subr.mxu0 0.0
        %1558 = vmatpush1.msra.mxu0 %v1522
        %1559 = vmatprep.subr.mxu0 0.0
        %1560 = vmatpush2.msra.mxu0 0.0
        %1561 = vmatprep.subr.mxu0 0.0
        %1562 = vmatpush2.msra.mxu0 0.0
        %1563 = vmatprep.subr.mxu0 0.0
        %1564 = vmatpush2.msra.mxu0 0.0
        %1565 = vmatprep.subr.mxu0 0.0
        %1566 = vmatpush2.msra.mxu0 0.0
        %1567 = vmatprep.subr.mxu0 0.0
        %1568 = vmatpush2.msra.mxu0 0.0
        %1569 = vmatprep.subr.mxu0 0.0
        %1570 = vmatpush2.msra.mxu0 0.0
        %1571 = vmatprep.subr.mxu0 0.0
        %1572 = vmatpush2.msra.mxu0 0.0
        %1573 = vmatprep.subr.mxu0 0.0
        %1574 = vmatpush2.msra.mxu0 0.0
        %1575 = vmatprep.subr.mxu0 0.0
        %1576 = vmatpush2.msra.mxu0 0.0
        %1577 = vmatprep.subr.mxu0 0.0
        %1578 = vmatpush2.msra.mxu0 0.0
        %1579 = vmatprep.subr.mxu0 0.0
        %1580 = vmatpush2.msra.mxu0 0.0
        %1581 = vmatprep.subr.mxu0 0.0
        %1582 = vmatpush2.msra.mxu0 0.0
        %1583 = vmatprep.subr.mxu0 0.0
        %1584 = vmatpush2.msra.mxu0 0.0
        %1585 = vmatprep.subr.mxu0 0.0
        %1586 = vmatpush2.msra.mxu0 0.0
        %1587 = vmatprep.subr.mxu0 0.0
        %1588 = vmatpush2.msra.mxu0 0.0
        %1589 = vmatprep.subr.mxu0 0.0
        %1590 = vmatpush2.msra.mxu0 0.0
        %1591 = vmatprep.mubr.f32.mxu0 0.0
        %1592 = vmatmul.mubr.f32.gmra.mxu0 %v1525
        %v1593 = vpop.f32.mrf.mxu0
        %v1594 = vadd.f32 0.0, %v1593
        %v1595 = vpop.f32.mrf.mxu0
        %1596 = vdwg.mxu0
        %1597 = vrot.lane.b32.xlu0 %v515, 48
        %v1598 = vpop.permute.xlu0 %1597
        %v1601 = vsel %vm525, %v1520, 0
        %1603 = vmatprep.subr.mxu0 0.0
        %1604 = vmatpush1.msra.mxu0 0.0
        %1605 = vmatprep.subr.mxu0 0.0
        %1606 = vmatpush1.msra.mxu0 0.0
        %1607 = vmatprep.subr.mxu0 0.0
        %1608 = vmatpush1.msra.mxu0 0.0
        %1609 = vmatprep.subr.mxu0 0.0
        %1610 = vmatpush1.msra.mxu0 0.0
        %1611 = vmatprep.subr.mxu0 0.0
        %1612 = vmatpush1.msra.mxu0 0.0
        %1613 = vmatprep.subr.mxu0 0.0
        %1614 = vmatpush1.msra.mxu0 0.0
        %1615 = vmatprep.subr.mxu0 0.0
        %1616 = vmatpush1.msra.mxu0 0.0
        %1617 = vmatprep.subr.mxu0 0.0
        %1618 = vmatpush1.msra.mxu0 0.0
        %1619 = vmatprep.subr.mxu0 0.0
        %1620 = vmatpush1.msra.mxu0 0.0
        %1621 = vmatprep.subr.mxu0 0.0
        %1622 = vmatpush1.msra.mxu0 0.0
        %1623 = vmatprep.subr.mxu0 0.0
        %1624 = vmatpush1.msra.mxu0 0.0
        %1625 = vmatprep.subr.mxu0 0.0
        %1626 = vmatpush1.msra.mxu0 0.0
        %1627 = vmatprep.subr.mxu0 0.0
        %1628 = vmatpush1.msra.mxu0 0.0
        %1629 = vmatprep.subr.mxu0 0.0
        %1630 = vmatpush1.msra.mxu0 0.0
        %1631 = vmatprep.subr.mxu0 0.0
        %1632 = vmatpush1.msra.mxu0 0.0
        %1633 = vmatprep.subr.mxu0 0.0
        %1634 = vmatpush1.msra.mxu0 %v1598
        %1635 = vmatprep.subr.mxu0 0.0
        %1636 = vmatpush2.msra.mxu0 0.0
        %1637 = vmatprep.subr.mxu0 0.0
        %1638 = vmatpush2.msra.mxu0 0.0
        %1639 = vmatprep.subr.mxu0 0.0
        %1640 = vmatpush2.msra.mxu0 0.0
        %1641 = vmatprep.subr.mxu0 0.0
        %1642 = vmatpush2.msra.mxu0 0.0
        %1643 = vmatprep.subr.mxu0 0.0
        %1644 = vmatpush2.msra.mxu0 0.0
        %1645 = vmatprep.subr.mxu0 0.0
        %1646 = vmatpush2.msra.mxu0 0.0
        %1647 = vmatprep.subr.mxu0 0.0
        %1648 = vmatpush2.msra.mxu0 0.0
        %1649 = vmatprep.subr.mxu0 0.0
        %1650 = vmatpush2.msra.mxu0 0.0
        %1651 = vmatprep.subr.mxu0 0.0
        %1652 = vmatpush2.msra.mxu0 0.0
        %1653 = vmatprep.subr.mxu0 0.0
        %1654 = vmatpush2.msra.mxu0 0.0
        %1655 = vmatprep.subr.mxu0 0.0
        %1656 = vmatpush2.msra.mxu0 0.0
        %1657 = vmatprep.subr.mxu0 0.0
        %1658 = vmatpush2.msra.mxu0 0.0
        %1659 = vmatprep.subr.mxu0 0.0
        %1660 = vmatpush2.msra.mxu0 0.0
        %1661 = vmatprep.subr.mxu0 0.0
        %1662 = vmatpush2.msra.mxu0 0.0
        %1663 = vmatprep.subr.mxu0 0.0
        %1664 = vmatpush2.msra.mxu0 0.0
        %1665 = vmatprep.subr.mxu0 0.0
        %1666 = vmatpush2.msra.mxu0 0.0
        %1667 = vmatprep.mubr.f32.mxu0 0.0
        %1668 = vmatmul.mubr.f32.gmra.mxu0 %v1601
        %v1669 = vpop.f32.mrf.mxu0
        %v1670 = vadd.f32 0.0, %v1669
        %v1671 = vpop.f32.mrf.mxu0
        %1672 = vdwg.mxu0
        %v1674 = vsel %vm525, %v1594, 0
        %v1677 = vsel %vm525, %v1670, 0
        %1679 = vmatprep.subr.mxu0 0.0
        %1680 = vmatpush1.msra.mxu0 0.0
        %1681 = vmatprep.subr.mxu0 0.0
        %1682 = vmatpush1.msra.mxu0 0.0
        %1683 = vmatprep.subr.mxu0 0.0
        %1684 = vmatpush1.msra.mxu0 0.0
        %1685 = vmatprep.subr.mxu0 0.0
        %1686 = vmatpush1.msra.mxu0 0.0
        %1687 = vmatprep.subr.mxu0 0.0
        %1688 = vmatpush1.msra.mxu0 0.0
        %1689 = vmatprep.subr.mxu0 0.0
        %1690 = vmatpush1.msra.mxu0 0.0
        %1691 = vmatprep.subr.mxu0 0.0
        %1692 = vmatpush1.msra.mxu0 0.0
        %1693 = vmatprep.subr.mxu0 0.0
        %1694 = vmatpush1.msra.mxu0 0.0
        %1695 = vmatprep.subr.mxu0 0.0
        %1696 = vmatpush1.msra.mxu0 0.0
        %1697 = vmatprep.subr.mxu0 0.0
        %1698 = vmatpush1.msra.mxu0 0.0
        %1699 = vmatprep.subr.mxu0 0.0
        %1700 = vmatpush1.msra.mxu0 0.0
        %1701 = vmatprep.subr.mxu0 0.0
        %1702 = vmatpush1.msra.mxu0 0.0
        %1703 = vmatprep.subr.mxu0 0.0
        %1704 = vmatpush1.msra.mxu0 0.0
        %1705 = vmatprep.subr.mxu0 0.0
        %1706 = vmatpush1.msra.mxu0 0.0
        %1707 = vmatprep.subr.mxu0 0.0
        %1708 = vmatpush1.msra.mxu0 0.0
        %1709 = vmatprep.subr.mxu0 0.0
        %1710 = vmatpush1.msra.mxu0 %v520
        %1711 = vmatprep.subr.mxu0 0.0
        %1712 = vmatpush2.msra.mxu0 0.0
        %1713 = vmatprep.subr.mxu0 0.0
        %1714 = vmatpush2.msra.mxu0 0.0
        %1715 = vmatprep.subr.mxu0 0.0
        %1716 = vmatpush2.msra.mxu0 0.0
        %1717 = vmatprep.subr.mxu0 0.0
        %1718 = vmatpush2.msra.mxu0 0.0
        %1719 = vmatprep.subr.mxu0 0.0
        %1720 = vmatpush2.msra.mxu0 0.0
        %1721 = vmatprep.subr.mxu0 0.0
        %1722 = vmatpush2.msra.mxu0 0.0
        %1723 = vmatprep.subr.mxu0 0.0
        %1724 = vmatpush2.msra.mxu0 0.0
        %1725 = vmatprep.subr.mxu0 0.0
        %1726 = vmatpush2.msra.mxu0 0.0
        %1727 = vmatprep.subr.mxu0 0.0
        %1728 = vmatpush2.msra.mxu0 0.0
        %1729 = vmatprep.subr.mxu0 0.0
        %1730 = vmatpush2.msra.mxu0 0.0
        %1731 = vmatprep.subr.mxu0 0.0
        %1732 = vmatpush2.msra.mxu0 0.0
        %1733 = vmatprep.subr.mxu0 0.0
        %1734 = vmatpush2.msra.mxu0 0.0
        %1735 = vmatprep.subr.mxu0 0.0
        %1736 = vmatpush2.msra.mxu0 0.0
        %1737 = vmatprep.subr.mxu0 0.0
        %1738 = vmatpush2.msra.mxu0 0.0
        %1739 = vmatprep.subr.mxu0 0.0
        %1740 = vmatpush2.msra.mxu0 0.0
        %1741 = vmatprep.subr.mxu0 0.0
        %1742 = vmatpush2.msra.mxu0 0.0
        %1743 = vmatprep.mubr.f32.mxu0 0.0
        %1744 = vmatmul.mubr.f32.gmra.mxu0 %v1674
        %v1745 = vpop.f32.mrf.mxu0
        %v1746 = vadd.f32 0.0, %v1745
        %v1747 = vpop.f32.mrf.mxu0
        %1748 = vmatprep.mubr.f32.mxu0 0.0
        %1749 = vmatmul.mubr.f32.gmra.mxu0 %v1677
        %v1750 = vpop.f32.mrf.mxu0
        %v1751 = vadd.f32 0.0, %v1750
        %v1752 = vpop.f32.mrf.mxu0
        %1753 = vdwg.mxu0
        %v1754 = vadd.f32 %v1335, %v1746
        %v1755 = vadd.f32 %v1340, %v1751
        %1756 = vrot.lane.b32.xlu0 %v510, 104
        %v1757 = vpop.permute.xlu0 %1756
        %1758 = vrot.lane.b32.xlu0 %v510, 72
        %v1759 = vpop.permute.xlu0 %1758
        %v1760 = vsel %vm525, %v1757, 0
        %v1762 = vsel %vm525, %v1759, 0
        %1764 = vmatprep.subr.mxu0 0.0
        %1765 = vmatpush1.xpose.msra.mxu0 0.0
        %1766 = vmatprep.subr.mxu0 0.0
        %1767 = vmatpush1.xpose.msra.mxu0 0.0
        %1768 = vmatprep.subr.mxu0 0.0
        %1769 = vmatpush1.xpose.msra.mxu0 0.0
        %1770 = vmatprep.subr.mxu0 0.0
        %1771 = vmatpush1.xpose.msra.mxu0 0.0
        %1772 = vmatprep.subr.mxu0 0.0
        %1773 = vmatpush1.xpose.msra.mxu0 0.0
        %1774 = vmatprep.subr.mxu0 0.0
        %1775 = vmatpush1.xpose.msra.mxu0 0.0
        %1776 = vmatprep.subr.mxu0 0.0
        %1777 = vmatpush1.xpose.msra.mxu0 0.0
        %1778 = vmatprep.subr.mxu0 0.0
        %1779 = vmatpush1.xpose.msra.mxu0 0.0
        %1780 = vmatprep.subr.mxu0 0.0
        %1781 = vmatpush1.xpose.msra.mxu0 0.0
        %1782 = vmatprep.subr.mxu0 0.0
        %1783 = vmatpush1.xpose.msra.mxu0 0.0
        %1784 = vmatprep.subr.mxu0 0.0
        %1785 = vmatpush1.xpose.msra.mxu0 0.0
        %1786 = vmatprep.subr.mxu0 0.0
        %1787 = vmatpush1.xpose.msra.mxu0 0.0
        %1788 = vmatprep.subr.mxu0 0.0
        %1789 = vmatpush1.xpose.msra.mxu0 0.0
        %1790 = vmatprep.subr.mxu0 0.0
        %1791 = vmatpush1.xpose.msra.mxu0 0.0
        %1792 = vmatprep.subr.mxu0 0.0
        %1793 = vmatpush1.xpose.msra.mxu0 0.0
        %1794 = vmatprep.subr.mxu0 0.0
        %1795 = vmatpush1.xpose.msra.mxu0 %v1762
        %1796 = vmatprep.subr.mxu0 0.0
        %1797 = vmatpush2.xpose.msra.mxu0 0.0
        %1798 = vmatprep.subr.mxu0 0.0
        %1799 = vmatpush2.xpose.msra.mxu0 0.0
        %1800 = vmatprep.subr.mxu0 0.0
        %1801 = vmatpush2.xpose.msra.mxu0 0.0
        %1802 = vmatprep.subr.mxu0 0.0
        %1803 = vmatpush2.xpose.msra.mxu0 0.0
        %1804 = vmatprep.subr.mxu0 0.0
        %1805 = vmatpush2.xpose.msra.mxu0 0.0
        %1806 = vmatprep.subr.mxu0 0.0
        %1807 = vmatpush2.xpose.msra.mxu0 0.0
        %1808 = vmatprep.subr.mxu0 0.0
        %1809 = vmatpush2.xpose.msra.mxu0 0.0
        %1810 = vmatprep.subr.mxu0 0.0
        %1811 = vmatpush2.xpose.msra.mxu0 0.0
        %1812 = vmatprep.subr.mxu0 0.0
        %1813 = vmatpush2.xpose.msra.mxu0 0.0
        %1814 = vmatprep.subr.mxu0 0.0
        %1815 = vmatpush2.xpose.msra.mxu0 0.0
        %1816 = vmatprep.subr.mxu0 0.0
        %1817 = vmatpush2.xpose.msra.mxu0 0.0
        %1818 = vmatprep.subr.mxu0 0.0
        %1819 = vmatpush2.xpose.msra.mxu0 0.0
        %1820 = vmatprep.subr.mxu0 0.0
        %1821 = vmatpush2.xpose.msra.mxu0 0.0
        %1822 = vmatprep.subr.mxu0 0.0
        %1823 = vmatpush2.xpose.msra.mxu0 0.0
        %1824 = vmatprep.subr.mxu0 0.0
        %1825 = vmatpush2.xpose.msra.mxu0 0.0
        %1826 = vmatprep.subr.mxu0 0.0
        %1827 = vmatpush2.xpose.msra.mxu0 0.0
        %1828 = vmatprep.mubr.f32.mxu0 0.0
        %1829 = vmatmul.mubr.f32.gmra.mxu0 %v1760
        %v1830 = vpop.f32.mrf.mxu0
        %v1831 = vadd.f32 0.0, %v1830
        %v1832 = vpop.f32.mrf.mxu0
        %1833 = vdwg.mxu0
        %1834 = vrot.lane.b32.xlu0 %v515, 104
        %v1835 = vpop.permute.xlu0 %1834
        %1836 = vrot.lane.b32.xlu0 %v515, 72
        %v1837 = vpop.permute.xlu0 %1836
        %v1838 = vsel %vm525, %v1835, 0
        %v1840 = vsel %vm525, %v1837, 0
        %1842 = vmatprep.subr.mxu0 0.0
        %1843 = vmatpush1.xpose.msra.mxu0 0.0
        %1844 = vmatprep.subr.mxu0 0.0
        %1845 = vmatpush1.xpose.msra.mxu0 0.0
        %1846 = vmatprep.subr.mxu0 0.0
        %1847 = vmatpush1.xpose.msra.mxu0 0.0
        %1848 = vmatprep.subr.mxu0 0.0
        %1849 = vmatpush1.xpose.msra.mxu0 0.0
        %1850 = vmatprep.subr.mxu0 0.0
        %1851 = vmatpush1.xpose.msra.mxu0 0.0
        %1852 = vmatprep.subr.mxu0 0.0
        %1853 = vmatpush1.xpose.msra.mxu0 0.0
        %1854 = vmatprep.subr.mxu0 0.0
        %1855 = vmatpush1.xpose.msra.mxu0 0.0
        %1856 = vmatprep.subr.mxu0 0.0
        %1857 = vmatpush1.xpose.msra.mxu0 0.0
        %1858 = vmatprep.subr.mxu0 0.0
        %1859 = vmatpush1.xpose.msra.mxu0 0.0
        %1860 = vmatprep.subr.mxu0 0.0
        %1861 = vmatpush1.xpose.msra.mxu0 0.0
        %1862 = vmatprep.subr.mxu0 0.0
        %1863 = vmatpush1.xpose.msra.mxu0 0.0
        %1864 = vmatprep.subr.mxu0 0.0
        %1865 = vmatpush1.xpose.msra.mxu0 0.0
        %1866 = vmatprep.subr.mxu0 0.0
        %1867 = vmatpush1.xpose.msra.mxu0 0.0
        %1868 = vmatprep.subr.mxu0 0.0
        %1869 = vmatpush1.xpose.msra.mxu0 0.0
        %1870 = vmatprep.subr.mxu0 0.0
        %1871 = vmatpush1.xpose.msra.mxu0 0.0
        %1872 = vmatprep.subr.mxu0 0.0
        %1873 = vmatpush1.xpose.msra.mxu0 %v1840
        %1874 = vmatprep.subr.mxu0 0.0
        %1875 = vmatpush2.xpose.msra.mxu0 0.0
        %1876 = vmatprep.subr.mxu0 0.0
        %1877 = vmatpush2.xpose.msra.mxu0 0.0
        %1878 = vmatprep.subr.mxu0 0.0
        %1879 = vmatpush2.xpose.msra.mxu0 0.0
        %1880 = vmatprep.subr.mxu0 0.0
        %1881 = vmatpush2.xpose.msra.mxu0 0.0
        %1882 = vmatprep.subr.mxu0 0.0
        %1883 = vmatpush2.xpose.msra.mxu0 0.0
        %1884 = vmatprep.subr.mxu0 0.0
        %1885 = vmatpush2.xpose.msra.mxu0 0.0
        %1886 = vmatprep.subr.mxu0 0.0
        %1887 = vmatpush2.xpose.msra.mxu0 0.0
        %1888 = vmatprep.subr.mxu0 0.0
        %1889 = vmatpush2.xpose.msra.mxu0 0.0
        %1890 = vmatprep.subr.mxu0 0.0
        %1891 = vmatpush2.xpose.msra.mxu0 0.0
        %1892 = vmatprep.subr.mxu0 0.0
        %1893 = vmatpush2.xpose.msra.mxu0 0.0
        %1894 = vmatprep.subr.mxu0 0.0
        %1895 = vmatpush2.xpose.msra.mxu0 0.0
        %1896 = vmatprep.subr.mxu0 0.0
        %1897 = vmatpush2.xpose.msra.mxu0 0.0
        %1898 = vmatprep.subr.mxu0 0.0
        %1899 = vmatpush2.xpose.msra.mxu0 0.0
        %1900 = vmatprep.subr.mxu0 0.0
        %1901 = vmatpush2.xpose.msra.mxu0 0.0
        %1902 = vmatprep.subr.mxu0 0.0
        %1903 = vmatpush2.xpose.msra.mxu0 0.0
        %1904 = vmatprep.subr.mxu0 0.0
        %1905 = vmatpush2.xpose.msra.mxu0 0.0
        %1906 = vmatprep.mubr.f32.mxu0 0.0
        %1907 = vmatmul.mubr.f32.gmra.mxu0 %v1838
        %v1908 = vpop.f32.mrf.mxu0
        %v1909 = vadd.f32 0.0, %v1908
        %v1910 = vpop.f32.mrf.mxu0
        %1911 = vdwg.mxu0
        %v1912 = vsel %vm525, %v1831, -inf
        %1913 = vmax.xlane.f32.xlu0 %v1912
        %v1914 = vpop.xlane.xlu0 %1913
        %v1915 = vsel %vm525, %v1909, -inf
        %1916 = vmax.xlane.f32.xlu0 %v1915
        %v1917 = vpop.xlane.xlu0 %1916
        %v1918 = vsub.f32 %v1831, %v1914
        %v1919 = vsub.f32 %v1909, %v1917
        %v1920 = vmul.f32 %v1918, 1.442695
        %v1921 = vpow.pop %v1920
        %v1922 = vmul.f32 %v1919, 1.442695
        %v1923 = vpow.pop %v1922
        %v1924 = vsel %vm525, %v1921, 0.0
        %1925 = vadd.xlane.f32.xlu0 %v1924
        %v1926 = vpop.xlane.xlu0 %1925
        %v1927 = vsel %vm525, %v1923, 0.0
        %1928 = vadd.xlane.f32.xlu0 %v1927
        %v1929 = vpop.xlane.xlu0 %1928
        %v1930 = vrcp.pop %v1926
        %v1931 = vrcp.pop %v1929
        %v1932 = vmul.f32 %v1921, %v1930
        %v1933 = vmul.f32 %v1923, %v1931
        %1934 = vrot.lane.b32.xlu0 %v510, 40
        %v1935 = vpop.permute.xlu0 %1934
        %v1938 = vsel %vm525, %v1932, 0
        %1940 = vmatprep.subr.mxu0 0.0
        %1941 = vmatpush1.msra.mxu0 0.0
        %1942 = vmatprep.subr.mxu0 0.0
        %1943 = vmatpush1.msra.mxu0 0.0
        %1944 = vmatprep.subr.mxu0 0.0
        %1945 = vmatpush1.msra.mxu0 0.0
        %1946 = vmatprep.subr.mxu0 0.0
        %1947 = vmatpush1.msra.mxu0 0.0
        %1948 = vmatprep.subr.mxu0 0.0
        %1949 = vmatpush1.msra.mxu0 0.0
        %1950 = vmatprep.subr.mxu0 0.0
        %1951 = vmatpush1.msra.mxu0 0.0
        %1952 = vmatprep.subr.mxu0 0.0
        %1953 = vmatpush1.msra.mxu0 0.0
        %1954 = vmatprep.subr.mxu0 0.0
        %1955 = vmatpush1.msra.mxu0 0.0
        %1956 = vmatprep.subr.mxu0 0.0
        %1957 = vmatpush1.msra.mxu0 0.0
        %1958 = vmatprep.subr.mxu0 0.0
        %1959 = vmatpush1.msra.mxu0 0.0
        %1960 = vmatprep.subr.mxu0 0.0
        %1961 = vmatpush1.msra.mxu0 0.0
        %1962 = vmatprep.subr.mxu0 0.0
        %1963 = vmatpush1.msra.mxu0 0.0
        %1964 = vmatprep.subr.mxu0 0.0
        %1965 = vmatpush1.msra.mxu0 0.0
        %1966 = vmatprep.subr.mxu0 0.0
        %1967 = vmatpush1.msra.mxu0 0.0
        %1968 = vmatprep.subr.mxu0 0.0
        %1969 = vmatpush1.msra.mxu0 0.0
        %1970 = vmatprep.subr.mxu0 0.0
        %1971 = vmatpush1.msra.mxu0 %v1935
        %1972 = vmatprep.subr.mxu0 0.0
        %1973 = vmatpush2.msra.mxu0 0.0
        %1974 = vmatprep.subr.mxu0 0.0
        %1975 = vmatpush2.msra.mxu0 0.0
        %1976 = vmatprep.subr.mxu0 0.0
        %1977 = vmatpush2.msra.mxu0 0.0
        %1978 = vmatprep.subr.mxu0 0.0
        %1979 = vmatpush2.msra.mxu0 0.0
        %1980 = vmatprep.subr.mxu0 0.0
        %1981 = vmatpush2.msra.mxu0 0.0
        %1982 = vmatprep.subr.mxu0 0.0
        %1983 = vmatpush2.msra.mxu0 0.0
        %1984 = vmatprep.subr.mxu0 0.0
        %1985 = vmatpush2.msra.mxu0 0.0
        %1986 = vmatprep.subr.mxu0 0.0
        %1987 = vmatpush2.msra.mxu0 0.0
        %1988 = vmatprep.subr.mxu0 0.0
        %1989 = vmatpush2.msra.mxu0 0.0
        %1990 = vmatprep.subr.mxu0 0.0
        %1991 = vmatpush2.msra.mxu0 0.0
        %1992 = vmatprep.subr.mxu0 0.0
        %1993 = vmatpush2.msra.mxu0 0.0
        %1994 = vmatprep.subr.mxu0 0.0
        %1995 = vmatpush2.msra.mxu0 0.0
        %1996 = vmatprep.subr.mxu0 0.0
        %1997 = vmatpush2.msra.mxu0 0.0
        %1998 = vmatprep.subr.mxu0 0.0
        %1999 = vmatpush2.msra.mxu0 0.0
        %2000 = vmatprep.subr.mxu0 0.0
        %2001 = vmatpush2.msra.mxu0 0.0
        %2002 = vmatprep.subr.mxu0 0.0
        %2003 = vmatpush2.msra.mxu0 0.0
        %2004 = vmatprep.mubr.f32.mxu0 0.0
        %2005 = vmatmul.mubr.f32.gmra.mxu0 %v1938
        %v2006 = vpop.f32.mrf.mxu0
        %v2007 = vadd.f32 0.0, %v2006
        %v2008 = vpop.f32.mrf.mxu0
        %2009 = vdwg.mxu0
        %2010 = vrot.lane.b32.xlu0 %v515, 40
        %v2011 = vpop.permute.xlu0 %2010
        %v2014 = vsel %vm525, %v1933, 0
        %2016 = vmatprep.subr.mxu0 0.0
        %2017 = vmatpush1.msra.mxu0 0.0
        %2018 = vmatprep.subr.mxu0 0.0
        %2019 = vmatpush1.msra.mxu0 0.0
        %2020 = vmatprep.subr.mxu0 0.0
        %2021 = vmatpush1.msra.mxu0 0.0
        %2022 = vmatprep.subr.mxu0 0.0
        %2023 = vmatpush1.msra.mxu0 0.0
        %2024 = vmatprep.subr.mxu0 0.0
        %2025 = vmatpush1.msra.mxu0 0.0
        %2026 = vmatprep.subr.mxu0 0.0
        %2027 = vmatpush1.msra.mxu0 0.0
        %2028 = vmatprep.subr.mxu0 0.0
        %2029 = vmatpush1.msra.mxu0 0.0
        %2030 = vmatprep.subr.mxu0 0.0
        %2031 = vmatpush1.msra.mxu0 0.0
        %2032 = vmatprep.subr.mxu0 0.0
        %2033 = vmatpush1.msra.mxu0 0.0
        %2034 = vmatprep.subr.mxu0 0.0
        %2035 = vmatpush1.msra.mxu0 0.0
        %2036 = vmatprep.subr.mxu0 0.0
        %2037 = vmatpush1.msra.mxu0 0.0
        %2038 = vmatprep.subr.mxu0 0.0
        %2039 = vmatpush1.msra.mxu0 0.0
        %2040 = vmatprep.subr.mxu0 0.0
        %2041 = vmatpush1.msra.mxu0 0.0
        %2042 = vmatprep.subr.mxu0 0.0
        %2043 = vmatpush1.msra.mxu0 0.0
        %2044 = vmatprep.subr.mxu0 0.0
        %2045 = vmatpush1.msra.mxu0 0.0
        %2046 = vmatprep.subr.mxu0 0.0
        %2047 = vmatpush1.msra.mxu0 %v2011
        %2048 = vmatprep.subr.mxu0 0.0
        %2049 = vmatpush2.msra.mxu0 0.0
        %2050 = vmatprep.subr.mxu0 0.0
        %2051 = vmatpush2.msra.mxu0 0.0
        %2052 = vmatprep.subr.mxu0 0.0
        %2053 = vmatpush2.msra.mxu0 0.0
        %2054 = vmatprep.subr.mxu0 0.0
        %2055 = vmatpush2.msra.mxu0 0.0
        %2056 = vmatprep.subr.mxu0 0.0
        %2057 = vmatpush2.msra.mxu0 0.0
        %2058 = vmatprep.subr.mxu0 0.0
        %2059 = vmatpush2.msra.mxu0 0.0
        %2060 = vmatprep.subr.mxu0 0.0
        %2061 = vmatpush2.msra.mxu0 0.0
        %2062 = vmatprep.subr.mxu0 0.0
        %2063 = vmatpush2.msra.mxu0 0.0
        %2064 = vmatprep.subr.mxu0 0.0
        %2065 = vmatpush2.msra.mxu0 0.0
        %2066 = vmatprep.subr.mxu0 0.0
        %2067 = vmatpush2.msra.mxu0 0.0
        %2068 = vmatprep.subr.mxu0 0.0
        %2069 = vmatpush2.msra.mxu0 0.0
        %2070 = vmatprep.subr.mxu0 0.0
        %2071 = vmatpush2.msra.mxu0 0.0
        %2072 = vmatprep.subr.mxu0 0.0
        %2073 = vmatpush2.msra.mxu0 0.0
        %2074 = vmatprep.subr.mxu0 0.0
        %2075 = vmatpush2.msra.mxu0 0.0
        %2076 = vmatprep.subr.mxu0 0.0
        %2077 = vmatpush2.msra.mxu0 0.0
        %2078 = vmatprep.subr.mxu0 0.0
        %2079 = vmatpush2.msra.mxu0 0.0
        %2080 = vmatprep.mubr.f32.mxu0 0.0
        %2081 = vmatmul.mubr.f32.gmra.mxu0 %v2014
        %v2082 = vpop.f32.mrf.mxu0
        %v2083 = vadd.f32 0.0, %v2082
        %v2084 = vpop.f32.mrf.mxu0
        %2085 = vdwg.mxu0
        %v2087 = vsel %vm525, %v2007, 0
        %v2090 = vsel %vm525, %v2083, 0
        %2092 = vmatprep.subr.mxu0 0.0
        %2093 = vmatpush1.msra.mxu0 0.0
        %2094 = vmatprep.subr.mxu0 0.0
        %2095 = vmatpush1.msra.mxu0 0.0
        %2096 = vmatprep.subr.mxu0 0.0
        %2097 = vmatpush1.msra.mxu0 0.0
        %2098 = vmatprep.subr.mxu0 0.0
        %2099 = vmatpush1.msra.mxu0 0.0
        %2100 = vmatprep.subr.mxu0 0.0
        %2101 = vmatpush1.msra.mxu0 0.0
        %2102 = vmatprep.subr.mxu0 0.0
        %2103 = vmatpush1.msra.mxu0 0.0
        %2104 = vmatprep.subr.mxu0 0.0
        %2105 = vmatpush1.msra.mxu0 0.0
        %2106 = vmatprep.subr.mxu0 0.0
        %2107 = vmatpush1.msra.mxu0 0.0
        %2108 = vmatprep.subr.mxu0 0.0
        %2109 = vmatpush1.msra.mxu0 0.0
        %2110 = vmatprep.subr.mxu0 0.0
        %2111 = vmatpush1.msra.mxu0 0.0
        %2112 = vmatprep.subr.mxu0 0.0
        %2113 = vmatpush1.msra.mxu0 0.0
        %2114 = vmatprep.subr.mxu0 0.0
        %2115 = vmatpush1.msra.mxu0 0.0
        %2116 = vmatprep.subr.mxu0 0.0
        %2117 = vmatpush1.msra.mxu0 0.0
        %2118 = vmatprep.subr.mxu0 0.0
        %2119 = vmatpush1.msra.mxu0 0.0
        %2120 = vmatprep.subr.mxu0 0.0
        %2121 = vmatpush1.msra.mxu0 0.0
        %2122 = vmatprep.subr.mxu0 0.0
        %2123 = vmatpush1.msra.mxu0 %v521
        %2124 = vmatprep.subr.mxu0 0.0
        %2125 = vmatpush2.msra.mxu0 0.0
        %2126 = vmatprep.subr.mxu0 0.0
        %2127 = vmatpush2.msra.mxu0 0.0
        %2128 = vmatprep.subr.mxu0 0.0
        %2129 = vmatpush2.msra.mxu0 0.0
        %2130 = vmatprep.subr.mxu0 0.0
        %2131 = vmatpush2.msra.mxu0 0.0
        %2132 = vmatprep.subr.mxu0 0.0
        %2133 = vmatpush2.msra.mxu0 0.0
        %2134 = vmatprep.subr.mxu0 0.0
        %2135 = vmatpush2.msra.mxu0 0.0
        %2136 = vmatprep.subr.mxu0 0.0
        %2137 = vmatpush2.msra.mxu0 0.0
        %2138 = vmatprep.subr.mxu0 0.0
        %2139 = vmatpush2.msra.mxu0 0.0
        %2140 = vmatprep.subr.mxu0 0.0
        %2141 = vmatpush2.msra.mxu0 0.0
        %2142 = vmatprep.subr.mxu0 0.0
        %2143 = vmatpush2.msra.mxu0 0.0
        %2144 = vmatprep.subr.mxu0 0.0
        %2145 = vmatpush2.msra.mxu0 0.0
        %2146 = vmatprep.subr.mxu0 0.0
        %2147 = vmatpush2.msra.mxu0 0.0
        %2148 = vmatprep.subr.mxu0 0.0
        %2149 = vmatpush2.msra.mxu0 0.0
        %2150 = vmatprep.subr.mxu0 0.0
        %2151 = vmatpush2.msra.mxu0 0.0
        %2152 = vmatprep.subr.mxu0 0.0
        %2153 = vmatpush2.msra.mxu0 0.0
        %2154 = vmatprep.subr.mxu0 0.0
        %2155 = vmatpush2.msra.mxu0 0.0
        %2156 = vmatprep.mubr.f32.mxu0 0.0
        %2157 = vmatmul.mubr.f32.gmra.mxu0 %v2087
        %v2158 = vpop.f32.mrf.mxu0
        %v2159 = vadd.f32 0.0, %v2158
        %v2160 = vpop.f32.mrf.mxu0
        %2161 = vmatprep.mubr.f32.mxu0 0.0
        %2162 = vmatmul.mubr.f32.gmra.mxu0 %v2090
        %v2163 = vpop.f32.mrf.mxu0
        %v2164 = vadd.f32 0.0, %v2163
        %v2165 = vpop.f32.mrf.mxu0
        %2166 = vdwg.mxu0
        %v2167 = vadd.f32 %v1754, %v2159
        %v2168 = vadd.f32 %v1755, %v2164
        %v2169 = vadd.f32 %v390, %v2167
        %v2170 = vadd.f32 %v391, %v2168
        %v2171 = vlaneseq
        %v2172 = vshrl.u32 %v2171, 7
        %v2173 = vsub.s32 2, %v2172
        %v2174 = vrot.slane %v392, %v2173
        %v2175 = vadd.f32 %v2169, %v2174
        %v2176 = vadd.f32 %v2170, %v2174
        %v2177 = vsel %vm393, %v2175, 0.0
        %2178 = vadd.xlane.f32.xlu0 %v2177
        %v2179 = vpop.xlane.xlu0 %2178
        %v2180 = vsel %vm393, %v2176, 0.0
        %2181 = vadd.xlane.f32.xlu0 %v2180
        %v2182 = vpop.xlane.xlu0 %2181
        %v2183 = vmul.f32 %v2179, %v400
        %v2184 = vmul.f32 %v2182, %v400
        %v2185 = vsub.f32 %v2175, %v2183
        %v2186 = vsub.f32 %v2176, %v2184
        %v2187 = vmul.f32 %v2185, %v2185
        %v2188 = vmul.f32 %v2186, %v2186
        %v2189 = vsel %vm393, %v2187, 0.0
        %2190 = vadd.xlane.f32.xlu0 %v2189
        %v2191 = vpop.xlane.xlu0 %2190
        %v2192 = vsel %vm393, %v2188, 0.0
        %2193 = vadd.xlane.f32.xlu0 %v2192
        %v2194 = vpop.xlane.xlu0 %2193
        %v2195 = vmul.f32 %v2191, %v400
        %v2196 = vmul.f32 %v2194, %v400
        %v2197 = vadd.f32 %v2195, 1e-05
        %v2198 = vadd.f32 %v2196, 1e-05
        %v2199 = vrsqrt.pop %v2197
        %v2200 = vrsqrt.pop %v2198
        %v2201 = vmul.f32 %v2185, %v2199
        %v2202 = vmul.f32 %v2186, %v2200
        %v2203 = vlaneseq
        %v2204 = vshrl.u32 %v2203, 7
        %v2205 = vsub.s32 3, %v2204
        %v2206 = vrot.slane %v392, %v2205
        %v2207 = vmul.f32 %v2201, %v2206
        %v2208 = vmul.f32 %v2202, %v2206
        %v2209 = vlaneseq
        %v2210 = vshrl.u32 %v2209, 7
        %v2211 = vsub.s32 4, %v2210
        %v2212 = vrot.slane %v392, %v2211
        %v2213 = vadd.f32 %v2207, %v2212
        %v2214 = vadd.f32 %v2208, %v2212
        %v2215 = vld [vmem:[%s384] sm:$0xff]
        %v2216 = vld [vmem:[%s384 + $0x8] sm:$0xff]
        %v2217 = vld [vmem:[%s384 + $0x10] sm:$0xff]
        %v2218 = vld [vmem:[%s384 + $0x18] sm:$0xff]
        %v2219 = vlaneseq
        %v2220 = vshrl.u32 %v2219, 7
        %v2221 = vsub.s32 6, %v2220
        %v2222 = vrot.slane %v392, %v2221
        %v2224 = vsel %vm393, %v2213, 0
        %v2227 = vsel %vm393, %v2214, 0
        %2229 = vmatprep.subr.mxu0 0.0
        %2230 = vmatpush1.msra.mxu0 0.0
        %2231 = vmatprep.subr.mxu0 0.0
        %2232 = vmatpush1.msra.mxu0 0.0
        %2233 = vmatprep.subr.mxu0 0.0
        %2234 = vmatpush1.msra.mxu0 0.0
        %2235 = vmatprep.subr.mxu0 0.0
        %2236 = vmatpush1.msra.mxu0 0.0
        %2237 = vmatprep.subr.mxu0 0.0
        %2238 = vmatpush1.msra.mxu0 0.0
        %2239 = vmatprep.subr.mxu0 0.0
        %2240 = vmatpush1.msra.mxu0 0.0
        %2241 = vmatprep.subr.mxu0 0.0
        %2242 = vmatpush1.msra.mxu0 0.0
        %2243 = vmatprep.subr.mxu0 0.0
        %2244 = vmatpush1.msra.mxu0 0.0
        %2245 = vmatprep.subr.mxu0 0.0
        %2246 = vmatpush1.msra.mxu0 0.0
        %2247 = vmatprep.subr.mxu0 0.0
        %2248 = vmatpush1.msra.mxu0 0.0
        %2249 = vmatprep.subr.mxu0 0.0
        %2250 = vmatpush1.msra.mxu0 0.0
        %2251 = vmatprep.subr.mxu0 0.0
        %2252 = vmatpush1.msra.mxu0 0.0
        %2253 = vmatprep.subr.mxu0 0.0
        %2254 = vmatpush1.msra.mxu0 %v2218
        %2255 = vmatprep.subr.mxu0 0.0
        %2256 = vmatpush1.msra.mxu0 %v2217
        %2257 = vmatprep.subr.mxu0 0.0
        %2258 = vmatpush1.msra.mxu0 %v2216
        %2259 = vmatprep.subr.mxu0 0.0
        %2260 = vmatpush1.msra.mxu0 %v2215
        %2261 = vmatprep.subr.mxu0 0.0
        %2262 = vmatpush2.msra.mxu0 0.0
        %2263 = vmatprep.subr.mxu0 0.0
        %2264 = vmatpush2.msra.mxu0 0.0
        %2265 = vmatprep.subr.mxu0 0.0
        %2266 = vmatpush2.msra.mxu0 0.0
        %2267 = vmatprep.subr.mxu0 0.0
        %2268 = vmatpush2.msra.mxu0 0.0
        %2269 = vmatprep.subr.mxu0 0.0
        %2270 = vmatpush2.msra.mxu0 0.0
        %2271 = vmatprep.subr.mxu0 0.0
        %2272 = vmatpush2.msra.mxu0 0.0
        %2273 = vmatprep.subr.mxu0 0.0
        %2274 = vmatpush2.msra.mxu0 0.0
        %2275 = vmatprep.subr.mxu0 0.0
        %2276 = vmatpush2.msra.mxu0 0.0
        %2277 = vmatprep.subr.mxu0 0.0
        %2278 = vmatpush2.msra.mxu0 0.0
        %2279 = vmatprep.subr.mxu0 0.0
        %2280 = vmatpush2.msra.mxu0 0.0
        %2281 = vmatprep.subr.mxu0 0.0
        %2282 = vmatpush2.msra.mxu0 0.0
        %2283 = vmatprep.subr.mxu0 0.0
        %2284 = vmatpush2.msra.mxu0 0.0
        %2285 = vmatprep.subr.mxu0 0.0
        %2286 = vmatpush2.msra.mxu0 0.0
        %2287 = vmatprep.subr.mxu0 0.0
        %2288 = vmatpush2.msra.mxu0 0.0
        %2289 = vmatprep.subr.mxu0 0.0
        %2290 = vmatpush2.msra.mxu0 0.0
        %2291 = vmatprep.subr.mxu0 0.0
        %2292 = vmatpush2.msra.mxu0 0.0
        %2293 = vmatprep.mubr.f32.mxu0 0.0
        %2294 = vmatmul.mubr.f32.gmra.mxu0 %v2224
        %v2295 = vpop.f32.mrf.mxu0
        %v2296 = vadd.f32 %v2222, %v2295
        %v2297 = vpop.f32.mrf.mxu0
        %2298 = vmatprep.mubr.f32.mxu0 0.0
        %2299 = vmatmul.mubr.f32.gmra.mxu0 %v2227
        %v2300 = vpop.f32.mrf.mxu0
        %v2301 = vadd.f32 %v2222, %v2300
        %v2302 = vpop.f32.mrf.mxu0
        %2303 = vdwg.mxu0
        %v2304 = vmul.f32 %v2296, 0.5
        %v2305 = vmul.f32 %v2301, 0.5
        %v2306 = vmul.f32 %v2296, 0.70710677
        %v2307 = vmul.f32 %v2301, 0.70710677
        %v2308 = vand.u32 2147483647, %v2306
        %v2309 = vand.u32 2147483647, %v2307
        %v2310 = vmul.f32 %v2308, 0.3275911
        %v2311 = vmul.f32 %v2309, 0.3275911
        %v2312 = vadd.f32 %v2310, 1.0
        %v2313 = vadd.f32 %v2311, 1.0
        %v2314 = vrcp.pop %v2312
        %v2315 = vmul.f32 1.0, %v2314
        %v2316 = vrcp.pop %v2313
        %v2317 = vmul.f32 1.0, %v2316
        %v2318 = vmul.f32 %v2315, 1.0614054
        %v2319 = vmul.f32 %v2317, 1.0614054
        %v2320 = vadd.f32 %v2318, -1.4531521
        %v2321 = vadd.f32 %v2319, -1.4531521
        %v2322 = vmul.f32 %v2315, %v2320
        %v2323 = vmul.f32 %v2317, %v2321
        %v2324 = vadd.f32 %v2322, 1.4214138
        %v2325 = vadd.f32 %v2323, 1.4214138
        %v2326 = vmul.f32 %v2315, %v2324
        %v2327 = vmul.f32 %v2317, %v2325
        %v2328 = vadd.f32 %v2326, -0.28449672
        %v2329 = vadd.f32 %v2327, -0.28449672
        %v2330 = vmul.f32 %v2315, %v2328
        %v2331 = vmul.f32 %v2317, %v2329
        %v2332 = vadd.f32 %v2330, 0.2548296
        %v2333 = vadd.f32 %v2331, 0.2548296
        %v2334 = vmul.f32 %v2315, %v2332
        %v2335 = vmul.f32 %v2317, %v2333
        %v2336 = vsub.f32 0.0, %v2308
        %v2337 = vsub.f32 0.0, %v2309
        %v2338 = vmul.f32 %v2336, %v2308
        %v2339 = vmul.f32 %v2337, %v2309
        %v2340 = vmul.f32 %v2338, 1.442695
        %v2341 = vpow.pop %v2340
        %v2342 = vmul.f32 %v2339, 1.442695
        %v2343 = vpow.pop %v2342
        %v2344 = vmul.f32 %v2334, %v2341
        %v2345 = vmul.f32 %v2335, %v2343
        %v2346 = vsub.f32 1.0, %v2344
        %v2347 = vsub.f32 1.0, %v2345
        %vm2348 = vcmp.ge.f32.partialorder %v2306, 0.0
        %vm2349 = vcmp.ge.f32.partialorder %v2307, 0.0
        %v2350 = vsub.f32 0.0, %v2346
        %v2351 = vsub.f32 0.0, %v2347
        %v2352 = vsel %vm2348, %v2346, %v2350
        %v2353 = vsel %vm2349, %v2347, %v2351
        %v2354 = vadd.f32 %v2352, 1.0
        %v2355 = vadd.f32 %v2353, 1.0
        %v2356 = vmul.f32 %v2304, %v2354
        %v2357 = vmul.f32 %v2305, %v2355
        %v2358 = vld [vmem:[%s389] sm:$0xff]
        %v2359 = vld [vmem:[%s389 + $0x8] sm:$0xff]
        %v2360 = vld [vmem:[%s389 + $0x10] sm:$0xff]
        %v2361 = vld [vmem:[%s389 + $0x18] sm:$0xff]
        %v2362 = vld [vmem:[%s389 + $0x20] sm:$0xff]
        %v2363 = vld [vmem:[%s389 + $0x28] sm:$0xff]
        %v2364 = vld [vmem:[%s389 + $0x30] sm:$0xff]
        %v2365 = vld [vmem:[%s389 + $0x38] sm:$0xff]
        %v2366 = vlaneseq
        %v2367 = vshrl.u32 %v2366, 7
        %v2368 = vsub.s32 5, %v2367
        %v2369 = vrot.slane %v392, %v2368
        %vm2370 = vcmask 523264
        %v2372 = vsel %vm2370, %v2356, 0
        %v2375 = vsel %vm2370, %v2357, 0
        %2377 = vmatprep.subr.mxu0 0.0
        %2378 = vmatpush1.msra.mxu0 0.0
        %2379 = vmatprep.subr.mxu0 0.0
        %2380 = vmatpush1.msra.mxu0 0.0
        %2381 = vmatprep.subr.mxu0 0.0
        %2382 = vmatpush1.msra.mxu0 0.0
        %2383 = vmatprep.subr.mxu0 0.0
        %2384 = vmatpush1.msra.mxu0 0.0
        %2385 = vmatprep.subr.mxu0 0.0
        %2386 = vmatpush1.msra.mxu0 0.0
        %2387 = vmatprep.subr.mxu0 0.0
        %2388 = vmatpush1.msra.mxu0 0.0
        %2389 = vmatprep.subr.mxu0 0.0
        %2390 = vmatpush1.msra.mxu0 0.0
        %2391 = vmatprep.subr.mxu0 0.0
        %2392 = vmatpush1.msra.mxu0 0.0
        %2393 = vmatprep.subr.mxu0 0.0
        %2394 = vmatpush1.msra.mxu0 %v2365
        %2395 = vmatprep.subr.mxu0 0.0
        %2396 = vmatpush1.msra.mxu0 %v2364
        %2397 = vmatprep.subr.mxu0 0.0
        %2398 = vmatpush1.msra.mxu0 %v2363
        %2399 = vmatprep.subr.mxu0 0.0
        %2400 = vmatpush1.msra.mxu0 %v2362
        %2401 = vmatprep.subr.mxu0 0.0
        %2402 = vmatpush1.msra.mxu0 %v2361
        %2403 = vmatprep.subr.mxu0 0.0
        %2404 = vmatpush1.msra.mxu0 %v2360
        %2405 = vmatprep.subr.mxu0 0.0
        %2406 = vmatpush1.msra.mxu0 %v2359
        %2407 = vmatprep.subr.mxu0 0.0
        %2408 = vmatpush1.msra.mxu0 %v2358
        %2409 = vmatprep.subr.mxu0 0.0
        %2410 = vmatpush2.msra.mxu0 0.0
        %2411 = vmatprep.subr.mxu0 0.0
        %2412 = vmatpush2.msra.mxu0 0.0
        %2413 = vmatprep.subr.mxu0 0.0
        %2414 = vmatpush2.msra.mxu0 0.0
        %2415 = vmatprep.subr.mxu0 0.0
        %2416 = vmatpush2.msra.mxu0 0.0
        %2417 = vmatprep.subr.mxu0 0.0
        %2418 = vmatpush2.msra.mxu0 0.0
        %2419 = vmatprep.subr.mxu0 0.0
        %2420 = vmatpush2.msra.mxu0 0.0
        %2421 = vmatprep.subr.mxu0 0.0
        %2422 = vmatpush2.msra.mxu0 0.0
        %2423 = vmatprep.subr.mxu0 0.0
        %2424 = vmatpush2.msra.mxu0 0.0
        %2425 = vmatprep.subr.mxu0 0.0
        %2426 = vmatpush2.msra.mxu0 0.0
        %2427 = vmatprep.subr.mxu0 0.0
        %2428 = vmatpush2.msra.mxu0 0.0
        %2429 = vmatprep.subr.mxu0 0.0
        %2430 = vmatpush2.msra.mxu0 0.0
        %2431 = vmatprep.subr.mxu0 0.0
        %2432 = vmatpush2.msra.mxu0 0.0
        %2433 = vmatprep.subr.mxu0 0.0
        %2434 = vmatpush2.msra.mxu0 0.0
        %2435 = vmatprep.subr.mxu0 0.0
        %2436 = vmatpush2.msra.mxu0 0.0
        %2437 = vmatprep.subr.mxu0 0.0
        %2438 = vmatpush2.msra.mxu0 0.0
        %2439 = vmatprep.subr.mxu0 0.0
        %2440 = vmatpush2.msra.mxu0 0.0
        %2441 = vmatprep.mubr.f32.mxu0 0.0
        %2442 = vmatmul.mubr.f32.gmra.mxu0 %v2372
        %v2443 = vpop.f32.mrf.mxu0
        %v2444 = vadd.f32 %v2369, %v2443
        %v2445 = vpop.f32.mrf.mxu0
        %2446 = vmatprep.mubr.f32.mxu0 0.0
        %2447 = vmatmul.mubr.f32.gmra.mxu0 %v2375
        %v2448 = vpop.f32.mrf.mxu0
        %v2449 = vadd.f32 %v2369, %v2448
        %v2450 = vpop.f32.mrf.mxu0
        %2451 = vdwg.mxu0
        %v2452 = vadd.f32 %v2175, %v2444
        %v2453 = vadd.f32 %v2176, %v2449
        %s2454 = scalar_lea.vmem %s316, 8 [#allocation5]
        %v2455 = vld [vmem:[%s2454] sm:$0xff]
        %v2456 = vsel %vm393, %v2452, 0.0
        %2457 = vadd.xlane.f32.xlu0 %v2456
        %v2458 = vpop.xlane.xlu0 %2457
        %v2459 = vsel %vm393, %v2453, 0.0
        %2460 = vadd.xlane.f32.xlu0 %v2459
        %v2461 = vpop.xlane.xlu0 %2460
        %v2462 = vmul.f32 %v2458, %v400
        %v2463 = vmul.f32 %v2461, %v400
        %v2464 = vsub.f32 %v2452, %v2462
        %v2465 = vsub.f32 %v2453, %v2463
        %v2466 = vmul.f32 %v2464, %v2464
        %v2467 = vmul.f32 %v2465, %v2465
        %v2468 = vsel %vm393, %v2466, 0.0
        %2469 = vadd.xlane.f32.xlu0 %v2468
        %v2470 = vpop.xlane.xlu0 %2469
        %v2471 = vsel %vm393, %v2467, 0.0
        %2472 = vadd.xlane.f32.xlu0 %v2471
        %v2473 = vpop.xlane.xlu0 %2472
        %v2474 = vmul.f32 %v2470, %v400
        %v2475 = vmul.f32 %v2473, %v400
        %v2476 = vadd.f32 %v2474, 1e-05
        %v2477 = vadd.f32 %v2475, 1e-05
        %v2478 = vrsqrt.pop %v2476
        %v2479 = vrsqrt.pop %v2477
        %v2480 = vmul.f32 %v2464, %v2478
        %v2481 = vmul.f32 %v2465, %v2479
        %v2482 = vlaneseq
        %v2483 = vshrl.u32 %v2482, 7
        %v2484 = vsub.s32 0, %v2483
        %v2485 = vrot.slane %v2455, %v2484
        %v2486 = vmul.f32 %v2480, %v2485
        %v2487 = vmul.f32 %v2481, %v2485
        %v2488 = vlaneseq
        %v2489 = vshrl.u32 %v2488, 7
        %v2490 = vsub.s32 1, %v2489
        %v2491 = vrot.slane %v2455, %v2490
        %v2492 = vadd.f32 %v2486, %v2491
        %v2493 = vadd.f32 %v2487, %v2491
        %s2494 = scalar_lea.vmem %s374, 32
        %v2495 = vld [vmem:[%s2494] sm:$0xff]
        %v2496 = vld [vmem:[%s2494 + $0x8] sm:$0xff]
        %v2497 = vld [vmem:[%s2494 + $0x10] sm:$0xff]
        %v2498 = vld [vmem:[%s2494 + $0x18] sm:$0xff]
        %v2500 = vsel %vm393, %v2492, 0
        %v2503 = vsel %vm393, %v2493, 0
        %2505 = vmatprep.subr.mxu0 0.0
        %2506 = vmatpush1.msra.mxu0 0.0
        %2507 = vmatprep.subr.mxu0 0.0
        %2508 = vmatpush1.msra.mxu0 0.0
        %2509 = vmatprep.subr.mxu0 0.0
        %2510 = vmatpush1.msra.mxu0 0.0
        %2511 = vmatprep.subr.mxu0 0.0
        %2512 = vmatpush1.msra.mxu0 0.0
        %2513 = vmatprep.subr.mxu0 0.0
        %2514 = vmatpush1.msra.mxu0 0.0
        %2515 = vmatprep.subr.mxu0 0.0
        %2516 = vmatpush1.msra.mxu0 0.0
        %2517 = vmatprep.subr.mxu0 0.0
        %2518 = vmatpush1.msra.mxu0 0.0
        %2519 = vmatprep.subr.mxu0 0.0
        %2520 = vmatpush1.msra.mxu0 0.0
        %2521 = vmatprep.subr.mxu0 0.0
        %2522 = vmatpush1.msra.mxu0 0.0
        %2523 = vmatprep.subr.mxu0 0.0
        %2524 = vmatpush1.msra.mxu0 0.0
        %2525 = vmatprep.subr.mxu0 0.0
        %2526 = vmatpush1.msra.mxu0 0.0
        %2527 = vmatprep.subr.mxu0 0.0
        %2528 = vmatpush1.msra.mxu0 0.0
        %2529 = vmatprep.subr.mxu0 0.0
        %2530 = vmatpush1.msra.mxu0 %v2498
        %2531 = vmatprep.subr.mxu0 0.0
        %2532 = vmatpush1.msra.mxu0 %v2497
        %2533 = vmatprep.subr.mxu0 0.0
        %2534 = vmatpush1.msra.mxu0 %v2496
        %2535 = vmatprep.subr.mxu0 0.0
        %2536 = vmatpush1.msra.mxu0 %v2495
        %2537 = vmatprep.subr.mxu0 0.0
        %2538 = vmatpush2.msra.mxu0 0.0
        %2539 = vmatprep.subr.mxu0 0.0
        %2540 = vmatpush2.msra.mxu0 0.0
        %2541 = vmatprep.subr.mxu0 0.0
        %2542 = vmatpush2.msra.mxu0 0.0
        %2543 = vmatprep.subr.mxu0 0.0
        %2544 = vmatpush2.msra.mxu0 0.0
        %2545 = vmatprep.subr.mxu0 0.0
        %2546 = vmatpush2.msra.mxu0 0.0
        %2547 = vmatprep.subr.mxu0 0.0
        %2548 = vmatpush2.msra.mxu0 0.0
        %2549 = vmatprep.subr.mxu0 0.0
        %2550 = vmatpush2.msra.mxu0 0.0
        %2551 = vmatprep.subr.mxu0 0.0
        %2552 = vmatpush2.msra.mxu0 0.0
        %2553 = vmatprep.subr.mxu0 0.0
        %2554 = vmatpush2.msra.mxu0 0.0
        %2555 = vmatprep.subr.mxu0 0.0
        %2556 = vmatpush2.msra.mxu0 0.0
        %2557 = vmatprep.subr.mxu0 0.0
        %2558 = vmatpush2.msra.mxu0 0.0
        %2559 = vmatprep.subr.mxu0 0.0
        %2560 = vmatpush2.msra.mxu0 0.0
        %2561 = vmatprep.subr.mxu0 0.0
        %2562 = vmatpush2.msra.mxu0 0.0
        %2563 = vmatprep.subr.mxu0 0.0
        %2564 = vmatpush2.msra.mxu0 0.0
        %2565 = vmatprep.subr.mxu0 0.0
        %2566 = vmatpush2.msra.mxu0 0.0
        %2567 = vmatprep.subr.mxu0 0.0
        %2568 = vmatpush2.msra.mxu0 0.0
        %2569 = vmatprep.mubr.f32.mxu0 0.0
        %2570 = vmatmul.mubr.f32.gmra.mxu0 %v2500
        %v2571 = vpop.f32.mrf.mxu0
        %v2572 = vadd.f32 0.0, %v2571
        %v2573 = vpop.f32.mrf.mxu0
        %2574 = vmatprep.mubr.f32.mxu0 0.0
        %2575 = vmatmul.mubr.f32.gmra.mxu0 %v2503
        %v2576 = vpop.f32.mrf.mxu0
        %v2577 = vadd.f32 0.0, %v2576
        %v2578 = vpop.f32.mrf.mxu0
        %2579 = vdwg.mxu0
        %s2580 = scalar_lea.vmem %s379, 32
        %v2581 = vld [vmem:[%s2580] sm:$0xff]
        %v2582 = vld [vmem:[%s2580 + $0x8] sm:$0xff]
        %v2583 = vld [vmem:[%s2580 + $0x10] sm:$0xff]
        %v2584 = vld [vmem:[%s2580 + $0x18] sm:$0xff]
        %2586 = vrot.lane.b32.xlu0 %v2572, 96
        %v2587 = vpop.permute.xlu0 %2586
        %v2588 = vsel %vm525, %v2572, 0
        %v2590 = vsel %vm525, %v2587, 0
        %2592 = vmatprep.subr.mxu0 0.0
        %2593 = vmatpush1.xpose.msra.mxu0 0.0
        %2594 = vmatprep.subr.mxu0 0.0
        %2595 = vmatpush1.xpose.msra.mxu0 0.0
        %2596 = vmatprep.subr.mxu0 0.0
        %2597 = vmatpush1.xpose.msra.mxu0 0.0
        %2598 = vmatprep.subr.mxu0 0.0
        %2599 = vmatpush1.xpose.msra.mxu0 0.0
        %2600 = vmatprep.subr.mxu0 0.0
        %2601 = vmatpush1.xpose.msra.mxu0 0.0
        %2602 = vmatprep.subr.mxu0 0.0
        %2603 = vmatpush1.xpose.msra.mxu0 0.0
        %2604 = vmatprep.subr.mxu0 0.0
        %2605 = vmatpush1.xpose.msra.mxu0 0.0
        %2606 = vmatprep.subr.mxu0 0.0
        %2607 = vmatpush1.xpose.msra.mxu0 0.0
        %2608 = vmatprep.subr.mxu0 0.0
        %2609 = vmatpush1.xpose.msra.mxu0 0.0
        %2610 = vmatprep.subr.mxu0 0.0
        %2611 = vmatpush1.xpose.msra.mxu0 0.0
        %2612 = vmatprep.subr.mxu0 0.0
        %2613 = vmatpush1.xpose.msra.mxu0 0.0
        %2614 = vmatprep.subr.mxu0 0.0
        %2615 = vmatpush1.xpose.msra.mxu0 0.0
        %2616 = vmatprep.subr.mxu0 0.0
        %2617 = vmatpush1.xpose.msra.mxu0 0.0
        %2618 = vmatprep.subr.mxu0 0.0
        %2619 = vmatpush1.xpose.msra.mxu0 0.0
        %2620 = vmatprep.subr.mxu0 0.0
        %2621 = vmatpush1.xpose.msra.mxu0 0.0
        %2622 = vmatprep.subr.mxu0 0.0
        %2623 = vmatpush1.xpose.msra.mxu0 %v2590
        %2624 = vmatprep.subr.mxu0 0.0
        %2625 = vmatpush2.xpose.msra.mxu0 0.0
        %2626 = vmatprep.subr.mxu0 0.0
        %2627 = vmatpush2.xpose.msra.mxu0 0.0
        %2628 = vmatprep.subr.mxu0 0.0
        %2629 = vmatpush2.xpose.msra.mxu0 0.0
        %2630 = vmatprep.subr.mxu0 0.0
        %2631 = vmatpush2.xpose.msra.mxu0 0.0
        %2632 = vmatprep.subr.mxu0 0.0
        %2633 = vmatpush2.xpose.msra.mxu0 0.0
        %2634 = vmatprep.subr.mxu0 0.0
        %2635 = vmatpush2.xpose.msra.mxu0 0.0
        %2636 = vmatprep.subr.mxu0 0.0
        %2637 = vmatpush2.xpose.msra.mxu0 0.0
        %2638 = vmatprep.subr.mxu0 0.0
        %2639 = vmatpush2.xpose.msra.mxu0 0.0
        %2640 = vmatprep.subr.mxu0 0.0
        %2641 = vmatpush2.xpose.msra.mxu0 0.0
        %2642 = vmatprep.subr.mxu0 0.0
        %2643 = vmatpush2.xpose.msra.mxu0 0.0
        %2644 = vmatprep.subr.mxu0 0.0
        %2645 = vmatpush2.xpose.msra.mxu0 0.0
        %2646 = vmatprep.subr.mxu0 0.0
        %2647 = vmatpush2.xpose.msra.mxu0 0.0
        %2648 = vmatprep.subr.mxu0 0.0
        %2649 = vmatpush2.xpose.msra.mxu0 0.0
        %2650 = vmatprep.subr.mxu0 0.0
        %2651 = vmatpush2.xpose.msra.mxu0 0.0
        %2652 = vmatprep.subr.mxu0 0.0
        %2653 = vmatpush2.xpose.msra.mxu0 0.0
        %2654 = vmatprep.subr.mxu0 0.0
        %2655 = vmatpush2.xpose.msra.mxu0 0.0
        %2656 = vmatprep.mubr.f32.mxu0 0.0
        %2657 = vmatmul.mubr.f32.gmra.mxu0 %v2588
        %v2658 = vpop.f32.mrf.mxu0
        %v2659 = vadd.f32 0.0, %v2658
        %v2660 = vpop.f32.mrf.mxu0
        %2661 = vdwg.mxu0
        %2663 = vrot.lane.b32.xlu0 %v2577, 96
        %v2664 = vpop.permute.xlu0 %2663
        %v2665 = vsel %vm525, %v2577, 0
        %v2667 = vsel %vm525, %v2664, 0
        %2669 = vmatprep.subr.mxu0 0.0
        %2670 = vmatpush1.xpose.msra.mxu0 0.0
        %2671 = vmatprep.subr.mxu0 0.0
        %2672 = vmatpush1.xpose.msra.mxu0 0.0
        %2673 = vmatprep.subr.mxu0 0.0
        %2674 = vmatpush1.xpose.msra.mxu0 0.0
        %2675 = vmatprep.subr.mxu0 0.0
        %2676 = vmatpush1.xpose.msra.mxu0 0.0
        %2677 = vmatprep.subr.mxu0 0.0
        %2678 = vmatpush1.xpose.msra.mxu0 0.0
        %2679 = vmatprep.subr.mxu0 0.0
        %2680 = vmatpush1.xpose.msra.mxu0 0.0
        %2681 = vmatprep.subr.mxu0 0.0
        %2682 = vmatpush1.xpose.msra.mxu0 0.0
        %2683 = vmatprep.subr.mxu0 0.0
        %2684 = vmatpush1.xpose.msra.mxu0 0.0
        %2685 = vmatprep.subr.mxu0 0.0
        %2686 = vmatpush1.xpose.msra.mxu0 0.0
        %2687 = vmatprep.subr.mxu0 0.0
        %2688 = vmatpush1.xpose.msra.mxu0 0.0
        %2689 = vmatprep.subr.mxu0 0.0
        %2690 = vmatpush1.xpose.msra.mxu0 0.0
        %2691 = vmatprep.subr.mxu0 0.0
        %2692 = vmatpush1.xpose.msra.mxu0 0.0
        %2693 = vmatprep.subr.mxu0 0.0
        %2694 = vmatpush1.xpose.msra.mxu0 0.0
        %2695 = vmatprep.subr.mxu0 0.0
        %2696 = vmatpush1.xpose.msra.mxu0 0.0
        %2697 = vmatprep.subr.mxu0 0.0
        %2698 = vmatpush1.xpose.msra.mxu0 0.0
        %2699 = vmatprep.subr.mxu0 0.0
        %2700 = vmatpush1.xpose.msra.mxu0 %v2667
        %2701 = vmatprep.subr.mxu0 0.0
        %2702 = vmatpush2.xpose.msra.mxu0 0.0
        %2703 = vmatprep.subr.mxu0 0.0
        %2704 = vmatpush2.xpose.msra.mxu0 0.0
        %2705 = vmatprep.subr.mxu0 0.0
        %2706 = vmatpush2.xpose.msra.mxu0 0.0
        %2707 = vmatprep.subr.mxu0 0.0
        %2708 = vmatpush2.xpose.msra.mxu0 0.0
        %2709 = vmatprep.subr.mxu0 0.0
        %2710 = vmatpush2.xpose.msra.mxu0 0.0
        %2711 = vmatprep.subr.mxu0 0.0
        %2712 = vmatpush2.xpose.msra.mxu0 0.0
        %2713 = vmatprep.subr.mxu0 0.0
        %2714 = vmatpush2.xpose.msra.mxu0 0.0
        %2715 = vmatprep.subr.mxu0 0.0
        %2716 = vmatpush2.xpose.msra.mxu0 0.0
        %2717 = vmatprep.subr.mxu0 0.0
        %2718 = vmatpush2.xpose.msra.mxu0 0.0
        %2719 = vmatprep.subr.mxu0 0.0
        %2720 = vmatpush2.xpose.msra.mxu0 0.0
        %2721 = vmatprep.subr.mxu0 0.0
        %2722 = vmatpush2.xpose.msra.mxu0 0.0
        %2723 = vmatprep.subr.mxu0 0.0
        %2724 = vmatpush2.xpose.msra.mxu0 0.0
        %2725 = vmatprep.subr.mxu0 0.0
        %2726 = vmatpush2.xpose.msra.mxu0 0.0
        %2727 = vmatprep.subr.mxu0 0.0
        %2728 = vmatpush2.xpose.msra.mxu0 0.0
        %2729 = vmatprep.subr.mxu0 0.0
        %2730 = vmatpush2.xpose.msra.mxu0 0.0
        %2731 = vmatprep.subr.mxu0 0.0
        %2732 = vmatpush2.xpose.msra.mxu0 0.0
        %2733 = vmatprep.mubr.f32.mxu0 0.0
        %2734 = vmatmul.mubr.f32.gmra.mxu0 %v2665
        %v2735 = vpop.f32.mrf.mxu0
        %v2736 = vadd.f32 0.0, %v2735
        %v2737 = vpop.f32.mrf.mxu0
        %2738 = vdwg.mxu0
        %v2739 = vsel %vm525, %v2659, -inf
        %2740 = vmax.xlane.f32.xlu0 %v2739
        %v2741 = vpop.xlane.xlu0 %2740
        %v2742 = vsel %vm525, %v2736, -inf
        %2743 = vmax.xlane.f32.xlu0 %v2742
        %v2744 = vpop.xlane.xlu0 %2743
        %v2745 = vsub.f32 %v2659, %v2741
        %v2746 = vsub.f32 %v2736, %v2744
        %v2747 = vmul.f32 %v2745, 1.442695
        %v2748 = vpow.pop %v2747
        %v2749 = vmul.f32 %v2746, 1.442695
        %v2750 = vpow.pop %v2749
        %v2751 = vsel %vm525, %v2748, 0.0
        %2752 = vadd.xlane.f32.xlu0 %v2751
        %v2753 = vpop.xlane.xlu0 %2752
        %v2754 = vsel %vm525, %v2750, 0.0
        %2755 = vadd.xlane.f32.xlu0 %v2754
        %v2756 = vpop.xlane.xlu0 %2755
        %v2757 = vrcp.pop %v2753
        %v2758 = vrcp.pop %v2756
        %v2759 = vmul.f32 %v2748, %v2757
        %v2760 = vmul.f32 %v2750, %v2758
        %2761 = vrot.lane.b32.xlu0 %v2572, 64
        %v2762 = vpop.permute.xlu0 %2761
        %v2765 = vsel %vm525, %v2759, 0
        %2767 = vmatprep.subr.mxu0 0.0
        %2768 = vmatpush1.msra.mxu0 0.0
        %2769 = vmatprep.subr.mxu0 0.0
        %2770 = vmatpush1.msra.mxu0 0.0
        %2771 = vmatprep.subr.mxu0 0.0
        %2772 = vmatpush1.msra.mxu0 0.0
        %2773 = vmatprep.subr.mxu0 0.0
        %2774 = vmatpush1.msra.mxu0 0.0
        %2775 = vmatprep.subr.mxu0 0.0
        %2776 = vmatpush1.msra.mxu0 0.0
        %2777 = vmatprep.subr.mxu0 0.0
        %2778 = vmatpush1.msra.mxu0 0.0
        %2779 = vmatprep.subr.mxu0 0.0
        %2780 = vmatpush1.msra.mxu0 0.0
        %2781 = vmatprep.subr.mxu0 0.0
        %2782 = vmatpush1.msra.mxu0 0.0
        %2783 = vmatprep.subr.mxu0 0.0
        %2784 = vmatpush1.msra.mxu0 0.0
        %2785 = vmatprep.subr.mxu0 0.0
        %2786 = vmatpush1.msra.mxu0 0.0
        %2787 = vmatprep.subr.mxu0 0.0
        %2788 = vmatpush1.msra.mxu0 0.0
        %2789 = vmatprep.subr.mxu0 0.0
        %2790 = vmatpush1.msra.mxu0 0.0
        %2791 = vmatprep.subr.mxu0 0.0
        %2792 = vmatpush1.msra.mxu0 0.0
        %2793 = vmatprep.subr.mxu0 0.0
        %2794 = vmatpush1.msra.mxu0 0.0
        %2795 = vmatprep.subr.mxu0 0.0
        %2796 = vmatpush1.msra.mxu0 0.0
        %2797 = vmatprep.subr.mxu0 0.0
        %2798 = vmatpush1.msra.mxu0 %v2762
        %2799 = vmatprep.subr.mxu0 0.0
        %2800 = vmatpush2.msra.mxu0 0.0
        %2801 = vmatprep.subr.mxu0 0.0
        %2802 = vmatpush2.msra.mxu0 0.0
        %2803 = vmatprep.subr.mxu0 0.0
        %2804 = vmatpush2.msra.mxu0 0.0
        %2805 = vmatprep.subr.mxu0 0.0
        %2806 = vmatpush2.msra.mxu0 0.0
        %2807 = vmatprep.subr.mxu0 0.0
        %2808 = vmatpush2.msra.mxu0 0.0
        %2809 = vmatprep.subr.mxu0 0.0
        %2810 = vmatpush2.msra.mxu0 0.0
        %2811 = vmatprep.subr.mxu0 0.0
        %2812 = vmatpush2.msra.mxu0 0.0
        %2813 = vmatprep.subr.mxu0 0.0
        %2814 = vmatpush2.msra.mxu0 0.0
        %2815 = vmatprep.subr.mxu0 0.0
        %2816 = vmatpush2.msra.mxu0 0.0
        %2817 = vmatprep.subr.mxu0 0.0
        %2818 = vmatpush2.msra.mxu0 0.0
        %2819 = vmatprep.subr.mxu0 0.0
        %2820 = vmatpush2.msra.mxu0 0.0
        %2821 = vmatprep.subr.mxu0 0.0
        %2822 = vmatpush2.msra.mxu0 0.0
        %2823 = vmatprep.subr.mxu0 0.0
        %2824 = vmatpush2.msra.mxu0 0.0
        %2825 = vmatprep.subr.mxu0 0.0
        %2826 = vmatpush2.msra.mxu0 0.0
        %2827 = vmatprep.subr.mxu0 0.0
        %2828 = vmatpush2.msra.mxu0 0.0
        %2829 = vmatprep.subr.mxu0 0.0
        %2830 = vmatpush2.msra.mxu0 0.0
        %2831 = vmatprep.mubr.f32.mxu0 0.0
        %2832 = vmatmul.mubr.f32.gmra.mxu0 %v2765
        %v2833 = vpop.f32.mrf.mxu0
        %v2834 = vadd.f32 0.0, %v2833
        %v2835 = vpop.f32.mrf.mxu0
        %2836 = vdwg.mxu0
        %2837 = vrot.lane.b32.xlu0 %v2577, 64
        %v2838 = vpop.permute.xlu0 %2837
        %v2841 = vsel %vm525, %v2760, 0
        %2843 = vmatprep.subr.mxu0 0.0
        %2844 = vmatpush1.msra.mxu0 0.0
        %2845 = vmatprep.subr.mxu0 0.0
        %2846 = vmatpush1.msra.mxu0 0.0
        %2847 = vmatprep.subr.mxu0 0.0
        %2848 = vmatpush1.msra.mxu0 0.0
        %2849 = vmatprep.subr.mxu0 0.0
        %2850 = vmatpush1.msra.mxu0 0.0
        %2851 = vmatprep.subr.mxu0 0.0
        %2852 = vmatpush1.msra.mxu0 0.0
        %2853 = vmatprep.subr.mxu0 0.0
        %2854 = vmatpush1.msra.mxu0 0.0
        %2855 = vmatprep.subr.mxu0 0.0
        %2856 = vmatpush1.msra.mxu0 0.0
        %2857 = vmatprep.subr.mxu0 0.0
        %2858 = vmatpush1.msra.mxu0 0.0
        %2859 = vmatprep.subr.mxu0 0.0
        %2860 = vmatpush1.msra.mxu0 0.0
        %2861 = vmatprep.subr.mxu0 0.0
        %2862 = vmatpush1.msra.mxu0 0.0
        %2863 = vmatprep.subr.mxu0 0.0
        %2864 = vmatpush1.msra.mxu0 0.0
        %2865 = vmatprep.subr.mxu0 0.0
        %2866 = vmatpush1.msra.mxu0 0.0
        %2867 = vmatprep.subr.mxu0 0.0
        %2868 = vmatpush1.msra.mxu0 0.0
        %2869 = vmatprep.subr.mxu0 0.0
        %2870 = vmatpush1.msra.mxu0 0.0
        %2871 = vmatprep.subr.mxu0 0.0
        %2872 = vmatpush1.msra.mxu0 0.0
        %2873 = vmatprep.subr.mxu0 0.0
        %2874 = vmatpush1.msra.mxu0 %v2838
        %2875 = vmatprep.subr.mxu0 0.0
        %2876 = vmatpush2.msra.mxu0 0.0
        %2877 = vmatprep.subr.mxu0 0.0
        %2878 = vmatpush2.msra.mxu0 0.0
        %2879 = vmatprep.subr.mxu0 0.0
        %2880 = vmatpush2.msra.mxu0 0.0
        %2881 = vmatprep.subr.mxu0 0.0
        %2882 = vmatpush2.msra.mxu0 0.0
        %2883 = vmatprep.subr.mxu0 0.0
        %2884 = vmatpush2.msra.mxu0 0.0
        %2885 = vmatprep.subr.mxu0 0.0
        %2886 = vmatpush2.msra.mxu0 0.0
        %2887 = vmatprep.subr.mxu0 0.0
        %2888 = vmatpush2.msra.mxu0 0.0
        %2889 = vmatprep.subr.mxu0 0.0
        %2890 = vmatpush2.msra.mxu0 0.0
        %2891 = vmatprep.subr.mxu0 0.0
        %2892 = vmatpush2.msra.mxu0 0.0
        %2893 = vmatprep.subr.mxu0 0.0
        %2894 = vmatpush2.msra.mxu0 0.0
        %2895 = vmatprep.subr.mxu0 0.0
        %2896 = vmatpush2.msra.mxu0 0.0
        %2897 = vmatprep.subr.mxu0 0.0
        %2898 = vmatpush2.msra.mxu0 0.0
        %2899 = vmatprep.subr.mxu0 0.0
        %2900 = vmatpush2.msra.mxu0 0.0
        %2901 = vmatprep.subr.mxu0 0.0
        %2902 = vmatpush2.msra.mxu0 0.0
        %2903 = vmatprep.subr.mxu0 0.0
        %2904 = vmatpush2.msra.mxu0 0.0
        %2905 = vmatprep.subr.mxu0 0.0
        %2906 = vmatpush2.msra.mxu0 0.0
        %2907 = vmatprep.mubr.f32.mxu0 0.0
        %2908 = vmatmul.mubr.f32.gmra.mxu0 %v2841
        %v2909 = vpop.f32.mrf.mxu0
        %v2910 = vadd.f32 0.0, %v2909
        %v2911 = vpop.f32.mrf.mxu0
        %2912 = vdwg.mxu0
        %2913 = vrot.lane.b32.xlu0 %v2572, 120
        %v2914 = vpop.permute.xlu0 %2913
        %2915 = vrot.lane.b32.xlu0 %v2572, 88
        %v2916 = vpop.permute.xlu0 %2915
        %v2917 = vsel %vm525, %v2914, 0
        %v2919 = vsel %vm525, %v2916, 0
        %2921 = vmatprep.subr.mxu0 0.0
        %2922 = vmatpush1.xpose.msra.mxu0 0.0
        %2923 = vmatprep.subr.mxu0 0.0
        %2924 = vmatpush1.xpose.msra.mxu0 0.0
        %2925 = vmatprep.subr.mxu0 0.0
        %2926 = vmatpush1.xpose.msra.mxu0 0.0
        %2927 = vmatprep.subr.mxu0 0.0
        %2928 = vmatpush1.xpose.msra.mxu0 0.0
        %2929 = vmatprep.subr.mxu0 0.0
        %2930 = vmatpush1.xpose.msra.mxu0 0.0
        %2931 = vmatprep.subr.mxu0 0.0
        %2932 = vmatpush1.xpose.msra.mxu0 0.0
        %2933 = vmatprep.subr.mxu0 0.0
        %2934 = vmatpush1.xpose.msra.mxu0 0.0
        %2935 = vmatprep.subr.mxu0 0.0
        %2936 = vmatpush1.xpose.msra.mxu0 0.0
        %2937 = vmatprep.subr.mxu0 0.0
        %2938 = vmatpush1.xpose.msra.mxu0 0.0
        %2939 = vmatprep.subr.mxu0 0.0
        %2940 = vmatpush1.xpose.msra.mxu0 0.0
        %2941 = vmatprep.subr.mxu0 0.0
        %2942 = vmatpush1.xpose.msra.mxu0 0.0
        %2943 = vmatprep.subr.mxu0 0.0
        %2944 = vmatpush1.xpose.msra.mxu0 0.0
        %2945 = vmatprep.subr.mxu0 0.0
        %2946 = vmatpush1.xpose.msra.mxu0 0.0
        %2947 = vmatprep.subr.mxu0 0.0
        %2948 = vmatpush1.xpose.msra.mxu0 0.0
        %2949 = vmatprep.subr.mxu0 0.0
        %2950 = vmatpush1.xpose.msra.mxu0 0.0
        %2951 = vmatprep.subr.mxu0 0.0
        %2952 = vmatpush1.xpose.msra.mxu0 %v2919
        %2953 = vmatprep.subr.mxu0 0.0
        %2954 = vmatpush2.xpose.msra.mxu0 0.0
        %2955 = vmatprep.subr.mxu0 0.0
        %2956 = vmatpush2.xpose.msra.mxu0 0.0
        %2957 = vmatprep.subr.mxu0 0.0
        %2958 = vmatpush2.xpose.msra.mxu0 0.0
        %2959 = vmatprep.subr.mxu0 0.0
        %2960 = vmatpush2.xpose.msra.mxu0 0.0
        %2961 = vmatprep.subr.mxu0 0.0
        %2962 = vmatpush2.xpose.msra.mxu0 0.0
        %2963 = vmatprep.subr.mxu0 0.0
        %2964 = vmatpush2.xpose.msra.mxu0 0.0
        %2965 = vmatprep.subr.mxu0 0.0
        %2966 = vmatpush2.xpose.msra.mxu0 0.0
        %2967 = vmatprep.subr.mxu0 0.0
        %2968 = vmatpush2.xpose.msra.mxu0 0.0
        %2969 = vmatprep.subr.mxu0 0.0
        %2970 = vmatpush2.xpose.msra.mxu0 0.0
        %2971 = vmatprep.subr.mxu0 0.0
        %2972 = vmatpush2.xpose.msra.mxu0 0.0
        %2973 = vmatprep.subr.mxu0 0.0
        %2974 = vmatpush2.xpose.msra.mxu0 0.0
        %2975 = vmatprep.subr.mxu0 0.0
        %2976 = vmatpush2.xpose.msra.mxu0 0.0
        %2977 = vmatprep.subr.mxu0 0.0
        %2978 = vmatpush2.xpose.msra.mxu0 0.0
        %2979 = vmatprep.subr.mxu0 0.0
        %2980 = vmatpush2.xpose.msra.mxu0 0.0
        %2981 = vmatprep.subr.mxu0 0.0
        %2982 = vmatpush2.xpose.msra.mxu0 0.0
        %2983 = vmatprep.subr.mxu0 0.0
        %2984 = vmatpush2.xpose.msra.mxu0 0.0
        %2985 = vmatprep.mubr.f32.mxu0 0.0
        %2986 = vmatmul.mubr.f32.gmra.mxu0 %v2917
        %v2987 = vpop.f32.mrf.mxu0
        %v2988 = vadd.f32 0.0, %v2987
        %v2989 = vpop.f32.mrf.mxu0
        %2990 = vdwg.mxu0
        %2991 = vrot.lane.b32.xlu0 %v2577, 120
        %v2992 = vpop.permute.xlu0 %2991
        %2993 = vrot.lane.b32.xlu0 %v2577, 88
        %v2994 = vpop.permute.xlu0 %2993
        %v2995 = vsel %vm525, %v2992, 0
        %v2997 = vsel %vm525, %v2994, 0
        %2999 = vmatprep.subr.mxu0 0.0
        %3000 = vmatpush1.xpose.msra.mxu0 0.0
        %3001 = vmatprep.subr.mxu0 0.0
        %3002 = vmatpush1.xpose.msra.mxu0 0.0
        %3003 = vmatprep.subr.mxu0 0.0
        %3004 = vmatpush1.xpose.msra.mxu0 0.0
        %3005 = vmatprep.subr.mxu0 0.0
        %3006 = vmatpush1.xpose.msra.mxu0 0.0
        %3007 = vmatprep.subr.mxu0 0.0
        %3008 = vmatpush1.xpose.msra.mxu0 0.0
        %3009 = vmatprep.subr.mxu0 0.0
        %3010 = vmatpush1.xpose.msra.mxu0 0.0
        %3011 = vmatprep.subr.mxu0 0.0
        %3012 = vmatpush1.xpose.msra.mxu0 0.0
        %3013 = vmatprep.subr.mxu0 0.0
        %3014 = vmatpush1.xpose.msra.mxu0 0.0
        %3015 = vmatprep.subr.mxu0 0.0
        %3016 = vmatpush1.xpose.msra.mxu0 0.0
        %3017 = vmatprep.subr.mxu0 0.0
        %3018 = vmatpush1.xpose.msra.mxu0 0.0
        %3019 = vmatprep.subr.mxu0 0.0
        %3020 = vmatpush1.xpose.msra.mxu0 0.0
        %3021 = vmatprep.subr.mxu0 0.0
        %3022 = vmatpush1.xpose.msra.mxu0 0.0
        %3023 = vmatprep.subr.mxu0 0.0
        %3024 = vmatpush1.xpose.msra.mxu0 0.0
        %3025 = vmatprep.subr.mxu0 0.0
        %3026 = vmatpush1.xpose.msra.mxu0 0.0
        %3027 = vmatprep.subr.mxu0 0.0
        %3028 = vmatpush1.xpose.msra.mxu0 0.0
        %3029 = vmatprep.subr.mxu0 0.0
        %3030 = vmatpush1.xpose.msra.mxu0 %v2997
        %3031 = vmatprep.subr.mxu0 0.0
        %3032 = vmatpush2.xpose.msra.mxu0 0.0
        %3033 = vmatprep.subr.mxu0 0.0
        %3034 = vmatpush2.xpose.msra.mxu0 0.0
        %3035 = vmatprep.subr.mxu0 0.0
        %3036 = vmatpush2.xpose.msra.mxu0 0.0
        %3037 = vmatprep.subr.mxu0 0.0
        %3038 = vmatpush2.xpose.msra.mxu0 0.0
        %3039 = vmatprep.subr.mxu0 0.0
        %3040 = vmatpush2.xpose.msra.mxu0 0.0
        %3041 = vmatprep.subr.mxu0 0.0
        %3042 = vmatpush2.xpose.msra.mxu0 0.0
        %3043 = vmatprep.subr.mxu0 0.0
        %3044 = vmatpush2.xpose.msra.mxu0 0.0
        %3045 = vmatprep.subr.mxu0 0.0
        %3046 = vmatpush2.xpose.msra.mxu0 0.0
        %3047 = vmatprep.subr.mxu0 0.0
        %3048 = vmatpush2.xpose.msra.mxu0 0.0
        %3049 = vmatprep.subr.mxu0 0.0
        %3050 = vmatpush2.xpose.msra.mxu0 0.0
        %3051 = vmatprep.subr.mxu0 0.0
        %3052 = vmatpush2.xpose.msra.mxu0 0.0
        %3053 = vmatprep.subr.mxu0 0.0
        %3054 = vmatpush2.xpose.msra.mxu0 0.0
        %3055 = vmatprep.subr.mxu0 0.0
        %3056 = vmatpush2.xpose.msra.mxu0 0.0
        %3057 = vmatprep.subr.mxu0 0.0
        %3058 = vmatpush2.xpose.msra.mxu0 0.0
        %3059 = vmatprep.subr.mxu0 0.0
        %3060 = vmatpush2.xpose.msra.mxu0 0.0
        %3061 = vmatprep.subr.mxu0 0.0
        %3062 = vmatpush2.xpose.msra.mxu0 0.0
        %3063 = vmatprep.mubr.f32.mxu0 0.0
        %3064 = vmatmul.mubr.f32.gmra.mxu0 %v2995
        %v3065 = vpop.f32.mrf.mxu0
        %v3066 = vadd.f32 0.0, %v3065
        %v3067 = vpop.f32.mrf.mxu0
        %3068 = vdwg.mxu0
        %v3069 = vsel %vm525, %v2988, -inf
        %3070 = vmax.xlane.f32.xlu0 %v3069
        %v3071 = vpop.xlane.xlu0 %3070
        %v3072 = vsel %vm525, %v3066, -inf
        %3073 = vmax.xlane.f32.xlu0 %v3072
        %v3074 = vpop.xlane.xlu0 %3073
        %v3075 = vsub.f32 %v2988, %v3071
        %v3076 = vsub.f32 %v3066, %v3074
        %v3077 = vmul.f32 %v3075, 1.442695
        %v3078 = vpow.pop %v3077
        %v3079 = vmul.f32 %v3076, 1.442695
        %v3080 = vpow.pop %v3079
        %v3081 = vsel %vm525, %v3078, 0.0
        %3082 = vadd.xlane.f32.xlu0 %v3081
        %v3083 = vpop.xlane.xlu0 %3082
        %v3084 = vsel %vm525, %v3080, 0.0
        %3085 = vadd.xlane.f32.xlu0 %v3084
        %v3086 = vpop.xlane.xlu0 %3085
        %v3087 = vrcp.pop %v3083
        %v3088 = vrcp.pop %v3086
        %v3089 = vmul.f32 %v3078, %v3087
        %v3090 = vmul.f32 %v3080, %v3088
        %3091 = vrot.lane.b32.xlu0 %v2572, 56
        %v3092 = vpop.permute.xlu0 %3091
        %v3095 = vsel %vm525, %v3089, 0
        %3097 = vmatprep.subr.mxu0 0.0
        %3098 = vmatpush1.msra.mxu0 0.0
        %3099 = vmatprep.subr.mxu0 0.0
        %3100 = vmatpush1.msra.mxu0 0.0
        %3101 = vmatprep.subr.mxu0 0.0
        %3102 = vmatpush1.msra.mxu0 0.0
        %3103 = vmatprep.subr.mxu0 0.0
        %3104 = vmatpush1.msra.mxu0 0.0
        %3105 = vmatprep.subr.mxu0 0.0
        %3106 = vmatpush1.msra.mxu0 0.0
        %3107 = vmatprep.subr.mxu0 0.0
        %3108 = vmatpush1.msra.mxu0 0.0
        %3109 = vmatprep.subr.mxu0 0.0
        %3110 = vmatpush1.msra.mxu0 0.0
        %3111 = vmatprep.subr.mxu0 0.0
        %3112 = vmatpush1.msra.mxu0 0.0
        %3113 = vmatprep.subr.mxu0 0.0
        %3114 = vmatpush1.msra.mxu0 0.0
        %3115 = vmatprep.subr.mxu0 0.0
        %3116 = vmatpush1.msra.mxu0 0.0
        %3117 = vmatprep.subr.mxu0 0.0
        %3118 = vmatpush1.msra.mxu0 0.0
        %3119 = vmatprep.subr.mxu0 0.0
        %3120 = vmatpush1.msra.mxu0 0.0
        %3121 = vmatprep.subr.mxu0 0.0
        %3122 = vmatpush1.msra.mxu0 0.0
        %3123 = vmatprep.subr.mxu0 0.0
        %3124 = vmatpush1.msra.mxu0 0.0
        %3125 = vmatprep.subr.mxu0 0.0
        %3126 = vmatpush1.msra.mxu0 0.0
        %3127 = vmatprep.subr.mxu0 0.0
        %3128 = vmatpush1.msra.mxu0 %v3092
        %3129 = vmatprep.subr.mxu0 0.0
        %3130 = vmatpush2.msra.mxu0 0.0
        %3131 = vmatprep.subr.mxu0 0.0
        %3132 = vmatpush2.msra.mxu0 0.0
        %3133 = vmatprep.subr.mxu0 0.0
        %3134 = vmatpush2.msra.mxu0 0.0
        %3135 = vmatprep.subr.mxu0 0.0
        %3136 = vmatpush2.msra.mxu0 0.0
        %3137 = vmatprep.subr.mxu0 0.0
        %3138 = vmatpush2.msra.mxu0 0.0
        %3139 = vmatprep.subr.mxu0 0.0
        %3140 = vmatpush2.msra.mxu0 0.0
        %3141 = vmatprep.subr.mxu0 0.0
        %3142 = vmatpush2.msra.mxu0 0.0
        %3143 = vmatprep.subr.mxu0 0.0
        %3144 = vmatpush2.msra.mxu0 0.0
        %3145 = vmatprep.subr.mxu0 0.0
        %3146 = vmatpush2.msra.mxu0 0.0
        %3147 = vmatprep.subr.mxu0 0.0
        %3148 = vmatpush2.msra.mxu0 0.0
        %3149 = vmatprep.subr.mxu0 0.0
        %3150 = vmatpush2.msra.mxu0 0.0
        %3151 = vmatprep.subr.mxu0 0.0
        %3152 = vmatpush2.msra.mxu0 0.0
        %3153 = vmatprep.subr.mxu0 0.0
        %3154 = vmatpush2.msra.mxu0 0.0
        %3155 = vmatprep.subr.mxu0 0.0
        %3156 = vmatpush2.msra.mxu0 0.0
        %3157 = vmatprep.subr.mxu0 0.0
        %3158 = vmatpush2.msra.mxu0 0.0
        %3159 = vmatprep.subr.mxu0 0.0
        %3160 = vmatpush2.msra.mxu0 0.0
        %3161 = vmatprep.mubr.f32.mxu0 0.0
        %3162 = vmatmul.mubr.f32.gmra.mxu0 %v3095
        %v3163 = vpop.f32.mrf.mxu0
        %v3164 = vadd.f32 0.0, %v3163
        %v3165 = vpop.f32.mrf.mxu0
        %3166 = vdwg.mxu0
        %3167 = vrot.lane.b32.xlu0 %v2577, 56
        %v3168 = vpop.permute.xlu0 %3167
        %v3171 = vsel %vm525, %v3090, 0
        %3173 = vmatprep.subr.mxu0 0.0
        %3174 = vmatpush1.msra.mxu0 0.0
        %3175 = vmatprep.subr.mxu0 0.0
        %3176 = vmatpush1.msra.mxu0 0.0
        %3177 = vmatprep.subr.mxu0 0.0
        %3178 = vmatpush1.msra.mxu0 0.0
        %3179 = vmatprep.subr.mxu0 0.0
        %3180 = vmatpush1.msra.mxu0 0.0
        %3181 = vmatprep.subr.mxu0 0.0
        %3182 = vmatpush1.msra.mxu0 0.0
        %3183 = vmatprep.subr.mxu0 0.0
        %3184 = vmatpush1.msra.mxu0 0.0
        %3185 = vmatprep.subr.mxu0 0.0
        %3186 = vmatpush1.msra.mxu0 0.0
        %3187 = vmatprep.subr.mxu0 0.0
        %3188 = vmatpush1.msra.mxu0 0.0
        %3189 = vmatprep.subr.mxu0 0.0
        %3190 = vmatpush1.msra.mxu0 0.0
        %3191 = vmatprep.subr.mxu0 0.0
        %3192 = vmatpush1.msra.mxu0 0.0
        %3193 = vmatprep.subr.mxu0 0.0
        %3194 = vmatpush1.msra.mxu0 0.0
        %3195 = vmatprep.subr.mxu0 0.0
        %3196 = vmatpush1.msra.mxu0 0.0
        %3197 = vmatprep.subr.mxu0 0.0
        %3198 = vmatpush1.msra.mxu0 0.0
        %3199 = vmatprep.subr.mxu0 0.0
        %3200 = vmatpush1.msra.mxu0 0.0
        %3201 = vmatprep.subr.mxu0 0.0
        %3202 = vmatpush1.msra.mxu0 0.0
        %3203 = vmatprep.subr.mxu0 0.0
        %3204 = vmatpush1.msra.mxu0 %v3168
        %3205 = vmatprep.subr.mxu0 0.0
        %3206 = vmatpush2.msra.mxu0 0.0
        %3207 = vmatprep.subr.mxu0 0.0
        %3208 = vmatpush2.msra.mxu0 0.0
        %3209 = vmatprep.subr.mxu0 0.0
        %3210 = vmatpush2.msra.mxu0 0.0
        %3211 = vmatprep.subr.mxu0 0.0
        %3212 = vmatpush2.msra.mxu0 0.0
        %3213 = vmatprep.subr.mxu0 0.0
        %3214 = vmatpush2.msra.mxu0 0.0
        %3215 = vmatprep.subr.mxu0 0.0
        %3216 = vmatpush2.msra.mxu0 0.0
        %3217 = vmatprep.subr.mxu0 0.0
        %3218 = vmatpush2.msra.mxu0 0.0
        %3219 = vmatprep.subr.mxu0 0.0
        %3220 = vmatpush2.msra.mxu0 0.0
        %3221 = vmatprep.subr.mxu0 0.0
        %3222 = vmatpush2.msra.mxu0 0.0
        %3223 = vmatprep.subr.mxu0 0.0
        %3224 = vmatpush2.msra.mxu0 0.0
        %3225 = vmatprep.subr.mxu0 0.0
        %3226 = vmatpush2.msra.mxu0 0.0
        %3227 = vmatprep.subr.mxu0 0.0
        %3228 = vmatpush2.msra.mxu0 0.0
        %3229 = vmatprep.subr.mxu0 0.0
        %3230 = vmatpush2.msra.mxu0 0.0
        %3231 = vmatprep.subr.mxu0 0.0
        %3232 = vmatpush2.msra.mxu0 0.0
        %3233 = vmatprep.subr.mxu0 0.0
        %3234 = vmatpush2.msra.mxu0 0.0
        %3235 = vmatprep.subr.mxu0 0.0
        %3236 = vmatpush2.msra.mxu0 0.0
        %3237 = vmatprep.mubr.f32.mxu0 0.0
        %3238 = vmatmul.mubr.f32.gmra.mxu0 %v3171
        %v3239 = vpop.f32.mrf.mxu0
        %v3240 = vadd.f32 0.0, %v3239
        %v3241 = vpop.f32.mrf.mxu0
        %3242 = vdwg.mxu0
        %v3244 = vsel %vm525, %v3164, 0
        %v3247 = vsel %vm525, %v3240, 0
        %3249 = vmatprep.subr.mxu0 0.0
        %3250 = vmatpush1.msra.mxu0 0.0
        %3251 = vmatprep.subr.mxu0 0.0
        %3252 = vmatpush1.msra.mxu0 0.0
        %3253 = vmatprep.subr.mxu0 0.0
        %3254 = vmatpush1.msra.mxu0 0.0
        %3255 = vmatprep.subr.mxu0 0.0
        %3256 = vmatpush1.msra.mxu0 0.0
        %3257 = vmatprep.subr.mxu0 0.0
        %3258 = vmatpush1.msra.mxu0 0.0
        %3259 = vmatprep.subr.mxu0 0.0
        %3260 = vmatpush1.msra.mxu0 0.0
        %3261 = vmatprep.subr.mxu0 0.0
        %3262 = vmatpush1.msra.mxu0 0.0
        %3263 = vmatprep.subr.mxu0 0.0
        %3264 = vmatpush1.msra.mxu0 0.0
        %3265 = vmatprep.subr.mxu0 0.0
        %3266 = vmatpush1.msra.mxu0 0.0
        %3267 = vmatprep.subr.mxu0 0.0
        %3268 = vmatpush1.msra.mxu0 0.0
        %3269 = vmatprep.subr.mxu0 0.0
        %3270 = vmatpush1.msra.mxu0 0.0
        %3271 = vmatprep.subr.mxu0 0.0
        %3272 = vmatpush1.msra.mxu0 0.0
        %3273 = vmatprep.subr.mxu0 0.0
        %3274 = vmatpush1.msra.mxu0 0.0
        %3275 = vmatprep.subr.mxu0 0.0
        %3276 = vmatpush1.msra.mxu0 0.0
        %3277 = vmatprep.subr.mxu0 0.0
        %3278 = vmatpush1.msra.mxu0 0.0
        %3279 = vmatprep.subr.mxu0 0.0
        %3280 = vmatpush1.msra.mxu0 %v2582
        %3281 = vmatprep.subr.mxu0 0.0
        %3282 = vmatpush2.msra.mxu0 0.0
        %3283 = vmatprep.subr.mxu0 0.0
        %3284 = vmatpush2.msra.mxu0 0.0
        %3285 = vmatprep.subr.mxu0 0.0
        %3286 = vmatpush2.msra.mxu0 0.0
        %3287 = vmatprep.subr.mxu0 0.0
        %3288 = vmatpush2.msra.mxu0 0.0
        %3289 = vmatprep.subr.mxu0 0.0
        %3290 = vmatpush2.msra.mxu0 0.0
        %3291 = vmatprep.subr.mxu0 0.0
        %3292 = vmatpush2.msra.mxu0 0.0
        %3293 = vmatprep.subr.mxu0 0.0
        %3294 = vmatpush2.msra.mxu0 0.0
        %3295 = vmatprep.subr.mxu0 0.0
        %3296 = vmatpush2.msra.mxu0 0.0
        %3297 = vmatprep.subr.mxu0 0.0
        %3298 = vmatpush2.msra.mxu0 0.0
        %3299 = vmatprep.subr.mxu0 0.0
        %3300 = vmatpush2.msra.mxu0 0.0
        %3301 = vmatprep.subr.mxu0 0.0
        %3302 = vmatpush2.msra.mxu0 0.0
        %3303 = vmatprep.subr.mxu0 0.0
        %3304 = vmatpush2.msra.mxu0 0.0
        %3305 = vmatprep.subr.mxu0 0.0
        %3306 = vmatpush2.msra.mxu0 0.0
        %3307 = vmatprep.subr.mxu0 0.0
        %3308 = vmatpush2.msra.mxu0 0.0
        %3309 = vmatprep.subr.mxu0 0.0
        %3310 = vmatpush2.msra.mxu0 0.0
        %3311 = vmatprep.subr.mxu0 0.0
        %3312 = vmatpush2.msra.mxu0 0.0
        %3313 = vmatprep.mubr.f32.mxu0 0.0
        %3314 = vmatmul.mubr.f32.gmra.mxu0 %v3244
        %v3315 = vpop.f32.mrf.mxu0
        %v3316 = vadd.f32 0.0, %v3315
        %v3317 = vpop.f32.mrf.mxu0
        %3318 = vmatprep.mubr.f32.mxu0 0.0
        %3319 = vmatmul.mubr.f32.gmra.mxu0 %v3247
        %v3320 = vpop.f32.mrf.mxu0
        %v3321 = vadd.f32 0.0, %v3320
        %v3322 = vpop.f32.mrf.mxu0
        %3323 = vdwg.mxu0
        %v3325 = vsel %vm525, %v2834, 0
        %v3328 = vsel %vm525, %v2910, 0
        %3330 = vmatprep.subr.mxu0 0.0
        %3331 = vmatpush1.msra.mxu0 0.0
        %3332 = vmatprep.subr.mxu0 0.0
        %3333 = vmatpush1.msra.mxu0 0.0
        %3334 = vmatprep.subr.mxu0 0.0
        %3335 = vmatpush1.msra.mxu0 0.0
        %3336 = vmatprep.subr.mxu0 0.0
        %3337 = vmatpush1.msra.mxu0 0.0
        %3338 = vmatprep.subr.mxu0 0.0
        %3339 = vmatpush1.msra.mxu0 0.0
        %3340 = vmatprep.subr.mxu0 0.0
        %3341 = vmatpush1.msra.mxu0 0.0
        %3342 = vmatprep.subr.mxu0 0.0
        %3343 = vmatpush1.msra.mxu0 0.0
        %3344 = vmatprep.subr.mxu0 0.0
        %3345 = vmatpush1.msra.mxu0 0.0
        %3346 = vmatprep.subr.mxu0 0.0
        %3347 = vmatpush1.msra.mxu0 0.0
        %3348 = vmatprep.subr.mxu0 0.0
        %3349 = vmatpush1.msra.mxu0 0.0
        %3350 = vmatprep.subr.mxu0 0.0
        %3351 = vmatpush1.msra.mxu0 0.0
        %3352 = vmatprep.subr.mxu0 0.0
        %3353 = vmatpush1.msra.mxu0 0.0
        %3354 = vmatprep.subr.mxu0 0.0
        %3355 = vmatpush1.msra.mxu0 0.0
        %3356 = vmatprep.subr.mxu0 0.0
        %3357 = vmatpush1.msra.mxu0 0.0
        %3358 = vmatprep.subr.mxu0 0.0
        %3359 = vmatpush1.msra.mxu0 0.0
        %3360 = vmatprep.subr.mxu0 0.0
        %3361 = vmatpush1.msra.mxu0 %v2581
        %3362 = vmatprep.subr.mxu0 0.0
        %3363 = vmatpush2.msra.mxu0 0.0
        %3364 = vmatprep.subr.mxu0 0.0
        %3365 = vmatpush2.msra.mxu0 0.0
        %3366 = vmatprep.subr.mxu0 0.0
        %3367 = vmatpush2.msra.mxu0 0.0
        %3368 = vmatprep.subr.mxu0 0.0
        %3369 = vmatpush2.msra.mxu0 0.0
        %3370 = vmatprep.subr.mxu0 0.0
        %3371 = vmatpush2.msra.mxu0 0.0
        %3372 = vmatprep.subr.mxu0 0.0
        %3373 = vmatpush2.msra.mxu0 0.0
        %3374 = vmatprep.subr.mxu0 0.0
        %3375 = vmatpush2.msra.mxu0 0.0
        %3376 = vmatprep.subr.mxu0 0.0
        %3377 = vmatpush2.msra.mxu0 0.0
        %3378 = vmatprep.subr.mxu0 0.0
        %3379 = vmatpush2.msra.mxu0 0.0
        %3380 = vmatprep.subr.mxu0 0.0
        %3381 = vmatpush2.msra.mxu0 0.0
        %3382 = vmatprep.subr.mxu0 0.0
        %3383 = vmatpush2.msra.mxu0 0.0
        %3384 = vmatprep.subr.mxu0 0.0
        %3385 = vmatpush2.msra.mxu0 0.0
        %3386 = vmatprep.subr.mxu0 0.0
        %3387 = vmatpush2.msra.mxu0 0.0
        %3388 = vmatprep.subr.mxu0 0.0
        %3389 = vmatpush2.msra.mxu0 0.0
        %3390 = vmatprep.subr.mxu0 0.0
        %3391 = vmatpush2.msra.mxu0 0.0
        %3392 = vmatprep.subr.mxu0 0.0
        %3393 = vmatpush2.msra.mxu0 0.0
        %3394 = vmatprep.mubr.f32.mxu0 0.0
        %3395 = vmatmul.mubr.f32.gmra.mxu0 %v3325
        %v3396 = vpop.f32.mrf.mxu0
        %v3397 = vadd.f32 %v3316, %v3396
        %v3398 = vpop.f32.mrf.mxu0
        %3399 = vmatprep.mubr.f32.mxu0 0.0
        %3400 = vmatmul.mubr.f32.gmra.mxu0 %v3328
        %v3401 = vpop.f32.mrf.mxu0
        %v3402 = vadd.f32 %v3321, %v3401
        %v3403 = vpop.f32.mrf.mxu0
        %3404 = vdwg.mxu0
        %3405 = vrot.lane.b32.xlu0 %v2572, 112
        %v3406 = vpop.permute.xlu0 %3405
        %3407 = vrot.lane.b32.xlu0 %v2572, 80
        %v3408 = vpop.permute.xlu0 %3407
        %v3409 = vsel %vm525, %v3406, 0
        %v3411 = vsel %vm525, %v3408, 0
        %3413 = vmatprep.subr.mxu0 0.0
        %3414 = vmatpush1.xpose.msra.mxu0 0.0
        %3415 = vmatprep.subr.mxu0 0.0
        %3416 = vmatpush1.xpose.msra.mxu0 0.0
        %3417 = vmatprep.subr.mxu0 0.0
        %3418 = vmatpush1.xpose.msra.mxu0 0.0
        %3419 = vmatprep.subr.mxu0 0.0
        %3420 = vmatpush1.xpose.msra.mxu0 0.0
        %3421 = vmatprep.subr.mxu0 0.0
        %3422 = vmatpush1.xpose.msra.mxu0 0.0
        %3423 = vmatprep.subr.mxu0 0.0
        %3424 = vmatpush1.xpose.msra.mxu0 0.0
        %3425 = vmatprep.subr.mxu0 0.0
        %3426 = vmatpush1.xpose.msra.mxu0 0.0
        %3427 = vmatprep.subr.mxu0 0.0
        %3428 = vmatpush1.xpose.msra.mxu0 0.0
        %3429 = vmatprep.subr.mxu0 0.0
        %3430 = vmatpush1.xpose.msra.mxu0 0.0
        %3431 = vmatprep.subr.mxu0 0.0
        %3432 = vmatpush1.xpose.msra.mxu0 0.0
        %3433 = vmatprep.subr.mxu0 0.0
        %3434 = vmatpush1.xpose.msra.mxu0 0.0
        %3435 = vmatprep.subr.mxu0 0.0
        %3436 = vmatpush1.xpose.msra.mxu0 0.0
        %3437 = vmatprep.subr.mxu0 0.0
        %3438 = vmatpush1.xpose.msra.mxu0 0.0
        %3439 = vmatprep.subr.mxu0 0.0
        %3440 = vmatpush1.xpose.msra.mxu0 0.0
        %3441 = vmatprep.subr.mxu0 0.0
        %3442 = vmatpush1.xpose.msra.mxu0 0.0
        %3443 = vmatprep.subr.mxu0 0.0
        %3444 = vmatpush1.xpose.msra.mxu0 %v3411
        %3445 = vmatprep.subr.mxu0 0.0
        %3446 = vmatpush2.xpose.msra.mxu0 0.0
        %3447 = vmatprep.subr.mxu0 0.0
        %3448 = vmatpush2.xpose.msra.mxu0 0.0
        %3449 = vmatprep.subr.mxu0 0.0
        %3450 = vmatpush2.xpose.msra.mxu0 0.0
        %3451 = vmatprep.subr.mxu0 0.0
        %3452 = vmatpush2.xpose.msra.mxu0 0.0
        %3453 = vmatprep.subr.mxu0 0.0
        %3454 = vmatpush2.xpose.msra.mxu0 0.0
        %3455 = vmatprep.subr.mxu0 0.0
        %3456 = vmatpush2.xpose.msra.mxu0 0.0
        %3457 = vmatprep.subr.mxu0 0.0
        %3458 = vmatpush2.xpose.msra.mxu0 0.0
        %3459 = vmatprep.subr.mxu0 0.0
        %3460 = vmatpush2.xpose.msra.mxu0 0.0
        %3461 = vmatprep.subr.mxu0 0.0
        %3462 = vmatpush2.xpose.msra.mxu0 0.0
        %3463 = vmatprep.subr.mxu0 0.0
        %3464 = vmatpush2.xpose.msra.mxu0 0.0
        %3465 = vmatprep.subr.mxu0 0.0
        %3466 = vmatpush2.xpose.msra.mxu0 0.0
        %3467 = vmatprep.subr.mxu0 0.0
        %3468 = vmatpush2.xpose.msra.mxu0 0.0
        %3469 = vmatprep.subr.mxu0 0.0
        %3470 = vmatpush2.xpose.msra.mxu0 0.0
        %3471 = vmatprep.subr.mxu0 0.0
        %3472 = vmatpush2.xpose.msra.mxu0 0.0
        %3473 = vmatprep.subr.mxu0 0.0
        %3474 = vmatpush2.xpose.msra.mxu0 0.0
        %3475 = vmatprep.subr.mxu0 0.0
        %3476 = vmatpush2.xpose.msra.mxu0 0.0
        %3477 = vmatprep.mubr.f32.mxu0 0.0
        %3478 = vmatmul.mubr.f32.gmra.mxu0 %v3409
        %v3479 = vpop.f32.mrf.mxu0
        %v3480 = vadd.f32 0.0, %v3479
        %v3481 = vpop.f32.mrf.mxu0
        %3482 = vdwg.mxu0
        %3483 = vrot.lane.b32.xlu0 %v2577, 112
        %v3484 = vpop.permute.xlu0 %3483
        %3485 = vrot.lane.b32.xlu0 %v2577, 80
        %v3486 = vpop.permute.xlu0 %3485
        %v3487 = vsel %vm525, %v3484, 0
        %v3489 = vsel %vm525, %v3486, 0
        %3491 = vmatprep.subr.mxu0 0.0
        %3492 = vmatpush1.xpose.msra.mxu0 0.0
        %3493 = vmatprep.subr.mxu0 0.0
        %3494 = vmatpush1.xpose.msra.mxu0 0.0
        %3495 = vmatprep.subr.mxu0 0.0
        %3496 = vmatpush1.xpose.msra.mxu0 0.0
        %3497 = vmatprep.subr.mxu0 0.0
        %3498 = vmatpush1.xpose.msra.mxu0 0.0
        %3499 = vmatprep.subr.mxu0 0.0
        %3500 = vmatpush1.xpose.msra.mxu0 0.0
        %3501 = vmatprep.subr.mxu0 0.0
        %3502 = vmatpush1.xpose.msra.mxu0 0.0
        %3503 = vmatprep.subr.mxu0 0.0
        %3504 = vmatpush1.xpose.msra.mxu0 0.0
        %3505 = vmatprep.subr.mxu0 0.0
        %3506 = vmatpush1.xpose.msra.mxu0 0.0
        %3507 = vmatprep.subr.mxu0 0.0
        %3508 = vmatpush1.xpose.msra.mxu0 0.0
        %3509 = vmatprep.subr.mxu0 0.0
        %3510 = vmatpush1.xpose.msra.mxu0 0.0
        %3511 = vmatprep.subr.mxu0 0.0
        %3512 = vmatpush1.xpose.msra.mxu0 0.0
        %3513 = vmatprep.subr.mxu0 0.0
        %3514 = vmatpush1.xpose.msra.mxu0 0.0
        %3515 = vmatprep.subr.mxu0 0.0
        %3516 = vmatpush1.xpose.msra.mxu0 0.0
        %3517 = vmatprep.subr.mxu0 0.0
        %3518 = vmatpush1.xpose.msra.mxu0 0.0
        %3519 = vmatprep.subr.mxu0 0.0
        %3520 = vmatpush1.xpose.msra.mxu0 0.0
        %3521 = vmatprep.subr.mxu0 0.0
        %3522 = vmatpush1.xpose.msra.mxu0 %v3489
        %3523 = vmatprep.subr.mxu0 0.0
        %3524 = vmatpush2.xpose.msra.mxu0 0.0
        %3525 = vmatprep.subr.mxu0 0.0
        %3526 = vmatpush2.xpose.msra.mxu0 0.0
        %3527 = vmatprep.subr.mxu0 0.0
        %3528 = vmatpush2.xpose.msra.mxu0 0.0
        %3529 = vmatprep.subr.mxu0 0.0
        %3530 = vmatpush2.xpose.msra.mxu0 0.0
        %3531 = vmatprep.subr.mxu0 0.0
        %3532 = vmatpush2.xpose.msra.mxu0 0.0
        %3533 = vmatprep.subr.mxu0 0.0
        %3534 = vmatpush2.xpose.msra.mxu0 0.0
        %3535 = vmatprep.subr.mxu0 0.0
        %3536 = vmatpush2.xpose.msra.mxu0 0.0
        %3537 = vmatprep.subr.mxu0 0.0
        %3538 = vmatpush2.xpose.msra.mxu0 0.0
        %3539 = vmatprep.subr.mxu0 0.0
        %3540 = vmatpush2.xpose.msra.mxu0 0.0
        %3541 = vmatprep.subr.mxu0 0.0
        %3542 = vmatpush2.xpose.msra.mxu0 0.0
        %3543 = vmatprep.subr.mxu0 0.0
        %3544 = vmatpush2.xpose.msra.mxu0 0.0
        %3545 = vmatprep.subr.mxu0 0.0
        %3546 = vmatpush2.xpose.msra.mxu0 0.0
        %3547 = vmatprep.subr.mxu0 0.0
        %3548 = vmatpush2.xpose.msra.mxu0 0.0
        %3549 = vmatprep.subr.mxu0 0.0
        %3550 = vmatpush2.xpose.msra.mxu0 0.0
        %3551 = vmatprep.subr.mxu0 0.0
        %3552 = vmatpush2.xpose.msra.mxu0 0.0
        %3553 = vmatprep.subr.mxu0 0.0
        %3554 = vmatpush2.xpose.msra.mxu0 0.0
        %3555 = vmatprep.mubr.f32.mxu0 0.0
        %3556 = vmatmul.mubr.f32.gmra.mxu0 %v3487
        %v3557 = vpop.f32.mrf.mxu0
        %v3558 = vadd.f32 0.0, %v3557
        %v3559 = vpop.f32.mrf.mxu0
        %3560 = vdwg.mxu0
        %v3561 = vsel %vm525, %v3480, -inf
        %3562 = vmax.xlane.f32.xlu0 %v3561
        %v3563 = vpop.xlane.xlu0 %3562
        %v3564 = vsel %vm525, %v3558, -inf
        %3565 = vmax.xlane.f32.xlu0 %v3564
        %v3566 = vpop.xlane.xlu0 %3565
        %v3567 = vsub.f32 %v3480, %v3563
        %v3568 = vsub.f32 %v3558, %v3566
        %v3569 = vmul.f32 %v3567, 1.442695
        %v3570 = vpow.pop %v3569
        %v3571 = vmul.f32 %v3568, 1.442695
        %v3572 = vpow.pop %v3571
        %v3573 = vsel %vm525, %v3570, 0.0
        %3574 = vadd.xlane.f32.xlu0 %v3573
        %v3575 = vpop.xlane.xlu0 %3574
        %v3576 = vsel %vm525, %v3572, 0.0
        %3577 = vadd.xlane.f32.xlu0 %v3576
        %v3578 = vpop.xlane.xlu0 %3577
        %v3579 = vrcp.pop %v3575
        %v3580 = vrcp.pop %v3578
        %v3581 = vmul.f32 %v3570, %v3579
        %v3582 = vmul.f32 %v3572, %v3580
        %3583 = vrot.lane.b32.xlu0 %v2572, 48
        %v3584 = vpop.permute.xlu0 %3583
        %v3587 = vsel %vm525, %v3581, 0
        %3589 = vmatprep.subr.mxu0 0.0
        %3590 = vmatpush1.msra.mxu0 0.0
        %3591 = vmatprep.subr.mxu0 0.0
        %3592 = vmatpush1.msra.mxu0 0.0
        %3593 = vmatprep.subr.mxu0 0.0
        %3594 = vmatpush1.msra.mxu0 0.0
        %3595 = vmatprep.subr.mxu0 0.0
        %3596 = vmatpush1.msra.mxu0 0.0
        %3597 = vmatprep.subr.mxu0 0.0
        %3598 = vmatpush1.msra.mxu0 0.0
        %3599 = vmatprep.subr.mxu0 0.0
        %3600 = vmatpush1.msra.mxu0 0.0
        %3601 = vmatprep.subr.mxu0 0.0
        %3602 = vmatpush1.msra.mxu0 0.0
        %3603 = vmatprep.subr.mxu0 0.0
        %3604 = vmatpush1.msra.mxu0 0.0
        %3605 = vmatprep.subr.mxu0 0.0
        %3606 = vmatpush1.msra.mxu0 0.0
        %3607 = vmatprep.subr.mxu0 0.0
        %3608 = vmatpush1.msra.mxu0 0.0
        %3609 = vmatprep.subr.mxu0 0.0
        %3610 = vmatpush1.msra.mxu0 0.0
        %3611 = vmatprep.subr.mxu0 0.0
        %3612 = vmatpush1.msra.mxu0 0.0
        %3613 = vmatprep.subr.mxu0 0.0
        %3614 = vmatpush1.msra.mxu0 0.0
        %3615 = vmatprep.subr.mxu0 0.0
        %3616 = vmatpush1.msra.mxu0 0.0
        %3617 = vmatprep.subr.mxu0 0.0
        %3618 = vmatpush1.msra.mxu0 0.0
        %3619 = vmatprep.subr.mxu0 0.0
        %3620 = vmatpush1.msra.mxu0 %v3584
        %3621 = vmatprep.subr.mxu0 0.0
        %3622 = vmatpush2.msra.mxu0 0.0
        %3623 = vmatprep.subr.mxu0 0.0
        %3624 = vmatpush2.msra.mxu0 0.0
        %3625 = vmatprep.subr.mxu0 0.0
        %3626 = vmatpush2.msra.mxu0 0.0
        %3627 = vmatprep.subr.mxu0 0.0
        %3628 = vmatpush2.msra.mxu0 0.0
        %3629 = vmatprep.subr.mxu0 0.0
        %3630 = vmatpush2.msra.mxu0 0.0
        %3631 = vmatprep.subr.mxu0 0.0
        %3632 = vmatpush2.msra.mxu0 0.0
        %3633 = vmatprep.subr.mxu0 0.0
        %3634 = vmatpush2.msra.mxu0 0.0
        %3635 = vmatprep.subr.mxu0 0.0
        %3636 = vmatpush2.msra.mxu0 0.0
        %3637 = vmatprep.subr.mxu0 0.0
        %3638 = vmatpush2.msra.mxu0 0.0
        %3639 = vmatprep.subr.mxu0 0.0
        %3640 = vmatpush2.msra.mxu0 0.0
        %3641 = vmatprep.subr.mxu0 0.0
        %3642 = vmatpush2.msra.mxu0 0.0
        %3643 = vmatprep.subr.mxu0 0.0
        %3644 = vmatpush2.msra.mxu0 0.0
        %3645 = vmatprep.subr.mxu0 0.0
        %3646 = vmatpush2.msra.mxu0 0.0
        %3647 = vmatprep.subr.mxu0 0.0
        %3648 = vmatpush2.msra.mxu0 0.0
        %3649 = vmatprep.subr.mxu0 0.0
        %3650 = vmatpush2.msra.mxu0 0.0
        %3651 = vmatprep.subr.mxu0 0.0
        %3652 = vmatpush2.msra.mxu0 0.0
        %3653 = vmatprep.mubr.f32.mxu0 0.0
        %3654 = vmatmul.mubr.f32.gmra.mxu0 %v3587
        %v3655 = vpop.f32.mrf.mxu0
        %v3656 = vadd.f32 0.0, %v3655
        %v3657 = vpop.f32.mrf.mxu0
        %3658 = vdwg.mxu0
        %3659 = vrot.lane.b32.xlu0 %v2577, 48
        %v3660 = vpop.permute.xlu0 %3659
        %v3663 = vsel %vm525, %v3582, 0
        %3665 = vmatprep.subr.mxu0 0.0
        %3666 = vmatpush1.msra.mxu0 0.0
        %3667 = vmatprep.subr.mxu0 0.0
        %3668 = vmatpush1.msra.mxu0 0.0
        %3669 = vmatprep.subr.mxu0 0.0
        %3670 = vmatpush1.msra.mxu0 0.0
        %3671 = vmatprep.subr.mxu0 0.0
        %3672 = vmatpush1.msra.mxu0 0.0
        %3673 = vmatprep.subr.mxu0 0.0
        %3674 = vmatpush1.msra.mxu0 0.0
        %3675 = vmatprep.subr.mxu0 0.0
        %3676 = vmatpush1.msra.mxu0 0.0
        %3677 = vmatprep.subr.mxu0 0.0
        %3678 = vmatpush1.msra.mxu0 0.0
        %3679 = vmatprep.subr.mxu0 0.0
        %3680 = vmatpush1.msra.mxu0 0.0
        %3681 = vmatprep.subr.mxu0 0.0
        %3682 = vmatpush1.msra.mxu0 0.0
        %3683 = vmatprep.subr.mxu0 0.0
        %3684 = vmatpush1.msra.mxu0 0.0
        %3685 = vmatprep.subr.mxu0 0.0
        %3686 = vmatpush1.msra.mxu0 0.0
        %3687 = vmatprep.subr.mxu0 0.0
        %3688 = vmatpush1.msra.mxu0 0.0
        %3689 = vmatprep.subr.mxu0 0.0
        %3690 = vmatpush1.msra.mxu0 0.0
        %3691 = vmatprep.subr.mxu0 0.0
        %3692 = vmatpush1.msra.mxu0 0.0
        %3693 = vmatprep.subr.mxu0 0.0
        %3694 = vmatpush1.msra.mxu0 0.0
        %3695 = vmatprep.subr.mxu0 0.0
        %3696 = vmatpush1.msra.mxu0 %v3660
        %3697 = vmatprep.subr.mxu0 0.0
        %3698 = vmatpush2.msra.mxu0 0.0
        %3699 = vmatprep.subr.mxu0 0.0
        %3700 = vmatpush2.msra.mxu0 0.0
        %3701 = vmatprep.subr.mxu0 0.0
        %3702 = vmatpush2.msra.mxu0 0.0
        %3703 = vmatprep.subr.mxu0 0.0
        %3704 = vmatpush2.msra.mxu0 0.0
        %3705 = vmatprep.subr.mxu0 0.0
        %3706 = vmatpush2.msra.mxu0 0.0
        %3707 = vmatprep.subr.mxu0 0.0
        %3708 = vmatpush2.msra.mxu0 0.0
        %3709 = vmatprep.subr.mxu0 0.0
        %3710 = vmatpush2.msra.mxu0 0.0
        %3711 = vmatprep.subr.mxu0 0.0
        %3712 = vmatpush2.msra.mxu0 0.0
        %3713 = vmatprep.subr.mxu0 0.0
        %3714 = vmatpush2.msra.mxu0 0.0
        %3715 = vmatprep.subr.mxu0 0.0
        %3716 = vmatpush2.msra.mxu0 0.0
        %3717 = vmatprep.subr.mxu0 0.0
        %3718 = vmatpush2.msra.mxu0 0.0
        %3719 = vmatprep.subr.mxu0 0.0
        %3720 = vmatpush2.msra.mxu0 0.0
        %3721 = vmatprep.subr.mxu0 0.0
        %3722 = vmatpush2.msra.mxu0 0.0
        %3723 = vmatprep.subr.mxu0 0.0
        %3724 = vmatpush2.msra.mxu0 0.0
        %3725 = vmatprep.subr.mxu0 0.0
        %3726 = vmatpush2.msra.mxu0 0.0
        %3727 = vmatprep.subr.mxu0 0.0
        %3728 = vmatpush2.msra.mxu0 0.0
        %3729 = vmatprep.mubr.f32.mxu0 0.0
        %3730 = vmatmul.mubr.f32.gmra.mxu0 %v3663
        %v3731 = vpop.f32.mrf.mxu0
        %v3732 = vadd.f32 0.0, %v3731
        %v3733 = vpop.f32.mrf.mxu0
        %3734 = vdwg.mxu0
        %v3736 = vsel %vm525, %v3656, 0
        %v3739 = vsel %vm525, %v3732, 0
        %3741 = vmatprep.subr.mxu0 0.0
        %3742 = vmatpush1.msra.mxu0 0.0
        %3743 = vmatprep.subr.mxu0 0.0
        %3744 = vmatpush1.msra.mxu0 0.0
        %3745 = vmatprep.subr.mxu0 0.0
        %3746 = vmatpush1.msra.mxu0 0.0
        %3747 = vmatprep.subr.mxu0 0.0
        %3748 = vmatpush1.msra.mxu0 0.0
        %3749 = vmatprep.subr.mxu0 0.0
        %3750 = vmatpush1.msra.mxu0 0.0
        %3751 = vmatprep.subr.mxu0 0.0
        %3752 = vmatpush1.msra.mxu0 0.0
        %3753 = vmatprep.subr.mxu0 0.0
        %3754 = vmatpush1.msra.mxu0 0.0
        %3755 = vmatprep.subr.mxu0 0.0
        %3756 = vmatpush1.msra.mxu0 0.0
        %3757 = vmatprep.subr.mxu0 0.0
        %3758 = vmatpush1.msra.mxu0 0.0
        %3759 = vmatprep.subr.mxu0 0.0
        %3760 = vmatpush1.msra.mxu0 0.0
        %3761 = vmatprep.subr.mxu0 0.0
        %3762 = vmatpush1.msra.mxu0 0.0
        %3763 = vmatprep.subr.mxu0 0.0
        %3764 = vmatpush1.msra.mxu0 0.0
        %3765 = vmatprep.subr.mxu0 0.0
        %3766 = vmatpush1.msra.mxu0 0.0
        %3767 = vmatprep.subr.mxu0 0.0
        %3768 = vmatpush1.msra.mxu0 0.0
        %3769 = vmatprep.subr.mxu0 0.0
        %3770 = vmatpush1.msra.mxu0 0.0
        %3771 = vmatprep.subr.mxu0 0.0
        %3772 = vmatpush1.msra.mxu0 %v2583
        %3773 = vmatprep.subr.mxu0 0.0
        %3774 = vmatpush2.msra.mxu0 0.0
        %3775 = vmatprep.subr.mxu0 0.0
        %3776 = vmatpush2.msra.mxu0 0.0
        %3777 = vmatprep.subr.mxu0 0.0
        %3778 = vmatpush2.msra.mxu0 0.0
        %3779 = vmatprep.subr.mxu0 0.0
        %3780 = vmatpush2.msra.mxu0 0.0
        %3781 = vmatprep.subr.mxu0 0.0
        %3782 = vmatpush2.msra.mxu0 0.0
        %3783 = vmatprep.subr.mxu0 0.0
        %3784 = vmatpush2.msra.mxu0 0.0
        %3785 = vmatprep.subr.mxu0 0.0
        %3786 = vmatpush2.msra.mxu0 0.0
        %3787 = vmatprep.subr.mxu0 0.0
        %3788 = vmatpush2.msra.mxu0 0.0
        %3789 = vmatprep.subr.mxu0 0.0
        %3790 = vmatpush2.msra.mxu0 0.0
        %3791 = vmatprep.subr.mxu0 0.0
        %3792 = vmatpush2.msra.mxu0 0.0
        %3793 = vmatprep.subr.mxu0 0.0
        %3794 = vmatpush2.msra.mxu0 0.0
        %3795 = vmatprep.subr.mxu0 0.0
        %3796 = vmatpush2.msra.mxu0 0.0
        %3797 = vmatprep.subr.mxu0 0.0
        %3798 = vmatpush2.msra.mxu0 0.0
        %3799 = vmatprep.subr.mxu0 0.0
        %3800 = vmatpush2.msra.mxu0 0.0
        %3801 = vmatprep.subr.mxu0 0.0
        %3802 = vmatpush2.msra.mxu0 0.0
        %3803 = vmatprep.subr.mxu0 0.0
        %3804 = vmatpush2.msra.mxu0 0.0
        %3805 = vmatprep.mubr.f32.mxu0 0.0
        %3806 = vmatmul.mubr.f32.gmra.mxu0 %v3736
        %v3807 = vpop.f32.mrf.mxu0
        %v3808 = vadd.f32 0.0, %v3807
        %v3809 = vpop.f32.mrf.mxu0
        %3810 = vmatprep.mubr.f32.mxu0 0.0
        %3811 = vmatmul.mubr.f32.gmra.mxu0 %v3739
        %v3812 = vpop.f32.mrf.mxu0
        %v3813 = vadd.f32 0.0, %v3812
        %v3814 = vpop.f32.mrf.mxu0
        %3815 = vdwg.mxu0
        %v3816 = vadd.f32 %v3397, %v3808
        %v3817 = vadd.f32 %v3402, %v3813
        %3818 = vrot.lane.b32.xlu0 %v2572, 104
        %v3819 = vpop.permute.xlu0 %3818
        %3820 = vrot.lane.b32.xlu0 %v2572, 72
        %v3821 = vpop.permute.xlu0 %3820
        %v3822 = vsel %vm525, %v3819, 0
        %v3824 = vsel %vm525, %v3821, 0
        %3826 = vmatprep.subr.mxu0 0.0
        %3827 = vmatpush1.xpose.msra.mxu0 0.0
        %3828 = vmatprep.subr.mxu0 0.0
        %3829 = vmatpush1.xpose.msra.mxu0 0.0
        %3830 = vmatprep.subr.mxu0 0.0
        %3831 = vmatpush1.xpose.msra.mxu0 0.0
        %3832 = vmatprep.subr.mxu0 0.0
        %3833 = vmatpush1.xpose.msra.mxu0 0.0
        %3834 = vmatprep.subr.mxu0 0.0
        %3835 = vmatpush1.xpose.msra.mxu0 0.0
        %3836 = vmatprep.subr.mxu0 0.0
        %3837 = vmatpush1.xpose.msra.mxu0 0.0
        %3838 = vmatprep.subr.mxu0 0.0
        %3839 = vmatpush1.xpose.msra.mxu0 0.0
        %3840 = vmatprep.subr.mxu0 0.0
        %3841 = vmatpush1.xpose.msra.mxu0 0.0
        %3842 = vmatprep.subr.mxu0 0.0
        %3843 = vmatpush1.xpose.msra.mxu0 0.0
        %3844 = vmatprep.subr.mxu0 0.0
        %3845 = vmatpush1.xpose.msra.mxu0 0.0
        %3846 = vmatprep.subr.mxu0 0.0
        %3847 = vmatpush1.xpose.msra.mxu0 0.0
        %3848 = vmatprep.subr.mxu0 0.0
        %3849 = vmatpush1.xpose.msra.mxu0 0.0
        %3850 = vmatprep.subr.mxu0 0.0
        %3851 = vmatpush1.xpose.msra.mxu0 0.0
        %3852 = vmatprep.subr.mxu0 0.0
        %3853 = vmatpush1.xpose.msra.mxu0 0.0
        %3854 = vmatprep.subr.mxu0 0.0
        %3855 = vmatpush1.xpose.msra.mxu0 0.0
        %3856 = vmatprep.subr.mxu0 0.0
        %3857 = vmatpush1.xpose.msra.mxu0 %v3824
        %3858 = vmatprep.subr.mxu0 0.0
        %3859 = vmatpush2.xpose.msra.mxu0 0.0
        %3860 = vmatprep.subr.mxu0 0.0
        %3861 = vmatpush2.xpose.msra.mxu0 0.0
        %3862 = vmatprep.subr.mxu0 0.0
        %3863 = vmatpush2.xpose.msra.mxu0 0.0
        %3864 = vmatprep.subr.mxu0 0.0
        %3865 = vmatpush2.xpose.msra.mxu0 0.0
        %3866 = vmatprep.subr.mxu0 0.0
        %3867 = vmatpush2.xpose.msra.mxu0 0.0
        %3868 = vmatprep.subr.mxu0 0.0
        %3869 = vmatpush2.xpose.msra.mxu0 0.0
        %3870 = vmatprep.subr.mxu0 0.0
        %3871 = vmatpush2.xpose.msra.mxu0 0.0
        %3872 = vmatprep.subr.mxu0 0.0
        %3873 = vmatpush2.xpose.msra.mxu0 0.0
        %3874 = vmatprep.subr.mxu0 0.0
        %3875 = vmatpush2.xpose.msra.mxu0 0.0
        %3876 = vmatprep.subr.mxu0 0.0
        %3877 = vmatpush2.xpose.msra.mxu0 0.0
        %3878 = vmatprep.subr.mxu0 0.0
        %3879 = vmatpush2.xpose.msra.mxu0 0.0
        %3880 = vmatprep.subr.mxu0 0.0
        %3881 = vmatpush2.xpose.msra.mxu0 0.0
        %3882 = vmatprep.subr.mxu0 0.0
        %3883 = vmatpush2.xpose.msra.mxu0 0.0
        %3884 = vmatprep.subr.mxu0 0.0
        %3885 = vmatpush2.xpose.msra.mxu0 0.0
        %3886 = vmatprep.subr.mxu0 0.0
        %3887 = vmatpush2.xpose.msra.mxu0 0.0
        %3888 = vmatprep.subr.mxu0 0.0
        %3889 = vmatpush2.xpose.msra.mxu0 0.0
        %3890 = vmatprep.mubr.f32.mxu0 0.0
        %3891 = vmatmul.mubr.f32.gmra.mxu0 %v3822
        %v3892 = vpop.f32.mrf.mxu0
        %v3893 = vadd.f32 0.0, %v3892
        %v3894 = vpop.f32.mrf.mxu0
        %3895 = vdwg.mxu0
        %3896 = vrot.lane.b32.xlu0 %v2577, 104
        %v3897 = vpop.permute.xlu0 %3896
        %3898 = vrot.lane.b32.xlu0 %v2577, 72
        %v3899 = vpop.permute.xlu0 %3898
        %v3900 = vsel %vm525, %v3897, 0
        %v3902 = vsel %vm525, %v3899, 0
        %3904 = vmatprep.subr.mxu0 0.0
        %3905 = vmatpush1.xpose.msra.mxu0 0.0
        %3906 = vmatprep.subr.mxu0 0.0
        %3907 = vmatpush1.xpose.msra.mxu0 0.0
        %3908 = vmatprep.subr.mxu0 0.0
        %3909 = vmatpush1.xpose.msra.mxu0 0.0
        %3910 = vmatprep.subr.mxu0 0.0
        %3911 = vmatpush1.xpose.msra.mxu0 0.0
        %3912 = vmatprep.subr.mxu0 0.0
        %3913 = vmatpush1.xpose.msra.mxu0 0.0
        %3914 = vmatprep.subr.mxu0 0.0
        %3915 = vmatpush1.xpose.msra.mxu0 0.0
        %3916 = vmatprep.subr.mxu0 0.0
        %3917 = vmatpush1.xpose.msra.mxu0 0.0
        %3918 = vmatprep.subr.mxu0 0.0
        %3919 = vmatpush1.xpose.msra.mxu0 0.0
        %3920 = vmatprep.subr.mxu0 0.0
        %3921 = vmatpush1.xpose.msra.mxu0 0.0
        %3922 = vmatprep.subr.mxu0 0.0
        %3923 = vmatpush1.xpose.msra.mxu0 0.0
        %3924 = vmatprep.subr.mxu0 0.0
        %3925 = vmatpush1.xpose.msra.mxu0 0.0
        %3926 = vmatprep.subr.mxu0 0.0
        %3927 = vmatpush1.xpose.msra.mxu0 0.0
        %3928 = vmatprep.subr.mxu0 0.0
        %3929 = vmatpush1.xpose.msra.mxu0 0.0
        %3930 = vmatprep.subr.mxu0 0.0
        %3931 = vmatpush1.xpose.msra.mxu0 0.0
        %3932 = vmatprep.subr.mxu0 0.0
        %3933 = vmatpush1.xpose.msra.mxu0 0.0
        %3934 = vmatprep.subr.mxu0 0.0
        %3935 = vmatpush1.xpose.msra.mxu0 %v3902
        %3936 = vmatprep.subr.mxu0 0.0
        %3937 = vmatpush2.xpose.msra.mxu0 0.0
        %3938 = vmatprep.subr.mxu0 0.0
        %3939 = vmatpush2.xpose.msra.mxu0 0.0
        %3940 = vmatprep.subr.mxu0 0.0
        %3941 = vmatpush2.xpose.msra.mxu0 0.0
        %3942 = vmatprep.subr.mxu0 0.0
        %3943 = vmatpush2.xpose.msra.mxu0 0.0
        %3944 = vmatprep.subr.mxu0 0.0
        %3945 = vmatpush2.xpose.msra.mxu0 0.0
        %3946 = vmatprep.subr.mxu0 0.0
        %3947 = vmatpush2.xpose.msra.mxu0 0.0
        %3948 = vmatprep.subr.mxu0 0.0
        %3949 = vmatpush2.xpose.msra.mxu0 0.0
        %3950 = vmatprep.subr.mxu0 0.0
        %3951 = vmatpush2.xpose.msra.mxu0 0.0
        %3952 = vmatprep.subr.mxu0 0.0
        %3953 = vmatpush2.xpose.msra.mxu0 0.0
        %3954 = vmatprep.subr.mxu0 0.0
        %3955 = vmatpush2.xpose.msra.mxu0 0.0
        %3956 = vmatprep.subr.mxu0 0.0
        %3957 = vmatpush2.xpose.msra.mxu0 0.0
        %3958 = vmatprep.subr.mxu0 0.0
        %3959 = vmatpush2.xpose.msra.mxu0 0.0
        %3960 = vmatprep.subr.mxu0 0.0
        %3961 = vmatpush2.xpose.msra.mxu0 0.0
        %3962 = vmatprep.subr.mxu0 0.0
        %3963 = vmatpush2.xpose.msra.mxu0 0.0
        %3964 = vmatprep.subr.mxu0 0.0
        %3965 = vmatpush2.xpose.msra.mxu0 0.0
        %3966 = vmatprep.subr.mxu0 0.0
        %3967 = vmatpush2.xpose.msra.mxu0 0.0
        %3968 = vmatprep.mubr.f32.mxu0 0.0
        %3969 = vmatmul.mubr.f32.gmra.mxu0 %v3900
        %v3970 = vpop.f32.mrf.mxu0
        %v3971 = vadd.f32 0.0, %v3970
        %v3972 = vpop.f32.mrf.mxu0
        %3973 = vdwg.mxu0
        %v3974 = vsel %vm525, %v3893, -inf
        %3975 = vmax.xlane.f32.xlu0 %v3974
        %v3976 = vpop.xlane.xlu0 %3975
        %v3977 = vsel %vm525, %v3971, -inf
        %3978 = vmax.xlane.f32.xlu0 %v3977
        %v3979 = vpop.xlane.xlu0 %3978
        %v3980 = vsub.f32 %v3893, %v3976
        %v3981 = vsub.f32 %v3971, %v3979
        %v3982 = vmul.f32 %v3980, 1.442695
        %v3983 = vpow.pop %v3982
        %v3984 = vmul.f32 %v3981, 1.442695
        %v3985 = vpow.pop %v3984
        %v3986 = vsel %vm525, %v3983, 0.0
        %3987 = vadd.xlane.f32.xlu0 %v3986
        %v3988 = vpop.xlane.xlu0 %3987
        %v3989 = vsel %vm525, %v3985, 0.0
        %3990 = vadd.xlane.f32.xlu0 %v3989
        %v3991 = vpop.xlane.xlu0 %3990
        %v3992 = vrcp.pop %v3988
        %v3993 = vrcp.pop %v3991
        %v3994 = vmul.f32 %v3983, %v3992
        %v3995 = vmul.f32 %v3985, %v3993
        %3996 = vrot.lane.b32.xlu0 %v2572, 40
        %v3997 = vpop.permute.xlu0 %3996
        %v4000 = vsel %vm525, %v3994, 0
        %4002 = vmatprep.subr.mxu0 0.0
        %4003 = vmatpush1.msra.mxu0 0.0
        %4004 = vmatprep.subr.mxu0 0.0
        %4005 = vmatpush1.msra.mxu0 0.0
        %4006 = vmatprep.subr.mxu0 0.0
        %4007 = vmatpush1.msra.mxu0 0.0
        %4008 = vmatprep.subr.mxu0 0.0
        %4009 = vmatpush1.msra.mxu0 0.0
        %4010 = vmatprep.subr.mxu0 0.0
        %4011 = vmatpush1.msra.mxu0 0.0
        %4012 = vmatprep.subr.mxu0 0.0
        %4013 = vmatpush1.msra.mxu0 0.0
        %4014 = vmatprep.subr.mxu0 0.0
        %4015 = vmatpush1.msra.mxu0 0.0
        %4016 = vmatprep.subr.mxu0 0.0
        %4017 = vmatpush1.msra.mxu0 0.0
        %4018 = vmatprep.subr.mxu0 0.0
        %4019 = vmatpush1.msra.mxu0 0.0
        %4020 = vmatprep.subr.mxu0 0.0
        %4021 = vmatpush1.msra.mxu0 0.0
        %4022 = vmatprep.subr.mxu0 0.0
        %4023 = vmatpush1.msra.mxu0 0.0
        %4024 = vmatprep.subr.mxu0 0.0
        %4025 = vmatpush1.msra.mxu0 0.0
        %4026 = vmatprep.subr.mxu0 0.0
        %4027 = vmatpush1.msra.mxu0 0.0
        %4028 = vmatprep.subr.mxu0 0.0
        %4029 = vmatpush1.msra.mxu0 0.0
        %4030 = vmatprep.subr.mxu0 0.0
        %4031 = vmatpush1.msra.mxu0 0.0
        %4032 = vmatprep.subr.mxu0 0.0
        %4033 = vmatpush1.msra.mxu0 %v3997
        %4034 = vmatprep.subr.mxu0 0.0
        %4035 = vmatpush2.msra.mxu0 0.0
        %4036 = vmatprep.subr.mxu0 0.0
        %4037 = vmatpush2.msra.mxu0 0.0
        %4038 = vmatprep.subr.mxu0 0.0
        %4039 = vmatpush2.msra.mxu0 0.0
        %4040 = vmatprep.subr.mxu0 0.0
        %4041 = vmatpush2.msra.mxu0 0.0
        %4042 = vmatprep.subr.mxu0 0.0
        %4043 = vmatpush2.msra.mxu0 0.0
        %4044 = vmatprep.subr.mxu0 0.0
        %4045 = vmatpush2.msra.mxu0 0.0
        %4046 = vmatprep.subr.mxu0 0.0
        %4047 = vmatpush2.msra.mxu0 0.0
        %4048 = vmatprep.subr.mxu0 0.0
        %4049 = vmatpush2.msra.mxu0 0.0
        %4050 = vmatprep.subr.mxu0 0.0
        %4051 = vmatpush2.msra.mxu0 0.0
        %4052 = vmatprep.subr.mxu0 0.0
        %4053 = vmatpush2.msra.mxu0 0.0
        %4054 = vmatprep.subr.mxu0 0.0
        %4055 = vmatpush2.msra.mxu0 0.0
        %4056 = vmatprep.subr.mxu0 0.0
        %4057 = vmatpush2.msra.mxu0 0.0
        %4058 = vmatprep.subr.mxu0 0.0
        %4059 = vmatpush2.msra.mxu0 0.0
        %4060 = vmatprep.subr.mxu0 0.0
        %4061 = vmatpush2.msra.mxu0 0.0
        %4062 = vmatprep.subr.mxu0 0.0
        %4063 = vmatpush2.msra.mxu0 0.0
        %4064 = vmatprep.subr.mxu0 0.0
        %4065 = vmatpush2.msra.mxu0 0.0
        %4066 = vmatprep.mubr.f32.mxu0 0.0
        %4067 = vmatmul.mubr.f32.gmra.mxu0 %v4000
        %v4068 = vpop.f32.mrf.mxu0
        %v4069 = vadd.f32 0.0, %v4068
        %v4070 = vpop.f32.mrf.mxu0
        %4071 = vdwg.mxu0
        %4072 = vrot.lane.b32.xlu0 %v2577, 40
        %v4073 = vpop.permute.xlu0 %4072
        %v4076 = vsel %vm525, %v3995, 0
        %4078 = vmatprep.subr.mxu0 0.0
        %4079 = vmatpush1.msra.mxu0 0.0
        %4080 = vmatprep.subr.mxu0 0.0
        %4081 = vmatpush1.msra.mxu0 0.0
        %4082 = vmatprep.subr.mxu0 0.0
        %4083 = vmatpush1.msra.mxu0 0.0
        %4084 = vmatprep.subr.mxu0 0.0
        %4085 = vmatpush1.msra.mxu0 0.0
        %4086 = vmatprep.subr.mxu0 0.0
        %4087 = vmatpush1.msra.mxu0 0.0
        %4088 = vmatprep.subr.mxu0 0.0
        %4089 = vmatpush1.msra.mxu0 0.0
        %4090 = vmatprep.subr.mxu0 0.0
        %4091 = vmatpush1.msra.mxu0 0.0
        %4092 = vmatprep.subr.mxu0 0.0
        %4093 = vmatpush1.msra.mxu0 0.0
        %4094 = vmatprep.subr.mxu0 0.0
        %4095 = vmatpush1.msra.mxu0 0.0
        %4096 = vmatprep.subr.mxu0 0.0
        %4097 = vmatpush1.msra.mxu0 0.0
        %4098 = vmatprep.subr.mxu0 0.0
        %4099 = vmatpush1.msra.mxu0 0.0
        %4100 = vmatprep.subr.mxu0 0.0
        %4101 = vmatpush1.msra.mxu0 0.0
        %4102 = vmatprep.subr.mxu0 0.0
        %4103 = vmatpush1.msra.mxu0 0.0
        %4104 = vmatprep.subr.mxu0 0.0
        %4105 = vmatpush1.msra.mxu0 0.0
        %4106 = vmatprep.subr.mxu0 0.0
        %4107 = vmatpush1.msra.mxu0 0.0
        %4108 = vmatprep.subr.mxu0 0.0
        %4109 = vmatpush1.msra.mxu0 %v4073
        %4110 = vmatprep.subr.mxu0 0.0
        %4111 = vmatpush2.msra.mxu0 0.0
        %4112 = vmatprep.subr.mxu0 0.0
        %4113 = vmatpush2.msra.mxu0 0.0
        %4114 = vmatprep.subr.mxu0 0.0
        %4115 = vmatpush2.msra.mxu0 0.0
        %4116 = vmatprep.subr.mxu0 0.0
        %4117 = vmatpush2.msra.mxu0 0.0
        %4118 = vmatprep.subr.mxu0 0.0
        %4119 = vmatpush2.msra.mxu0 0.0
        %4120 = vmatprep.subr.mxu0 0.0
        %4121 = vmatpush2.msra.mxu0 0.0
        %4122 = vmatprep.subr.mxu0 0.0
        %4123 = vmatpush2.msra.mxu0 0.0
        %4124 = vmatprep.subr.mxu0 0.0
        %4125 = vmatpush2.msra.mxu0 0.0
        %4126 = vmatprep.subr.mxu0 0.0
        %4127 = vmatpush2.msra.mxu0 0.0
        %4128 = vmatprep.subr.mxu0 0.0
        %4129 = vmatpush2.msra.mxu0 0.0
        %4130 = vmatprep.subr.mxu0 0.0
        %4131 = vmatpush2.msra.mxu0 0.0
        %4132 = vmatprep.subr.mxu0 0.0
        %4133 = vmatpush2.msra.mxu0 0.0
        %4134 = vmatprep.subr.mxu0 0.0
        %4135 = vmatpush2.msra.mxu0 0.0
        %4136 = vmatprep.subr.mxu0 0.0
        %4137 = vmatpush2.msra.mxu0 0.0
        %4138 = vmatprep.subr.mxu0 0.0
        %4139 = vmatpush2.msra.mxu0 0.0
        %4140 = vmatprep.subr.mxu0 0.0
        %4141 = vmatpush2.msra.mxu0 0.0
        %4142 = vmatprep.mubr.f32.mxu0 0.0
        %4143 = vmatmul.mubr.f32.gmra.mxu0 %v4076
        %v4144 = vpop.f32.mrf.mxu0
        %v4145 = vadd.f32 0.0, %v4144
        %v4146 = vpop.f32.mrf.mxu0
        %4147 = vdwg.mxu0
        %v4149 = vsel %vm525, %v4069, 0
        %v4152 = vsel %vm525, %v4145, 0
        %4154 = vmatprep.subr.mxu0 0.0
        %4155 = vmatpush1.msra.mxu0 0.0
        %4156 = vmatprep.subr.mxu0 0.0
        %4157 = vmatpush1.msra.mxu0 0.0
        %4158 = vmatprep.subr.mxu0 0.0
        %4159 = vmatpush1.msra.mxu0 0.0
        %4160 = vmatprep.subr.mxu0 0.0
        %4161 = vmatpush1.msra.mxu0 0.0
        %4162 = vmatprep.subr.mxu0 0.0
        %4163 = vmatpush1.msra.mxu0 0.0
        %4164 = vmatprep.subr.mxu0 0.0
        %4165 = vmatpush1.msra.mxu0 0.0
        %4166 = vmatprep.subr.mxu0 0.0
        %4167 = vmatpush1.msra.mxu0 0.0
        %4168 = vmatprep.subr.mxu0 0.0
        %4169 = vmatpush1.msra.mxu0 0.0
        %4170 = vmatprep.subr.mxu0 0.0
        %4171 = vmatpush1.msra.mxu0 0.0
        %4172 = vmatprep.subr.mxu0 0.0
        %4173 = vmatpush1.msra.mxu0 0.0
        %4174 = vmatprep.subr.mxu0 0.0
        %4175 = vmatpush1.msra.mxu0 0.0
        %4176 = vmatprep.subr.mxu0 0.0
        %4177 = vmatpush1.msra.mxu0 0.0
        %4178 = vmatprep.subr.mxu0 0.0
        %4179 = vmatpush1.msra.mxu0 0.0
        %4180 = vmatprep.subr.mxu0 0.0
        %4181 = vmatpush1.msra.mxu0 0.0
        %4182 = vmatprep.subr.mxu0 0.0
        %4183 = vmatpush1.msra.mxu0 0.0
        %4184 = vmatprep.subr.mxu0 0.0
        %4185 = vmatpush1.msra.mxu0 %v2584
        %4186 = vmatprep.subr.mxu0 0.0
        %4187 = vmatpush2.msra.mxu0 0.0
        %4188 = vmatprep.subr.mxu0 0.0
        %4189 = vmatpush2.msra.mxu0 0.0
        %4190 = vmatprep.subr.mxu0 0.0
        %4191 = vmatpush2.msra.mxu0 0.0
        %4192 = vmatprep.subr.mxu0 0.0
        %4193 = vmatpush2.msra.mxu0 0.0
        %4194 = vmatprep.subr.mxu0 0.0
        %4195 = vmatpush2.msra.mxu0 0.0
        %4196 = vmatprep.subr.mxu0 0.0
        %4197 = vmatpush2.msra.mxu0 0.0
        %4198 = vmatprep.subr.mxu0 0.0
        %4199 = vmatpush2.msra.mxu0 0.0
        %4200 = vmatprep.subr.mxu0 0.0
        %4201 = vmatpush2.msra.mxu0 0.0
        %4202 = vmatprep.subr.mxu0 0.0
        %4203 = vmatpush2.msra.mxu0 0.0
        %4204 = vmatprep.subr.mxu0 0.0
        %4205 = vmatpush2.msra.mxu0 0.0
        %4206 = vmatprep.subr.mxu0 0.0
        %4207 = vmatpush2.msra.mxu0 0.0
        %4208 = vmatprep.subr.mxu0 0.0
        %4209 = vmatpush2.msra.mxu0 0.0
        %4210 = vmatprep.subr.mxu0 0.0
        %4211 = vmatpush2.msra.mxu0 0.0
        %4212 = vmatprep.subr.mxu0 0.0
        %4213 = vmatpush2.msra.mxu0 0.0
        %4214 = vmatprep.subr.mxu0 0.0
        %4215 = vmatpush2.msra.mxu0 0.0
        %4216 = vmatprep.subr.mxu0 0.0
        %4217 = vmatpush2.msra.mxu0 0.0
        %4218 = vmatprep.mubr.f32.mxu0 0.0
        %4219 = vmatmul.mubr.f32.gmra.mxu0 %v4149
        %v4220 = vpop.f32.mrf.mxu0
        %v4221 = vadd.f32 0.0, %v4220
        %v4222 = vpop.f32.mrf.mxu0
        %4223 = vmatprep.mubr.f32.mxu0 0.0
        %4224 = vmatmul.mubr.f32.gmra.mxu0 %v4152
        %v4225 = vpop.f32.mrf.mxu0
        %v4226 = vadd.f32 0.0, %v4225
        %v4227 = vpop.f32.mrf.mxu0
        %4228 = vdwg.mxu0
        %v4229 = vadd.f32 %v3816, %v4221
        %v4230 = vadd.f32 %v3817, %v4226
        %v4231 = vadd.f32 %v2452, %v4229
        %v4232 = vadd.f32 %v2453, %v4230
        %v4233 = vlaneseq
        %v4234 = vshrl.u32 %v4233, 7
        %v4235 = vsub.s32 2, %v4234
        %v4236 = vrot.slane %v2455, %v4235
        %v4237 = vadd.f32 %v4231, %v4236
        %v4238 = vadd.f32 %v4232, %v4236
        %v4239 = vsel %vm393, %v4237, 0.0
        %4240 = vadd.xlane.f32.xlu0 %v4239
        %v4241 = vpop.xlane.xlu0 %4240
        %v4242 = vsel %vm393, %v4238, 0.0
        %4243 = vadd.xlane.f32.xlu0 %v4242
        %v4244 = vpop.xlane.xlu0 %4243
        %v4245 = vmul.f32 %v4241, %v400
        %v4246 = vmul.f32 %v4244, %v400
        %v4247 = vsub.f32 %v4237, %v4245
        %v4248 = vsub.f32 %v4238, %v4246
        %v4249 = vmul.f32 %v4247, %v4247
        %v4250 = vmul.f32 %v4248, %v4248
        %v4251 = vsel %vm393, %v4249, 0.0
        %4252 = vadd.xlane.f32.xlu0 %v4251
        %v4253 = vpop.xlane.xlu0 %4252
        %v4254 = vsel %vm393, %v4250, 0.0
        %4255 = vadd.xlane.f32.xlu0 %v4254
        %v4256 = vpop.xlane.xlu0 %4255
        %v4257 = vmul.f32 %v4253, %v400
        %v4258 = vmul.f32 %v4256, %v400
        %v4259 = vadd.f32 %v4257, 1e-05
        %v4260 = vadd.f32 %v4258, 1e-05
        %v4261 = vrsqrt.pop %v4259
        %v4262 = vrsqrt.pop %v4260
        %v4263 = vmul.f32 %v4247, %v4261
        %v4264 = vmul.f32 %v4248, %v4262
        %v4265 = vlaneseq
        %v4266 = vshrl.u32 %v4265, 7
        %v4267 = vsub.s32 3, %v4266
        %v4268 = vrot.slane %v2455, %v4267
        %v4269 = vmul.f32 %v4263, %v4268
        %v4270 = vmul.f32 %v4264, %v4268
        %v4271 = vlaneseq
        %v4272 = vshrl.u32 %v4271, 7
        %v4273 = vsub.s32 4, %v4272
        %v4274 = vrot.slane %v2455, %v4273
        %v4275 = vadd.f32 %v4269, %v4274
        %v4276 = vadd.f32 %v4270, %v4274
        %s4277 = scalar_lea.vmem %s384, 32
        %v4278 = vld [vmem:[%s4277] sm:$0xff]
        %v4279 = vld [vmem:[%s4277 + $0x8] sm:$0xff]
        %v4280 = vld [vmem:[%s4277 + $0x10] sm:$0xff]
        %v4281 = vld [vmem:[%s4277 + $0x18] sm:$0xff]
        %v4282 = vlaneseq
        %v4283 = vshrl.u32 %v4282, 7
        %v4284 = vsub.s32 6, %v4283
        %v4285 = vrot.slane %v2455, %v4284
        %v4287 = vsel %vm393, %v4275, 0
        %v4290 = vsel %vm393, %v4276, 0
        %4292 = vmatprep.subr.mxu0 0.0
        %4293 = vmatpush1.msra.mxu0 0.0
        %4294 = vmatprep.subr.mxu0 0.0
        %4295 = vmatpush1.msra.mxu0 0.0
        %4296 = vmatprep.subr.mxu0 0.0
        %4297 = vmatpush1.msra.mxu0 0.0
        %4298 = vmatprep.subr.mxu0 0.0
        %4299 = vmatpush1.msra.mxu0 0.0
        %4300 = vmatprep.subr.mxu0 0.0
        %4301 = vmatpush1.msra.mxu0 0.0
        %4302 = vmatprep.subr.mxu0 0.0
        %4303 = vmatpush1.msra.mxu0 0.0
        %4304 = vmatprep.subr.mxu0 0.0
        %4305 = vmatpush1.msra.mxu0 0.0
        %4306 = vmatprep.subr.mxu0 0.0
        %4307 = vmatpush1.msra.mxu0 0.0
        %4308 = vmatprep.subr.mxu0 0.0
        %4309 = vmatpush1.msra.mxu0 0.0
        %4310 = vmatprep.subr.mxu0 0.0
        %4311 = vmatpush1.msra.mxu0 0.0
        %4312 = vmatprep.subr.mxu0 0.0
        %4313 = vmatpush1.msra.mxu0 0.0
        %4314 = vmatprep.subr.mxu0 0.0
        %4315 = vmatpush1.msra.mxu0 0.0
        %4316 = vmatprep.subr.mxu0 0.0
        %4317 = vmatpush1.msra.mxu0 %v4281
        %4318 = vmatprep.subr.mxu0 0.0
        %4319 = vmatpush1.msra.mxu0 %v4280
        %4320 = vmatprep.subr.mxu0 0.0
        %4321 = vmatpush1.msra.mxu0 %v4279
        %4322 = vmatprep.subr.mxu0 0.0
        %4323 = vmatpush1.msra.mxu0 %v4278
        %4324 = vmatprep.subr.mxu0 0.0
        %4325 = vmatpush2.msra.mxu0 0.0
        %4326 = vmatprep.subr.mxu0 0.0
        %4327 = vmatpush2.msra.mxu0 0.0
        %4328 = vmatprep.subr.mxu0 0.0
        %4329 = vmatpush2.msra.mxu0 0.0
        %4330 = vmatprep.subr.mxu0 0.0
        %4331 = vmatpush2.msra.mxu0 0.0
        %4332 = vmatprep.subr.mxu0 0.0
        %4333 = vmatpush2.msra.mxu0 0.0
        %4334 = vmatprep.subr.mxu0 0.0
        %4335 = vmatpush2.msra.mxu0 0.0
        %4336 = vmatprep.subr.mxu0 0.0
        %4337 = vmatpush2.msra.mxu0 0.0
        %4338 = vmatprep.subr.mxu0 0.0
        %4339 = vmatpush2.msra.mxu0 0.0
        %4340 = vmatprep.subr.mxu0 0.0
        %4341 = vmatpush2.msra.mxu0 0.0
        %4342 = vmatprep.subr.mxu0 0.0
        %4343 = vmatpush2.msra.mxu0 0.0
        %4344 = vmatprep.subr.mxu0 0.0
        %4345 = vmatpush2.msra.mxu0 0.0
        %4346 = vmatprep.subr.mxu0 0.0
        %4347 = vmatpush2.msra.mxu0 0.0
        %4348 = vmatprep.subr.mxu0 0.0
        %4349 = vmatpush2.msra.mxu0 0.0
        %4350 = vmatprep.subr.mxu0 0.0
        %4351 = vmatpush2.msra.mxu0 0.0
        %4352 = vmatprep.subr.mxu0 0.0
        %4353 = vmatpush2.msra.mxu0 0.0
        %4354 = vmatprep.subr.mxu0 0.0
        %4355 = vmatpush2.msra.mxu0 0.0
        %4356 = vmatprep.mubr.f32.mxu0 0.0
        %4357 = vmatmul.mubr.f32.gmra.mxu0 %v4287
        %v4358 = vpop.f32.mrf.mxu0
        %v4359 = vadd.f32 %v4285, %v4358
        %v4360 = vpop.f32.mrf.mxu0
        %4361 = vmatprep.mubr.f32.mxu0 0.0
        %4362 = vmatmul.mubr.f32.gmra.mxu0 %v4290
        %v4363 = vpop.f32.mrf.mxu0
        %v4364 = vadd.f32 %v4285, %v4363
        %v4365 = vpop.f32.mrf.mxu0
        %4366 = vdwg.mxu0
        %v4367 = vmul.f32 %v4359, 0.5
        %v4368 = vmul.f32 %v4364, 0.5
        %v4369 = vmul.f32 %v4359, 0.70710677
        %v4370 = vmul.f32 %v4364, 0.70710677
        %v4371 = vand.u32 2147483647, %v4369
        %v4372 = vand.u32 2147483647, %v4370
        %v4373 = vmul.f32 %v4371, 0.3275911
        %v4374 = vmul.f32 %v4372, 0.3275911
        %v4375 = vadd.f32 %v4373, 1.0
        %v4376 = vadd.f32 %v4374, 1.0
        %v4377 = vrcp.pop %v4375
        %v4378 = vmul.f32 1.0, %v4377
        %v4379 = vrcp.pop %v4376
        %v4380 = vmul.f32 1.0, %v4379
        %v4381 = vmul.f32 %v4378, 1.0614054
        %v4382 = vmul.f32 %v4380, 1.0614054
        %v4383 = vadd.f32 %v4381, -1.4531521
        %v4384 = vadd.f32 %v4382, -1.4531521
        %v4385 = vmul.f32 %v4378, %v4383
        %v4386 = vmul.f32 %v4380, %v4384
        %v4387 = vadd.f32 %v4385, 1.4214138
        %v4388 = vadd.f32 %v4386, 1.4214138
        %v4389 = vmul.f32 %v4378, %v4387
        %v4390 = vmul.f32 %v4380, %v4388
        %v4391 = vadd.f32 %v4389, -0.28449672
        %v4392 = vadd.f32 %v4390, -0.28449672
        %v4393 = vmul.f32 %v4378, %v4391
        %v4394 = vmul.f32 %v4380, %v4392
        %v4395 = vadd.f32 %v4393, 0.2548296
        %v4396 = vadd.f32 %v4394, 0.2548296
        %v4397 = vmul.f32 %v4378, %v4395
        %v4398 = vmul.f32 %v4380, %v4396
        %v4399 = vsub.f32 0.0, %v4371
        %v4400 = vsub.f32 0.0, %v4372
        %v4401 = vmul.f32 %v4399, %v4371
        %v4402 = vmul.f32 %v4400, %v4372
        %v4403 = vmul.f32 %v4401, 1.442695
        %v4404 = vpow.pop %v4403
        %v4405 = vmul.f32 %v4402, 1.442695
        %v4406 = vpow.pop %v4405
        %v4407 = vmul.f32 %v4397, %v4404
        %v4408 = vmul.f32 %v4398, %v4406
        %v4409 = vsub.f32 1.0, %v4407
        %v4410 = vsub.f32 1.0, %v4408
        %vm4411 = vcmp.ge.f32.partialorder %v4369, 0.0
        %vm4412 = vcmp.ge.f32.partialorder %v4370, 0.0
        %v4413 = vsub.f32 0.0, %v4409
        %v4414 = vsub.f32 0.0, %v4410
        %v4415 = vsel %vm4411, %v4409, %v4413
        %v4416 = vsel %vm4412, %v4410, %v4414
        %v4417 = vadd.f32 %v4415, 1.0
        %v4418 = vadd.f32 %v4416, 1.0
        %v4419 = vmul.f32 %v4367, %v4417
        %v4420 = vmul.f32 %v4368, %v4418
        %s4421 = scalar_lea.vmem %s389, 64
        %v4422 = vld [vmem:[%s4421] sm:$0xff]
        %v4423 = vld [vmem:[%s4421 + $0x8] sm:$0xff]
        %v4424 = vld [vmem:[%s4421 + $0x10] sm:$0xff]
        %v4425 = vld [vmem:[%s4421 + $0x18] sm:$0xff]
        %v4426 = vld [vmem:[%s4421 + $0x20] sm:$0xff]
        %v4427 = vld [vmem:[%s4421 + $0x28] sm:$0xff]
        %v4428 = vld [vmem:[%s4421 + $0x30] sm:$0xff]
        %v4429 = vld [vmem:[%s4421 + $0x38] sm:$0xff]
        %v4430 = vlaneseq
        %v4431 = vshrl.u32 %v4430, 7
        %v4432 = vsub.s32 5, %v4431
        %v4433 = vrot.slane %v2455, %v4432
        %v4435 = vsel %vm2370, %v4419, 0
        %v4438 = vsel %vm2370, %v4420, 0
        %4440 = vmatprep.subr.mxu0 0.0
        %4441 = vmatpush1.msra.mxu0 0.0
        %4442 = vmatprep.subr.mxu0 0.0
        %4443 = vmatpush1.msra.mxu0 0.0
        %4444 = vmatprep.subr.mxu0 0.0
        %4445 = vmatpush1.msra.mxu0 0.0
        %4446 = vmatprep.subr.mxu0 0.0
        %4447 = vmatpush1.msra.mxu0 0.0
        %4448 = vmatprep.subr.mxu0 0.0
        %4449 = vmatpush1.msra.mxu0 0.0
        %4450 = vmatprep.subr.mxu0 0.0
        %4451 = vmatpush1.msra.mxu0 0.0
        %4452 = vmatprep.subr.mxu0 0.0
        %4453 = vmatpush1.msra.mxu0 0.0
        %4454 = vmatprep.subr.mxu0 0.0
        %4455 = vmatpush1.msra.mxu0 0.0
        %4456 = vmatprep.subr.mxu0 0.0
        %4457 = vmatpush1.msra.mxu0 %v4429
        %4458 = vmatprep.subr.mxu0 0.0
        %4459 = vmatpush1.msra.mxu0 %v4428
        %4460 = vmatprep.subr.mxu0 0.0
        %4461 = vmatpush1.msra.mxu0 %v4427
        %4462 = vmatprep.subr.mxu0 0.0
        %4463 = vmatpush1.msra.mxu0 %v4426
        %4464 = vmatprep.subr.mxu0 0.0
        %4465 = vmatpush1.msra.mxu0 %v4425
        %4466 = vmatprep.subr.mxu0 0.0
        %4467 = vmatpush1.msra.mxu0 %v4424
        %4468 = vmatprep.subr.mxu0 0.0
        %4469 = vmatpush1.msra.mxu0 %v4423
        %4470 = vmatprep.subr.mxu0 0.0
        %4471 = vmatpush1.msra.mxu0 %v4422
        %4472 = vmatprep.subr.mxu0 0.0
        %4473 = vmatpush2.msra.mxu0 0.0
        %4474 = vmatprep.subr.mxu0 0.0
        %4475 = vmatpush2.msra.mxu0 0.0
        %4476 = vmatprep.subr.mxu0 0.0
        %4477 = vmatpush2.msra.mxu0 0.0
        %4478 = vmatprep.subr.mxu0 0.0
        %4479 = vmatpush2.msra.mxu0 0.0
        %4480 = vmatprep.subr.mxu0 0.0
        %4481 = vmatpush2.msra.mxu0 0.0
        %4482 = vmatprep.subr.mxu0 0.0
        %4483 = vmatpush2.msra.mxu0 0.0
        %4484 = vmatprep.subr.mxu0 0.0
        %4485 = vmatpush2.msra.mxu0 0.0
        %4486 = vmatprep.subr.mxu0 0.0
        %4487 = vmatpush2.msra.mxu0 0.0
        %4488 = vmatprep.subr.mxu0 0.0
        %4489 = vmatpush2.msra.mxu0 0.0
        %4490 = vmatprep.subr.mxu0 0.0
        %4491 = vmatpush2.msra.mxu0 0.0
        %4492 = vmatprep.subr.mxu0 0.0
        %4493 = vmatpush2.msra.mxu0 0.0
        %4494 = vmatprep.subr.mxu0 0.0
        %4495 = vmatpush2.msra.mxu0 0.0
        %4496 = vmatprep.subr.mxu0 0.0
        %4497 = vmatpush2.msra.mxu0 0.0
        %4498 = vmatprep.subr.mxu0 0.0
        %4499 = vmatpush2.msra.mxu0 0.0
        %4500 = vmatprep.subr.mxu0 0.0
        %4501 = vmatpush2.msra.mxu0 0.0
        %4502 = vmatprep.subr.mxu0 0.0
        %4503 = vmatpush2.msra.mxu0 0.0
        %4504 = vmatprep.mubr.f32.mxu0 0.0
        %4505 = vmatmul.mubr.f32.gmra.mxu0 %v4435
        %v4506 = vpop.f32.mrf.mxu0
        %v4507 = vadd.f32 %v4433, %v4506
        %v4508 = vpop.f32.mrf.mxu0
        %4509 = vmatprep.mubr.f32.mxu0 0.0
        %4510 = vmatmul.mubr.f32.gmra.mxu0 %v4438
        %v4511 = vpop.f32.mrf.mxu0
        %v4512 = vadd.f32 %v4433, %v4511
        %v4513 = vpop.f32.mrf.mxu0
        %4514 = vdwg.mxu0
        %v4515 = vadd.f32 %v4237, %v4507
        %v4516 = vadd.f32 %v4238, %v4512
        %4517 = vst.msk [vmem:[%s369] sm:$0xff] %vm393, %v4515
        %4518 = vst.msk [vmem:[%s369 + $0x8] sm:$0xff] %vm393, %v4516
        %s4519 = sand.u32 %s190, 1
        %s4520 = scalar_lea.sflag [#allocation4], %s4519
        %s4521 = sand.u32 %s190, 1
        %s4522 = smul.addr %s4521, 16
        %s4523 = scalar_lea.vmem [#allocation7], %s4522
        // Predicated region
        $region53: #{tpu_custom_call.1} parent=43 // pred_check
          %p4524 = pneg %p200
        $region54: #{tpu_custom_call.1} parent=43 // pred_check_branch
          %4526 = sbr.rel (%p4524) target = $region56
        $region55: #{tpu_custom_call.1} parent=43 // pred_region
          %s4528 = ssub.s32 256, 256
          %4529 = vsyncadd %s4520, %s4528
          %s4530 = smul.addr %s26, 2
          %s4531 = smul.addr %s4530, 128
          %s4532 = scalar_lea.hbm %s6, %s4531
          %s4533 = sshll.u32 %s4523, 4
          %s4534 = int_to_ptr.vmem [resolvable:$true] %s4533
          %4539 = dma.vmem_to_hbm [thread:$0]  %s4534, 256, %s4532, %s4520, 128, 128, 8
        $region56: #{tpu_custom_call.1} parent=43 // pred_fallthru
          _
      $region44: #{tpu_custom_call.1} parent=5 // pred_fallthru
        _
      %p4540 = scmp.le.s32.totalorder 2, %s21
      // Predicated region
      $region57: #{tpu_custom_call.1} parent=5 // pred_check
        %p4541 = pneg %p4540
      $region58: #{tpu_custom_call.1} parent=5 // pred_check_branch
        %4543 = sbr.rel (%p4541) target = $region60
      $region59: #{tpu_custom_call.1} parent=5 // pred_region
        %s4544 = ssub.s32 %s21, 2
        // Predicated region
        $region61: #{tpu_custom_call.1} parent=59 // pred_check
          %p4545 = pneg %p206
        $region62: #{tpu_custom_call.1} parent=59 // pred_check_branch
          %4547 = sbr.rel (%p4545) target = $region64
        $region63: #{tpu_custom_call.1} parent=59 // pred_region
          %s4548 = sand.u32 %s191, 1
          %s4549 = scalar_lea.sflag [#allocation4], %s4548
          %s4550 = sand.u32 %s191, 1
          %s4551 = smul.addr %s4550, 16
          %s4552 = scalar_lea.vmem [#allocation7], %s4551
          %4553 = dma.done %s4549, 256
        $region64: #{tpu_custom_call.1} parent=59 // pred_fallthru
          _
      $region60: #{tpu_custom_call.1} parent=5 // pred_fallthru
        _
    $region6: #{tpu_custom_call.1} parent=1 // loop_footer
      %s25 = sadd.s32 1, %s21
    $region7: #{tpu_custom_call.1} parent=1 // loop_footer_branch
      %20 = sbr.rel target = $region3
    $region8: #{tpu_custom_call.1} parent=1 // loop_exit
      _
    %4554 = vsyncpa [#allocation3], 1
    %s4555 = scalar_lea.sflag [#allocation3], 1
    %4556 = vsyncpa %s4555, 1
    %4557 = vsyncpa [#allocation6], 1
    %s4558 = scalar_lea.sflag [#allocation6], 1
    %4559 = vsyncpa %s4558, 1
    %4560 = vsyncpa [#allocation4], 1
    %s4561 = scalar_lea.sflag [#allocation4], 1
    %4562 = vsyncpa %s4561, 1

</llo_original>
